<compile_context>
chip_gen: v6e
topology: v6e:2x2x1
jax: 0.10.0
libtpu: 0.0.40
codegen_flags: <defaults>
</compile_context>

<pallas_src>
import functools

import jax
import jax.numpy as jnp
from jax import lax
from jax.experimental import pallas as pl
from jax.experimental.pallas import tpu as pltpu


# ----------------------------------------------------------------------------
# Kernel 1: backbone stand-in (3x3 SAME conv stem + ReLU + global avg pool).
#
# The padded image is spatially flattened per batch element: xf[b, q, :] =
# xpad[b, q // Wp, q % Wp, :].  For output position p = i*Wp + j, the 3x3 tap
# (di, dj) reads xf[b, p + di*Wp + dj, :], so the conv is 9 shifted 1x1 convs.
# Positions with j >= W or p >= H*Wp (and the rounded-up tail) are masked out
# of the pool.  Per chunk of Tp positions the live activation is only
# (Tp, Cf); the pooled ReLU sum is accumulated into a (Bt, Cf) VMEM scratch.
# ----------------------------------------------------------------------------
def backbone_kernel(x_ref, w_ref, mask_ref, o_ref, acc_ref, *,
                    wp, tp, num_chunks, inv_hw):
    bt, cf = acc_ref.shape
    acc_ref[...] = jnp.zeros_like(acc_ref)

    @pl.loop(0, num_chunks)
    def _chunk(c):
        start = pl.multiple_of(c * tp, tp)
        m = mask_ref[pl.ds(start, tp), :]                       # (Tp, 1) f32

        for b in range(bt):                                     # static unroll
            conv = jnp.zeros((tp, cf), jnp.float32)
            for k in range(9):                                  # 3x3 taps
                off = (k // 3) * wp + (k % 3)
                patch = x_ref[b, pl.ds(start + off, tp), :]     # (Tp, C) f32
                conv = conv + jnp.dot(patch.astype(jnp.bfloat16), w_ref[k],
                                      preferred_element_type=jnp.float32)
            act = jnp.maximum(conv, 0.0) * m                    # ReLU + mask
            acc_ref[b:b + 1, :] = acc_ref[b:b + 1, :] + jnp.sum(
                act, axis=0, keepdims=True)

    # adaptive average pool over the H*W valid positions
    o_ref[...] = (acc_ref[...] * inv_hw).astype(o_ref.dtype)


def backbone_features(images_nchw, w_conv, *, tp=128, bt=None):
    B, C, H, W = images_nchw.shape
    cf = w_conv.shape[-1]
    hp, wp = H + 2, W + 2
    p_total = H * wp                            # evaluated positions (masked)
    num_chunks = pl.cdiv(p_total, tp)
    p_round = num_chunks * tp
    flat_len = p_round + 2 * wp + 2             # every shifted read in bounds

    # Layout plumbing only (no compute, no 9x duplication): NCHW -> padded
    # NHWC -> flatten spatial -> zero tail pad.
    x = jnp.transpose(images_nchw, (0, 2, 3, 1))
    x = jnp.pad(x, ((0, 0), (1, 1), (1, 1), (0, 0)))
    x = x.reshape(B, hp * wp, C)
    x = jnp.pad(x, ((0, 0), (0, flat_len - hp * wp), (0, 0)))

    p_ids = jnp.arange(p_round, dtype=jnp.int32)
    valid = (p_ids < H * wp) & (p_ids % wp < W)
    mask = valid.astype(jnp.float32)[:, None]                   # (P_round, 1)

    if bt is None:
        bt = min(B, 8)                  # fill sublanes of the (Bt, Cf) output
    assert B % bt == 0, "batch must be divisible by the batch tile"

    kern = functools.partial(backbone_kernel, wp=wp, tp=tp,
                             num_chunks=num_chunks, inv_hw=1.0 / (H * W))

    return pl.pallas_call(
        kern,
        out_shape=jax.ShapeDtypeStruct((B, cf), jnp.float32),
        grid_spec=pltpu.PrefetchScalarGridSpec(
            num_scalar_prefetch=0,
            grid=(B // bt,),
            in_specs=[
                pl.BlockSpec((bt, flat_len, C), lambda i: (i, 0, 0)),
                pl.BlockSpec((9, C, cf), lambda i: (0, 0, 0)),
                pl.BlockSpec((p_round, 1), lambda i: (0, 0)),
            ],
            out_specs=pl.BlockSpec((bt, cf), lambda i: (i, 0)),
            scratch_shapes=[pltpu.VMEM((bt, cf), jnp.float32)],
        ),
        compiler_params=pltpu.CompilerParams(
            dimension_semantics=("parallel",),
            vmem_limit_bytes=32 * 1024 * 1024),
    )(x, w_conv.astype(jnp.bfloat16), mask)


# ----------------------------------------------------------------------------
# Kernel 2: embed Linear + BatchNorm1d (training mode: batch mean, biased var,
# eps=1e-5, affine).  Grid: (E tiles "parallel", F tiles "arbitrary" reduction)
# with a (B, Te) f32 VMEM accumulator.  One-pass stats (sum / sum-of-squares).
# The Linear bias is omitted: training-mode BN subtracts the batch mean, so a
# constant per-feature bias cancels exactly (bit-identical output).
# ----------------------------------------------------------------------------
def head_kernel(f_ref, w_ref, g_ref, bt_ref, o_ref, acc_ref, *, eps, inv_b):
    f_idx = pl.program_id(1)

    @pl.when(f_idx == 0)
    def _():
        acc_ref[...] = jnp.zeros_like(acc_ref)

    acc_ref[...] += jnp.dot(f_ref[...].astype(jnp.bfloat16), w_ref[...],
                            preferred_element_type=jnp.float32)

    @pl.when(f_idx == pl.num_programs(1) - 1)
    def _():
        y = acc_ref[...]                                        # (B, Te) f32
        mean = jnp.sum(y, axis=0, keepdims=True) * inv_b
        mean_sq = jnp.sum(y * y, axis=0, keepdims=True) * inv_b
        var = mean_sq - mean * mean                             # biased var
        y_hat = (y - mean) * lax.rsqrt(var + eps)
        o_ref[...] = (g_ref[...] * y_hat + bt_ref[...]).astype(o_ref.dtype)


def embed_batchnorm(features, w_embed, gamma, beta, *, te=128, tf=128,
                    eps=1e-5):
    B, F = features.shape
    E = w_embed.shape[1]
    te = min(te, E)
    tf = min(tf, F)
    assert E % te == 0 and F % tf == 0

    kern = functools.partial(head_kernel, eps=eps, inv_b=1.0 / B)

    return pl.pallas_call(
        kern,
        out_shape=jax.ShapeDtypeStruct((B, E), jnp.float32),
        grid_spec=pltpu.PrefetchScalarGridSpec(
            num_scalar_prefetch=0,
            grid=(E // te, F // tf),
            in_specs=[
                pl.BlockSpec((B, tf), lambda e, f: (0, f)),
                pl.BlockSpec((tf, te), lambda e, f: (f, e)),
                pl.BlockSpec((1, te), lambda e, f: (0, e)),
                pl.BlockSpec((1, te), lambda e, f: (0, e)),
            ],
            out_specs=pl.BlockSpec((B, te), lambda e, f: (0, e)),
            scratch_shapes=[pltpu.VMEM((B, te), jnp.float32)],
        ),
        compiler_params=pltpu.CompilerParams(
            dimension_semantics=("parallel", "arbitrary"),
            vmem_limit_bytes=32 * 1024 * 1024),
    )(features, w_embed.astype(jnp.bfloat16), gamma, beta)


# ----------------------------------------------------------------------------
# Full forward: "features = resnet(x).view(B,-1); embed; batch_norm".
# ----------------------------------------------------------------------------
def encoder_cnn_forward(images, w_conv, w_embed, b_embed, gamma, beta):
    feats = backbone_features(images, w_conv)          # (B, Cf)
    # b_embed is mathematically cancelled by training-mode BatchNorm's mean
    # subtraction; not passed to the kernel (saves one DMA + broadcast add).
    del b_embed
    return embed_batchnorm(feats, w_embed, gamma, beta)  # (B, E)


if __name__ == "__main__":
    key = jax.random.PRNGKey(0)
    k1, k2, k3 = jax.random.split(key, 3)

    # Small shapes consistent with the module's forward (NCHW images).
    B, C, H, W = 2, 3, 16, 16
    CF = 128        # stand-in for resnet.fc.in_features (2048); lane-dense
    E = 128         # embed_size; lane-dense

    images = jax.random.normal(k1, (B, C, H, W), jnp.float32)

    # Conv stem taps: index k = di*3 + dj is the (di, dj) kernel offset;
    # w_conv[k] is the (C, CF) tap applied to xpad[:, i+di, j+dj, :].
    w_conv = jax.random.normal(k2, (9, C, CF), jnp.float32) * 0.1
    w_embed = jax.random.normal(k3, (CF, E), jnp.float32) * 0.1   # Linear W^T
    b_embed = jnp.zeros((1, E), jnp.float32)   # cancelled by training-mode BN
    gamma = jnp.ones((1, E), jnp.float32)      # BN weight
    beta = jnp.zeros((1, E), jnp.float32)      # BN bias

    out = encoder_cnn_forward(images, w_conv, w_embed, b_embed, gamma, beta)
    jax.block_until_ready(out)
    assert out.shape == (B, E) and out.dtype == jnp.float32
    print("KERNEL_OK")
</pallas_src>

<mosaic_0001>
module attributes {stable_mosaic.version = 11 : i64} {
  func.func @backbone_kernel(%arg0: i32, %arg1: memref<2x422x3xf32, #tpu.memory_space<vmem>>, %arg2: memref<9x3x128xbf16, #tpu.memory_space<vmem>>, %arg3: memref<384x1xf32, #tpu.memory_space<vmem>>, %arg4: memref<2x128xf32, #tpu.memory_space<vmem>>, %arg5: memref<2x128xf32, #tpu.memory_space<vmem>>) attributes {dimension_semantics = [#tpu.dimension_semantics<parallel>], iteration_bounds = array<i64: 1>, scalar_prefetch = 0 : i64, scratch_operands = 1 : i64, tpu.core_type = #tpu.core_type<tc>, window_params = [{transform_indices = @transform_0, window_bounds = array<i64: 2, 422, 3>}, {pipeline_mode = #tpu.pipeline_mode<synchronous>, transform_indices = @transform_1, window_bounds = array<i64: 9, 3, 128>}, {pipeline_mode = #tpu.pipeline_mode<synchronous>, transform_indices = @transform_2, window_bounds = array<i64: 384, 1>}, {transform_indices = @transform_3, window_bounds = array<i64: 2, 128>}]} {
    %cst = arith.constant 0.000000e+00 : f32
    %0 = vector.broadcast %cst : f32 to vector<2x128xf32>
    %c0 = arith.constant 0 : index
    %c0_0 = arith.constant 0 : index
    %1 = vector.load %arg5[%c0, %c0_0] : memref<2x128xf32, #tpu.memory_space<vmem>>, vector<2x128xf32>
    tpu.vector_store %arg5[%c0, %c0_0], %0 {strides = array<i32>} : memref<2x128xf32, #tpu.memory_space<vmem>>, vector<2x128xf32>,
    %c0_i32 = arith.constant 0 : i32
    %c3_i32 = arith.constant 3 : i32
    %2 = arith.addi %c0_i32, %c3_i32 : i32
    %c1_i32 = arith.constant 1 : i32
    scf.for %arg6 = %c0_i32 to %2 step %c1_i32  : i32 {
      %c1_i32_7 = arith.constant 1 : i32
      %7 = arith.muli %arg6, %c1_i32_7 : i32
      %c0_i32_8 = arith.constant 0 : i32
      %8 = arith.addi %c0_i32_8, %7 : i32
      %c128_i32 = arith.constant 128 : i32
      %9 = arith.muli %8, %c128_i32 : i32
      %10 = tpu.assume_multiple %9, 128 : i32
      %11 = arith.index_cast %10 : i32 to index
      %c0_9 = arith.constant 0 : index
      %12 = vector.load %arg3[%11, %c0_9] : memref<384x1xf32, #tpu.memory_space<vmem>>, vector<128x1xf32>
      %cst_10 = arith.constant 0.000000e+00 : f32
      %13 = vector.broadcast %cst_10 : f32 to vector<128x128xf32>
      %c0_i32_11 = arith.constant 0 : i32
      %14 = arith.addi %10, %c0_i32_11 : i32
      %c0_12 = arith.constant 0 : index
      %15 = arith.index_cast %14 : i32 to index
      %c0_13 = arith.constant 0 : index
      %16 = vector.load %arg1[%c0_12, %15, %c0_13] : memref<2x422x3xf32, #tpu.memory_space<vmem>>, vector<1x128x3xf32>
      %17 = vector.shape_cast %16 : vector<1x128x3xf32> to vector<128x3xf32>
      %18 = arith.truncf %17 : vector<128x3xf32> to vector<128x3xbf16>
      %c0_14 = arith.constant 0 : index
      %c0_15 = arith.constant 0 : index
      %c0_16 = arith.constant 0 : index
      %19 = vector.load %arg2[%c0_14, %c0_15, %c0_16] : memref<9x3x128xbf16, #tpu.memory_space<vmem>>, vector<1x3x128xbf16>
      %20 = vector.shape_cast %19 : vector<1x3x128xbf16> to vector<3x128xbf16>
      %cst_17 = arith.constant dense<0.000000e+00> : vector<128x128xf32>
      %21 = tpu.matmul %18, %20, %cst_17 {dimension_numbers = #tpu.dot_dimension_numbers<[1], [0], [0], [1], [0, 0, 1, 1], [], []>} : vector<128x3xbf16>, vector<3x128xbf16>, vector<128x128xf32> -> vector<128x128xf32>
      %22 = arith.addf %13, %21 : vector<128x128xf32>
      %c1_i32_18 = arith.constant 1 : i32
      %23 = arith.addi %10, %c1_i32_18 : i32
      %c0_19 = arith.constant 0 : index
      %24 = arith.index_cast %23 : i32 to index
      %c0_20 = arith.constant 0 : index
      %25 = vector.load %arg1[%c0_19, %24, %c0_20] : memref<2x422x3xf32, #tpu.memory_space<vmem>>, vector<1x128x3xf32>
      %26 = vector.shape_cast %25 : vector<1x128x3xf32> to vector<128x3xf32>
      %27 = arith.truncf %26 : vector<128x3xf32> to vector<128x3xbf16>
      %c1 = arith.constant 1 : index
      %c0_21 = arith.constant 0 : index
      %c0_22 = arith.constant 0 : index
      %28 = vector.load %arg2[%c1, %c0_21, %c0_22] : memref<9x3x128xbf16, #tpu.memory_space<vmem>>, vector<1x3x128xbf16>
      %29 = vector.shape_cast %28 : vector<1x3x128xbf16> to vector<3x128xbf16>
      %cst_23 = arith.constant dense<0.000000e+00> : vector<128x128xf32>
      %30 = tpu.matmul %27, %29, %cst_23 {dimension_numbers = #tpu.dot_dimension_numbers<[1], [0], [0], [1], [0, 0, 1, 1], [], []>} : vector<128x3xbf16>, vector<3x128xbf16>, vector<128x128xf32> -> vector<128x128xf32>
      %31 = arith.addf %22, %30 : vector<128x128xf32>
      %c2_i32 = arith.constant 2 : i32
      %32 = arith.addi %10, %c2_i32 : i32
      %c0_24 = arith.constant 0 : index
      %33 = arith.index_cast %32 : i32 to index
      %c0_25 = arith.constant 0 : index
      %34 = vector.load %arg1[%c0_24, %33, %c0_25] : memref<2x422x3xf32, #tpu.memory_space<vmem>>, vector<1x128x3xf32>
      %35 = vector.shape_cast %34 : vector<1x128x3xf32> to vector<128x3xf32>
      %36 = arith.truncf %35 : vector<128x3xf32> to vector<128x3xbf16>
      %c2 = arith.constant 2 : index
      %c0_26 = arith.constant 0 : index
      %c0_27 = arith.constant 0 : index
      %37 = vector.load %arg2[%c2, %c0_26, %c0_27] : memref<9x3x128xbf16, #tpu.memory_space<vmem>>, vector<1x3x128xbf16>
      %38 = vector.shape_cast %37 : vector<1x3x128xbf16> to vector<3x128xbf16>
      %cst_28 = arith.constant dense<0.000000e+00> : vector<128x128xf32>
      %39 = tpu.matmul %36, %38, %cst_28 {dimension_numbers = #tpu.dot_dimension_numbers<[1], [0], [0], [1], [0, 0, 1, 1], [], []>} : vector<128x3xbf16>, vector<3x128xbf16>, vector<128x128xf32> -> vector<128x128xf32>
      %40 = arith.addf %31, %39 : vector<128x128xf32>
      %c18_i32 = arith.constant 18 : i32
      %41 = arith.addi %10, %c18_i32 : i32
      %c0_29 = arith.constant 0 : index
      %42 = arith.index_cast %41 : i32 to index
      %c0_30 = arith.constant 0 : index
      %43 = vector.load %arg1[%c0_29, %42, %c0_30] : memref<2x422x3xf32, #tpu.memory_space<vmem>>, vector<1x128x3xf32>
      %44 = vector.shape_cast %43 : vector<1x128x3xf32> to vector<128x3xf32>
      %45 = arith.truncf %44 : vector<128x3xf32> to vector<128x3xbf16>
      %c3 = arith.constant 3 : index
      %c0_31 = arith.constant 0 : index
      %c0_32 = arith.constant 0 : index
      %46 = vector.load %arg2[%c3, %c0_31, %c0_32] : memref<9x3x128xbf16, #tpu.memory_space<vmem>>, vector<1x3x128xbf16>
      %47 = vector.shape_cast %46 : vector<1x3x128xbf16> to vector<3x128xbf16>
      %cst_33 = arith.constant dense<0.000000e+00> : vector<128x128xf32>
      %48 = tpu.matmul %45, %47, %cst_33 {dimension_numbers = #tpu.dot_dimension_numbers<[1], [0], [0], [1], [0, 0, 1, 1], [], []>} : vector<128x3xbf16>, vector<3x128xbf16>, vector<128x128xf32> -> vector<128x128xf32>
      %49 = arith.addf %40, %48 : vector<128x128xf32>
      %c19_i32 = arith.constant 19 : i32
      %50 = arith.addi %10, %c19_i32 : i32
      %c0_34 = arith.constant 0 : index
      %51 = arith.index_cast %50 : i32 to index
      %c0_35 = arith.constant 0 : index
      %52 = vector.load %arg1[%c0_34, %51, %c0_35] : memref<2x422x3xf32, #tpu.memory_space<vmem>>, vector<1x128x3xf32>
      %53 = vector.shape_cast %52 : vector<1x128x3xf32> to vector<128x3xf32>
      %54 = arith.truncf %53 : vector<128x3xf32> to vector<128x3xbf16>
      %c4 = arith.constant 4 : index
      %c0_36 = arith.constant 0 : index
      %c0_37 = arith.constant 0 : index
      %55 = vector.load %arg2[%c4, %c0_36, %c0_37] : memref<9x3x128xbf16, #tpu.memory_space<vmem>>, vector<1x3x128xbf16>
      %56 = vector.shape_cast %55 : vector<1x3x128xbf16> to vector<3x128xbf16>
      %cst_38 = arith.constant dense<0.000000e+00> : vector<128x128xf32>
      %57 = tpu.matmul %54, %56, %cst_38 {dimension_numbers = #tpu.dot_dimension_numbers<[1], [0], [0], [1], [0, 0, 1, 1], [], []>} : vector<128x3xbf16>, vector<3x128xbf16>, vector<128x128xf32> -> vector<128x128xf32>
      %58 = arith.addf %49, %57 : vector<128x128xf32>
      %c20_i32 = arith.constant 20 : i32
      %59 = arith.addi %10, %c20_i32 : i32
      %c0_39 = arith.constant 0 : index
      %60 = arith.index_cast %59 : i32 to index
      %c0_40 = arith.constant 0 : index
      %61 = vector.load %arg1[%c0_39, %60, %c0_40] : memref<2x422x3xf32, #tpu.memory_space<vmem>>, vector<1x128x3xf32>
      %62 = vector.shape_cast %61 : vector<1x128x3xf32> to vector<128x3xf32>
      %63 = arith.truncf %62 : vector<128x3xf32> to vector<128x3xbf16>
      %c5 = arith.constant 5 : index
      %c0_41 = arith.constant 0 : index
      %c0_42 = arith.constant 0 : index
      %64 = vector.load %arg2[%c5, %c0_41, %c0_42] : memref<9x3x128xbf16, #tpu.memory_space<vmem>>, vector<1x3x128xbf16>
      %65 = vector.shape_cast %64 : vector<1x3x128xbf16> to vector<3x128xbf16>
      %cst_43 = arith.constant dense<0.000000e+00> : vector<128x128xf32>
      %66 = tpu.matmul %63, %65, %cst_43 {dimension_numbers = #tpu.dot_dimension_numbers<[1], [0], [0], [1], [0, 0, 1, 1], [], []>} : vector<128x3xbf16>, vector<3x128xbf16>, vector<128x128xf32> -> vector<128x128xf32>
      %67 = arith.addf %58, %66 : vector<128x128xf32>
      %c36_i32 = arith.constant 36 : i32
      %68 = arith.addi %10, %c36_i32 : i32
      %c0_44 = arith.constant 0 : index
      %69 = arith.index_cast %68 : i32 to index
      %c0_45 = arith.constant 0 : index
      %70 = vector.load %arg1[%c0_44, %69, %c0_45] : memref<2x422x3xf32, #tpu.memory_space<vmem>>, vector<1x128x3xf32>
      %71 = vector.shape_cast %70 : vector<1x128x3xf32> to vector<128x3xf32>
      %72 = arith.truncf %71 : vector<128x3xf32> to vector<128x3xbf16>
      %c6 = arith.constant 6 : index
      %c0_46 = arith.constant 0 : index
      %c0_47 = arith.constant 0 : index
      %73 = vector.load %arg2[%c6, %c0_46, %c0_47] : memref<9x3x128xbf16, #tpu.memory_space<vmem>>, vector<1x3x128xbf16>
      %74 = vector.shape_cast %73 : vector<1x3x128xbf16> to vector<3x128xbf16>
      %cst_48 = arith.constant dense<0.000000e+00> : vector<128x128xf32>
      %75 = tpu.matmul %72, %74, %cst_48 {dimension_numbers = #tpu.dot_dimension_numbers<[1], [0], [0], [1], [0, 0, 1, 1], [], []>} : vector<128x3xbf16>, vector<3x128xbf16>, vector<128x128xf32> -> vector<128x128xf32>
      %76 = arith.addf %67, %75 : vector<128x128xf32>
      %c37_i32 = arith.constant 37 : i32
      %77 = arith.addi %10, %c37_i32 : i32
      %c0_49 = arith.constant 0 : index
      %78 = arith.index_cast %77 : i32 to index
      %c0_50 = arith.constant 0 : index
      %79 = vector.load %arg1[%c0_49, %78, %c0_50] : memref<2x422x3xf32, #tpu.memory_space<vmem>>, vector<1x128x3xf32>
      %80 = vector.shape_cast %79 : vector<1x128x3xf32> to vector<128x3xf32>
      %81 = arith.truncf %80 : vector<128x3xf32> to vector<128x3xbf16>
      %c7 = arith.constant 7 : index
      %c0_51 = arith.constant 0 : index
      %c0_52 = arith.constant 0 : index
      %82 = vector.load %arg2[%c7, %c0_51, %c0_52] : memref<9x3x128xbf16, #tpu.memory_space<vmem>>, vector<1x3x128xbf16>
      %83 = vector.shape_cast %82 : vector<1x3x128xbf16> to vector<3x128xbf16>
      %cst_53 = arith.constant dense<0.000000e+00> : vector<128x128xf32>
      %84 = tpu.matmul %81, %83, %cst_53 {dimension_numbers = #tpu.dot_dimension_numbers<[1], [0], [0], [1], [0, 0, 1, 1], [], []>} : vector<128x3xbf16>, vector<3x128xbf16>, vector<128x128xf32> -> vector<128x128xf32>
      %85 = arith.addf %76, %84 : vector<128x128xf32>
      %c38_i32 = arith.constant 38 : i32
      %86 = arith.addi %10, %c38_i32 : i32
      %c0_54 = arith.constant 0 : index
      %87 = arith.index_cast %86 : i32 to index
      %c0_55 = arith.constant 0 : index
      %88 = vector.load %arg1[%c0_54, %87, %c0_55] : memref<2x422x3xf32, #tpu.memory_space<vmem>>, vector<1x128x3xf32>
      %89 = vector.shape_cast %88 : vector<1x128x3xf32> to vector<128x3xf32>
      %90 = arith.truncf %89 : vector<128x3xf32> to vector<128x3xbf16>
      %c8 = arith.constant 8 : index
      %c0_56 = arith.constant 0 : index
      %c0_57 = arith.constant 0 : index
      %91 = vector.load %arg2[%c8, %c0_56, %c0_57] : memref<9x3x128xbf16, #tpu.memory_space<vmem>>, vector<1x3x128xbf16>
      %92 = vector.shape_cast %91 : vector<1x3x128xbf16> to vector<3x128xbf16>
      %cst_58 = arith.constant dense<0.000000e+00> : vector<128x128xf32>
      %93 = tpu.matmul %90, %92, %cst_58 {dimension_numbers = #tpu.dot_dimension_numbers<[1], [0], [0], [1], [0, 0, 1, 1], [], []>} : vector<128x3xbf16>, vector<3x128xbf16>, vector<128x128xf32> -> vector<128x128xf32>
      %94 = arith.addf %85, %93 : vector<128x128xf32>
      %cst_59 = arith.constant 0.000000e+00 : f32
      %95 = vector.broadcast %cst_59 : f32 to vector<128x128xf32>
      %96 = arith.maximumf %94, %95 : vector<128x128xf32>
      %97 = vector.broadcast %12 : vector<128x1xf32> to vector<128x128xf32>
      %98 = arith.mulf %96, %97 : vector<128x128xf32>
      %c0_60 = arith.constant 0 : index
      %c0_61 = arith.constant 0 : index
      %99 = vector.load %arg5[%c0_60, %c0_61] : memref<2x128xf32, #tpu.memory_space<vmem>>, vector<1x128xf32>
      %cst_62 = arith.constant dense<0.000000e+00> : vector<128xf32>
      %100 = vector.multi_reduction <add>, %98, %cst_62 [0] : vector<128x128xf32> to vector<128xf32>
      %101 = vector.shape_cast %100 : vector<128xf32> to vector<1x128xf32>
      %102 = arith.addf %99, %101 : vector<1x128xf32>
      %c0_63 = arith.constant 0 : index
      %c0_64 = arith.constant 0 : index
      %103 = vector.load %arg5[%c0_63, %c0_64] : memref<2x128xf32, #tpu.memory_space<vmem>>, vector<1x128xf32>
      tpu.vector_store %arg5[%c0_63, %c0_64], %102 {strides = array<i32>} : memref<2x128xf32, #tpu.memory_space<vmem>>, vector<1x128xf32>,
      %cst_65 = arith.constant 0.000000e+00 : f32
      %104 = vector.broadcast %cst_65 : f32 to vector<128x128xf32>
      %c0_i32_66 = arith.constant 0 : i32
      %105 = arith.addi %10, %c0_i32_66 : i32
      %c1_67 = arith.constant 1 : index
      %106 = arith.index_cast %105 : i32 to index
      %c0_68 = arith.constant 0 : index
      %107 = vector.load %arg1[%c1_67, %106, %c0_68] : memref<2x422x3xf32, #tpu.memory_space<vmem>>, vector<1x128x3xf32>
      %108 = vector.shape_cast %107 : vector<1x128x3xf32> to vector<128x3xf32>
      %109 = arith.truncf %108 : vector<128x3xf32> to vector<128x3xbf16>
      %c0_69 = arith.constant 0 : index
      %c0_70 = arith.constant 0 : index
      %c0_71 = arith.constant 0 : index
      %110 = vector.load %arg2[%c0_69, %c0_70, %c0_71] : memref<9x3x128xbf16, #tpu.memory_space<vmem>>, vector<1x3x128xbf16>
      %111 = vector.shape_cast %110 : vector<1x3x128xbf16> to vector<3x128xbf16>
      %cst_72 = arith.constant dense<0.000000e+00> : vector<128x128xf32>
      %112 = tpu.matmul %109, %111, %cst_72 {dimension_numbers = #tpu.dot_dimension_numbers<[1], [0], [0], [1], [0, 0, 1, 1], [], []>} : vector<128x3xbf16>, vector<3x128xbf16>, vector<128x128xf32> -> vector<128x128xf32>
      %113 = arith.addf %104, %112 : vector<128x128xf32>
      %c1_i32_73 = arith.constant 1 : i32
      %114 = arith.addi %10, %c1_i32_73 : i32
      %c1_74 = arith.constant 1 : index
      %115 = arith.index_cast %114 : i32 to index
      %c0_75 = arith.constant 0 : index
      %116 = vector.load %arg1[%c1_74, %115, %c0_75] : memref<2x422x3xf32, #tpu.memory_space<vmem>>, vector<1x128x3xf32>
      %117 = vector.shape_cast %116 : vector<1x128x3xf32> to vector<128x3xf32>
      %118 = arith.truncf %117 : vector<128x3xf32> to vector<128x3xbf16>
      %c1_76 = arith.constant 1 : index
      %c0_77 = arith.constant 0 : index
      %c0_78 = arith.constant 0 : index
      %119 = vector.load %arg2[%c1_76, %c0_77, %c0_78] : memref<9x3x128xbf16, #tpu.memory_space<vmem>>, vector<1x3x128xbf16>
      %120 = vector.shape_cast %119 : vector<1x3x128xbf16> to vector<3x128xbf16>
      %cst_79 = arith.constant dense<0.000000e+00> : vector<128x128xf32>
      %121 = tpu.matmul %118, %120, %cst_79 {dimension_numbers = #tpu.dot_dimension_numbers<[1], [0], [0], [1], [0, 0, 1, 1], [], []>} : vector<128x3xbf16>, vector<3x128xbf16>, vector<128x128xf32> -> vector<128x128xf32>
      %122 = arith.addf %113, %121 : vector<128x128xf32>
      %c2_i32_80 = arith.constant 2 : i32
      %123 = arith.addi %10, %c2_i32_80 : i32
      %c1_81 = arith.constant 1 : index
      %124 = arith.index_cast %123 : i32 to index
      %c0_82 = arith.constant 0 : index
      %125 = vector.load %arg1[%c1_81, %124, %c0_82] : memref<2x422x3xf32, #tpu.memory_space<vmem>>, vector<1x128x3xf32>
      %126 = vector.shape_cast %125 : vector<1x128x3xf32> to vector<128x3xf32>
      %127 = arith.truncf %126 : vector<128x3xf32> to vector<128x3xbf16>
      %c2_83 = arith.constant 2 : index
      %c0_84 = arith.constant 0 : index
      %c0_85 = arith.constant 0 : index
      %128 = vector.load %arg2[%c2_83, %c0_84, %c0_85] : memref<9x3x128xbf16, #tpu.memory_space<vmem>>, vector<1x3x128xbf16>
      %129 = vector.shape_cast %128 : vector<1x3x128xbf16> to vector<3x128xbf16>
      %cst_86 = arith.constant dense<0.000000e+00> : vector<128x128xf32>
      %130 = tpu.matmul %127, %129, %cst_86 {dimension_numbers = #tpu.dot_dimension_numbers<[1], [0], [0], [1], [0, 0, 1, 1], [], []>} : vector<128x3xbf16>, vector<3x128xbf16>, vector<128x128xf32> -> vector<128x128xf32>
      %131 = arith.addf %122, %130 : vector<128x128xf32>
      %c18_i32_87 = arith.constant 18 : i32
      %132 = arith.addi %10, %c18_i32_87 : i32
      %c1_88 = arith.constant 1 : index
      %133 = arith.index_cast %132 : i32 to index
      %c0_89 = arith.constant 0 : index
      %134 = vector.load %arg1[%c1_88, %133, %c0_89] : memref<2x422x3xf32, #tpu.memory_space<vmem>>, vector<1x128x3xf32>
      %135 = vector.shape_cast %134 : vector<1x128x3xf32> to vector<128x3xf32>
      %136 = arith.truncf %135 : vector<128x3xf32> to vector<128x3xbf16>
      %c3_90 = arith.constant 3 : index
      %c0_91 = arith.constant 0 : index
      %c0_92 = arith.constant 0 : index
      %137 = vector.load %arg2[%c3_90, %c0_91, %c0_92] : memref<9x3x128xbf16, #tpu.memory_space<vmem>>, vector<1x3x128xbf16>
      %138 = vector.shape_cast %137 : vector<1x3x128xbf16> to vector<3x128xbf16>
      %cst_93 = arith.constant dense<0.000000e+00> : vector<128x128xf32>
      %139 = tpu.matmul %136, %138, %cst_93 {dimension_numbers = #tpu.dot_dimension_numbers<[1], [0], [0], [1], [0, 0, 1, 1], [], []>} : vector<128x3xbf16>, vector<3x128xbf16>, vector<128x128xf32> -> vector<128x128xf32>
      %140 = arith.addf %131, %139 : vector<128x128xf32>
      %c19_i32_94 = arith.constant 19 : i32
      %141 = arith.addi %10, %c19_i32_94 : i32
      %c1_95 = arith.constant 1 : index
      %142 = arith.index_cast %141 : i32 to index
      %c0_96 = arith.constant 0 : index
      %143 = vector.load %arg1[%c1_95, %142, %c0_96] : memref<2x422x3xf32, #tpu.memory_space<vmem>>, vector<1x128x3xf32>
      %144 = vector.shape_cast %143 : vector<1x128x3xf32> to vector<128x3xf32>
      %145 = arith.truncf %144 : vector<128x3xf32> to vector<128x3xbf16>
      %c4_97 = arith.constant 4 : index
      %c0_98 = arith.constant 0 : index
      %c0_99 = arith.constant 0 : index
      %146 = vector.load %arg2[%c4_97, %c0_98, %c0_99] : memref<9x3x128xbf16, #tpu.memory_space<vmem>>, vector<1x3x128xbf16>
      %147 = vector.shape_cast %146 : vector<1x3x128xbf16> to vector<3x128xbf16>
      %cst_100 = arith.constant dense<0.000000e+00> : vector<128x128xf32>
      %148 = tpu.matmul %145, %147, %cst_100 {dimension_numbers = #tpu.dot_dimension_numbers<[1], [0], [0], [1], [0, 0, 1, 1], [], []>} : vector<128x3xbf16>, vector<3x128xbf16>, vector<128x128xf32> -> vector<128x128xf32>
      %149 = arith.addf %140, %148 : vector<128x128xf32>
      %c20_i32_101 = arith.constant 20 : i32
      %150 = arith.addi %10, %c20_i32_101 : i32
      %c1_102 = arith.constant 1 : index
      %151 = arith.index_cast %150 : i32 to index
      %c0_103 = arith.constant 0 : index
      %152 = vector.load %arg1[%c1_102, %151, %c0_103] : memref<2x422x3xf32, #tpu.memory_space<vmem>>, vector<1x128x3xf32>
      %153 = vector.shape_cast %152 : vector<1x128x3xf32> to vector<128x3xf32>
      %154 = arith.truncf %153 : vector<128x3xf32> to vector<128x3xbf16>
      %c5_104 = arith.constant 5 : index
      %c0_105 = arith.constant 0 : index
      %c0_106 = arith.constant 0 : index
      %155 = vector.load %arg2[%c5_104, %c0_105, %c0_106] : memref<9x3x128xbf16, #tpu.memory_space<vmem>>, vector<1x3x128xbf16>
      %156 = vector.shape_cast %155 : vector<1x3x128xbf16> to vector<3x128xbf16>
      %cst_107 = arith.constant dense<0.000000e+00> : vector<128x128xf32>
      %157 = tpu.matmul %154, %156, %cst_107 {dimension_numbers = #tpu.dot_dimension_numbers<[1], [0], [0], [1], [0, 0, 1, 1], [], []>} : vector<128x3xbf16>, vector<3x128xbf16>, vector<128x128xf32> -> vector<128x128xf32>
      %158 = arith.addf %149, %157 : vector<128x128xf32>
      %c36_i32_108 = arith.constant 36 : i32
      %159 = arith.addi %10, %c36_i32_108 : i32
      %c1_109 = arith.constant 1 : index
      %160 = arith.index_cast %159 : i32 to index
      %c0_110 = arith.constant 0 : index
      %161 = vector.load %arg1[%c1_109, %160, %c0_110] : memref<2x422x3xf32, #tpu.memory_space<vmem>>, vector<1x128x3xf32>
      %162 = vector.shape_cast %161 : vector<1x128x3xf32> to vector<128x3xf32>
      %163 = arith.truncf %162 : vector<128x3xf32> to vector<128x3xbf16>
      %c6_111 = arith.constant 6 : index
      %c0_112 = arith.constant 0 : index
      %c0_113 = arith.constant 0 : index
      %164 = vector.load %arg2[%c6_111, %c0_112, %c0_113] : memref<9x3x128xbf16, #tpu.memory_space<vmem>>, vector<1x3x128xbf16>
      %165 = vector.shape_cast %164 : vector<1x3x128xbf16> to vector<3x128xbf16>
      %cst_114 = arith.constant dense<0.000000e+00> : vector<128x128xf32>
      %166 = tpu.matmul %163, %165, %cst_114 {dimension_numbers = #tpu.dot_dimension_numbers<[1], [0], [0], [1], [0, 0, 1, 1], [], []>} : vector<128x3xbf16>, vector<3x128xbf16>, vector<128x128xf32> -> vector<128x128xf32>
      %167 = arith.addf %158, %166 : vector<128x128xf32>
      %c37_i32_115 = arith.constant 37 : i32
      %168 = arith.addi %10, %c37_i32_115 : i32
      %c1_116 = arith.constant 1 : index
      %169 = arith.index_cast %168 : i32 to index
      %c0_117 = arith.constant 0 : index
      %170 = vector.load %arg1[%c1_116, %169, %c0_117] : memref<2x422x3xf32, #tpu.memory_space<vmem>>, vector<1x128x3xf32>
      %171 = vector.shape_cast %170 : vector<1x128x3xf32> to vector<128x3xf32>
      %172 = arith.truncf %171 : vector<128x3xf32> to vector<128x3xbf16>
      %c7_118 = arith.constant 7 : index
      %c0_119 = arith.constant 0 : index
      %c0_120 = arith.constant 0 : index
      %173 = vector.load %arg2[%c7_118, %c0_119, %c0_120] : memref<9x3x128xbf16, #tpu.memory_space<vmem>>, vector<1x3x128xbf16>
      %174 = vector.shape_cast %173 : vector<1x3x128xbf16> to vector<3x128xbf16>
      %cst_121 = arith.constant dense<0.000000e+00> : vector<128x128xf32>
      %175 = tpu.matmul %172, %174, %cst_121 {dimension_numbers = #tpu.dot_dimension_numbers<[1], [0], [0], [1], [0, 0, 1, 1], [], []>} : vector<128x3xbf16>, vector<3x128xbf16>, vector<128x128xf32> -> vector<128x128xf32>
      %176 = arith.addf %167, %175 : vector<128x128xf32>
      %c38_i32_122 = arith.constant 38 : i32
      %177 = arith.addi %10, %c38_i32_122 : i32
      %c1_123 = arith.constant 1 : index
      %178 = arith.index_cast %177 : i32 to index
      %c0_124 = arith.constant 0 : index
      %179 = vector.load %arg1[%c1_123, %178, %c0_124] : memref<2x422x3xf32, #tpu.memory_space<vmem>>, vector<1x128x3xf32>
      %180 = vector.shape_cast %179 : vector<1x128x3xf32> to vector<128x3xf32>
      %181 = arith.truncf %180 : vector<128x3xf32> to vector<128x3xbf16>
      %c8_125 = arith.constant 8 : index
      %c0_126 = arith.constant 0 : index
      %c0_127 = arith.constant 0 : index
      %182 = vector.load %arg2[%c8_125, %c0_126, %c0_127] : memref<9x3x128xbf16, #tpu.memory_space<vmem>>, vector<1x3x128xbf16>
      %183 = vector.shape_cast %182 : vector<1x3x128xbf16> to vector<3x128xbf16>
      %cst_128 = arith.constant dense<0.000000e+00> : vector<128x128xf32>
      %184 = tpu.matmul %181, %183, %cst_128 {dimension_numbers = #tpu.dot_dimension_numbers<[1], [0], [0], [1], [0, 0, 1, 1], [], []>} : vector<128x3xbf16>, vector<3x128xbf16>, vector<128x128xf32> -> vector<128x128xf32>
      %185 = arith.addf %176, %184 : vector<128x128xf32>
      %cst_129 = arith.constant 0.000000e+00 : f32
      %186 = vector.broadcast %cst_129 : f32 to vector<128x128xf32>
      %187 = arith.maximumf %185, %186 : vector<128x128xf32>
      %188 = vector.broadcast %12 : vector<128x1xf32> to vector<128x128xf32>
      %189 = arith.mulf %187, %188 : vector<128x128xf32>
      %c1_130 = arith.constant 1 : index
      %c0_131 = arith.constant 0 : index
      %190 = vector.load %arg5[%c1_130, %c0_131] : memref<2x128xf32, #tpu.memory_space<vmem>>, vector<1x128xf32>
      %cst_132 = arith.constant dense<0.000000e+00> : vector<128xf32>
      %191 = vector.multi_reduction <add>, %189, %cst_132 [0] : vector<128x128xf32> to vector<128xf32>
      %192 = vector.shape_cast %191 : vector<128xf32> to vector<1x128xf32>
      %193 = arith.addf %190, %192 : vector<1x128xf32>
      %c1_133 = arith.constant 1 : index
      %c0_134 = arith.constant 0 : index
      %194 = vector.load %arg5[%c1_133, %c0_134] : memref<2x128xf32, #tpu.memory_space<vmem>>, vector<1x128xf32>
      tpu.vector_store %arg5[%c1_133, %c0_134], %193 {strides = array<i32>} : memref<2x128xf32, #tpu.memory_space<vmem>>, vector<1x128xf32>,
    }
    %c3_i32_1 = arith.constant 3 : i32
    %c0_2 = arith.constant 0 : index
    %c0_3 = arith.constant 0 : index
    %3 = vector.load %arg5[%c0_2, %c0_3] : memref<2x128xf32, #tpu.memory_space<vmem>>, vector<2x128xf32>
    %cst_4 = arith.constant 3.906250e-03 : f32
    %4 = vector.broadcast %cst_4 : f32 to vector<2x128xf32>
    %5 = arith.mulf %3, %4 : vector<2x128xf32>
    %c0_5 = arith.constant 0 : index
    %c0_6 = arith.constant 0 : index
    %6 = vector.load %arg4[%c0_5, %c0_6] : memref<2x128xf32, #tpu.memory_space<vmem>>, vector<2x128xf32>
    tpu.vector_store %arg4[%c0_5, %c0_6], %5 {strides = array<i32>} : memref<2x128xf32, #tpu.memory_space<vmem>>, vector<2x128xf32>,
    return
  }
  func.func @transform_0(%arg0: i32) -> (i32, i32, i32) {
    %c0_i32 = arith.constant 0 : i32
    %c0_i32_0 = arith.constant 0 : i32
    %c0_i32_1 = arith.constant 0 : i32
    return %arg0, %c0_i32, %c0_i32_0 : i32, i32, i32
  }
  func.func @transform_1(%arg0: i32) -> (i32, i32, i32) {
    %c0_i32 = arith.constant 0 : i32
    %c0_i32_0 = arith.constant 0 : i32
    %c0_i32_1 = arith.constant 0 : i32
    %c0_i32_2 = arith.constant 0 : i32
    return %c0_i32, %c0_i32_0, %c0_i32_1 : i32, i32, i32
  }
  func.func @transform_2(%arg0: i32) -> (i32, i32) {
    %c0_i32 = arith.constant 0 : i32
    %c0_i32_0 = arith.constant 0 : i32
    %c0_i32_1 = arith.constant 0 : i32
    return %c0_i32, %c0_i32_0 : i32, i32
  }
  func.func @transform_3(%arg0: i32) -> (i32, i32) {
    %c0_i32 = arith.constant 0 : i32
    %c0_i32_0 = arith.constant 0 : i32
    return %arg0, %c0_i32 : i32, i32
  }
}

</mosaic_0001>

<llo_original>
// kernel: tpu_custom_call.1
$region0: #{tpu_custom_call.1}
  #allocation0 [shape = 'u32[]', space=smem, size = 0x4, offset = 0x4, fixed_abs, tag = 'smem constant byte address 0x4 - core index']
  #allocation1 [shape = 'u32[144,128]{1,0:T(1,128)}', space=vmem, size = 0x12000, scoped, tag = 'internal scratch']
  #allocation2 [shape = 'f32[2,128]{1,0:T(2,128)}', space=vmem, size = 0x400, scoped, tag = 'scratch operand']
  %s0 = inlined_call_operand.vmem [shape: f32[2,422,3], index: 0, kind: input, shape index: {}]
  %s1 = inlined_call_operand.vmem [shape: bf16[9,3,128], index: 1, kind: input, shape index: {}]
  %s2 = inlined_call_operand.vmem [shape: f32[384,1], index: 2, kind: input, shape index: {}]
  %s3 = inlined_call_operand.hbm [shape: f32[2,128], index: 3, kind: output, shape index: {}]
  %s4 = sld [smem:[#allocation0]]
  $region29: #{tpu_custom_call.1} parent=0
    _
  %s6 = ssub.s32 1, %s4
  %s7 = scalar_select 0, %s6, %s4
  $region1: #{tpu_custom_call.1} parent=0
    #allocation3 [shape = 'u8[1024]{0}', space=vmem, size = 0x400, scoped, tag = 'output window, operand 0, single buffered']
    #allocation4 [shape = 's32[1]{0}', space=sflag, size = 0x4, scoped, tag = 'scoped memory for tpu_custom_call.1']
    %8 = vsyncpa [#allocation4], 0
    // Predicated region
    $region2: #{tpu_custom_call.1} parent=1 // pred_check
      _
    $region3: #{tpu_custom_call.1} parent=1 // pred_check_branch
      %10 = sbr.rel (0) target = $region5
    $region4: #{tpu_custom_call.1} parent=1 // pred_region
      _
    $region5: #{tpu_custom_call.1} parent=1 // pred_fallthru
      _
    // Predicated region
    $region6: #{tpu_custom_call.1} parent=1 // pred_check
      _
    $region7: #{tpu_custom_call.1} parent=1 // pred_check_branch
      %12 = sbr.rel (0) target = $region9
    $region8: #{tpu_custom_call.1} parent=1 // pred_region
      _
    $region9: #{tpu_custom_call.1} parent=1 // pred_fallthru
      _
    // Predicated region
    $region10: #{tpu_custom_call.1} parent=1 // pred_check
      _
    $region11: #{tpu_custom_call.1} parent=1 // pred_check_branch
      %14 = sbr.rel (0) target = $region13
    $region12: #{tpu_custom_call.1} parent=1 // pred_region
      _
    $region13: #{tpu_custom_call.1} parent=1 // pred_fallthru
      _
    %16 = vst [vmem:[#allocation2] sm:$0x3] 0.0
    loop: start=0, step=1, limit=3
    $region14: #{tpu_custom_call.1} parent=1 // loop_pre_header
      _
    $region15: #{tpu_custom_call.1} parent=1 // loop_header
      %s18 = sphi 0, %s22
      %p19 = scmp.ge.s32.totalorder %s18, 3
    $region16: #{tpu_custom_call.1} parent=1 // loop_header_branch
      %21 = sbr.rel (%p19) target = $region20
    $region17: #{tpu_custom_call.1} parent=1 // loop_body
      %s23 = smul.u32 %s18, 128
      %s24 = scalar_lea.vmem %s2, %s23
      %v25 = vld [vmem:[%s24] sm:$0xff]
      %v26 = vld [vmem:[%s24 + $0x8] sm:$0xff]
      %v27 = vld [vmem:[%s24 + $0x10] sm:$0xff]
      %v28 = vld [vmem:[%s24 + $0x18] sm:$0xff]
      %v29 = vld [vmem:[%s24 + $0x20] sm:$0xff]
      %v30 = vld [vmem:[%s24 + $0x28] sm:$0xff]
      %v31 = vld [vmem:[%s24 + $0x30] sm:$0xff]
      %v32 = vld [vmem:[%s24 + $0x38] sm:$0xff]
      %v33 = vld [vmem:[%s24 + $0x40] sm:$0xff]
      %v34 = vld [vmem:[%s24 + $0x48] sm:$0xff]
      %v35 = vld [vmem:[%s24 + $0x50] sm:$0xff]
      %v36 = vld [vmem:[%s24 + $0x58] sm:$0xff]
      %v37 = vld [vmem:[%s24 + $0x60] sm:$0xff]
      %v38 = vld [vmem:[%s24 + $0x68] sm:$0xff]
      %v39 = vld [vmem:[%s24 + $0x70] sm:$0xff]
      %v40 = vld [vmem:[%s24 + $0x78] sm:$0xff]
      %s41 = scalar_lea.vmem %s0, %s23
      %v42 = vld [vmem:[%s41] sm:$0xff]
      %v43 = vld [vmem:[%s41 + $0x8] sm:$0xff]
      %v44 = vld [vmem:[%s41 + $0x10] sm:$0xff]
      %v45 = vld [vmem:[%s41 + $0x18] sm:$0xff]
      %v46 = vld [vmem:[%s41 + $0x20] sm:$0xff]
      %v47 = vld [vmem:[%s41 + $0x28] sm:$0xff]
      %v48 = vld [vmem:[%s41 + $0x30] sm:$0xff]
      %v49 = vld [vmem:[%s41 + $0x38] sm:$0xff]
      %v50 = vld [vmem:[%s41 + $0x40] sm:$0xff]
      %v51 = vld [vmem:[%s41 + $0x48] sm:$0xff]
      %v52 = vld [vmem:[%s41 + $0x50] sm:$0xff]
      %v53 = vld [vmem:[%s41 + $0x58] sm:$0xff]
      %v54 = vld [vmem:[%s41 + $0x60] sm:$0xff]
      %v55 = vld [vmem:[%s41 + $0x68] sm:$0xff]
      %v56 = vld [vmem:[%s41 + $0x70] sm:$0xff]
      %v57 = vld [vmem:[%s41 + $0x78] sm:$0xff]
      %v58 = vpack.c.bf16 %v43, %v42
      %v59 = vpack.c.bf16 %v45, %v44
      %v60 = vpack.c.bf16 %v47, %v46
      %v61 = vpack.c.bf16 %v49, %v48
      %v62 = vpack.c.bf16 %v51, %v50
      %v63 = vpack.c.bf16 %v53, %v52
      %v64 = vpack.c.bf16 %v55, %v54
      %v65 = vpack.c.bf16 %v57, %v56
      %v66 = vld [vmem:[%s1] sm:$0x3]
      %s67 = sadd.s32 %s23, 1
      %s68 = scalar_lea.vmem %s0, %s67
      %v69 = vld [vmem:[%s68] sm:$0xff]
      %v70 = vld [vmem:[%s68 + $0x8] sm:$0xff]
      %v71 = vld [vmem:[%s68 + $0x10] sm:$0xff]
      %v72 = vld [vmem:[%s68 + $0x18] sm:$0xff]
      %v73 = vld [vmem:[%s68 + $0x20] sm:$0xff]
      %v74 = vld [vmem:[%s68 + $0x28] sm:$0xff]
      %v75 = vld [vmem:[%s68 + $0x30] sm:$0xff]
      %v76 = vld [vmem:[%s68 + $0x38] sm:$0xff]
      %v77 = vld [vmem:[%s68 + $0x40] sm:$0xff]
      %v78 = vld [vmem:[%s68 + $0x48] sm:$0xff]
      %v79 = vld [vmem:[%s68 + $0x50] sm:$0xff]
      %v80 = vld [vmem:[%s68 + $0x58] sm:$0xff]
      %v81 = vld [vmem:[%s68 + $0x60] sm:$0xff]
      %v82 = vld [vmem:[%s68 + $0x68] sm:$0xff]
      %v83 = vld [vmem:[%s68 + $0x70] sm:$0xff]
      %v84 = vld [vmem:[%s68 + $0x78] sm:$0xff]
      %v85 = vpack.c.bf16 %v70, %v69
      %v86 = vpack.c.bf16 %v72, %v71
      %v87 = vpack.c.bf16 %v74, %v73
      %v88 = vpack.c.bf16 %v76, %v75
      %v89 = vpack.c.bf16 %v78, %v77
      %v90 = vpack.c.bf16 %v80, %v79
      %v91 = vpack.c.bf16 %v82, %v81
      %v92 = vpack.c.bf16 %v84, %v83
      %s93 = scalar_lea.vmem %s1, 2
      %v94 = vld [vmem:[%s93] sm:$0x3]
      %vm95 = vcmask 23552
      %v97 = vsel %vm95, %v85, 0
      %v100 = vsel %vm95, %v86, 0
      %v103 = vsel %vm95, %v87, 0
      %v106 = vsel %vm95, %v88, 0
      %v109 = vsel %vm95, %v89, 0
      %v112 = vsel %vm95, %v90, 0
      %v115 = vsel %vm95, %v91, 0
      %v118 = vsel %vm95, %v92, 0
      %vm120 = vcmask 1040384
      %vm121 = vcmask 1041408
      %v122 = vsel %vm120, 4294967295, 65535
      %v123 = vsel %vm121, %v122, 0
      %v125 = vand.u32 %v94, %v123
      %127 = vmatprep.subr.bf16.mxu0 0
      %128 = vmatpush1.bf16.msra.mxu0 0
      %129 = vmatprep.subr.bf16.mxu0 0
      %130 = vmatpush1.bf16.msra.mxu0 0
      %131 = vmatprep.subr.bf16.mxu0 0
      %132 = vmatpush1.bf16.msra.mxu0 0
      %133 = vmatprep.subr.bf16.mxu0 0
      %134 = vmatpush1.bf16.msra.mxu0 0
      %135 = vmatprep.subr.bf16.mxu0 0
      %136 = vmatpush1.bf16.msra.mxu0 0
      %137 = vmatprep.subr.bf16.mxu0 0
      %138 = vmatpush1.bf16.msra.mxu0 0
      %139 = vmatprep.subr.bf16.mxu0 0
      %140 = vmatpush1.bf16.msra.mxu0 0
      %141 = vmatprep.subr.bf16.mxu0 0
      %142 = vmatpush1.bf16.msra.mxu0 %v125
      %143 = vmatprep.subr.bf16.mxu0 0
      %144 = vmatpush2.bf16.msra.mxu0 0
      %145 = vmatprep.subr.bf16.mxu0 0
      %146 = vmatpush2.bf16.msra.mxu0 0
      %147 = vmatprep.subr.bf16.mxu0 0
      %148 = vmatpush2.bf16.msra.mxu0 0
      %149 = vmatprep.subr.bf16.mxu0 0
      %150 = vmatpush2.bf16.msra.mxu0 0
      %151 = vmatprep.subr.bf16.mxu0 0
      %152 = vmatpush2.bf16.msra.mxu0 0
      %153 = vmatprep.subr.bf16.mxu0 0
      %154 = vmatpush2.bf16.msra.mxu0 0
      %155 = vmatprep.subr.bf16.mxu0 0
      %156 = vmatpush2.bf16.msra.mxu0 0
      %157 = vmatprep.subr.bf16.mxu0 0
      %158 = vmatpush2.bf16.msra.mxu0 0
      %159 = vmatprep.mubr.bf16.mxu0 0
      %160 = vmatmul.mubr.bf16.gmra.mxu0 %v97
      %v161 = vpop.f32.mrf.mxu0
      %v162 = vadd.f32 0.0, %v161
      %v163 = vpop.f32.mrf.mxu0
      %v164 = vpop.f32.mrf.mxu0
      %v165 = vadd.f32 0.0, %v164
      %v166 = vpop.f32.mrf.mxu0
      %167 = vmatprep.mubr.bf16.mxu0 0
      %168 = vmatmul.mubr.bf16.gmra.mxu0 %v100
      %v169 = vpop.f32.mrf.mxu0
      %v170 = vadd.f32 0.0, %v169
      %v171 = vpop.f32.mrf.mxu0
      %v172 = vpop.f32.mrf.mxu0
      %v173 = vadd.f32 0.0, %v172
      %v174 = vpop.f32.mrf.mxu0
      %175 = vmatprep.mubr.bf16.mxu0 0
      %176 = vmatmul.mubr.bf16.gmra.mxu0 %v103
      %v177 = vpop.f32.mrf.mxu0
      %v178 = vadd.f32 0.0, %v177
      %v179 = vpop.f32.mrf.mxu0
      %v180 = vpop.f32.mrf.mxu0
      %v181 = vadd.f32 0.0, %v180
      %v182 = vpop.f32.mrf.mxu0
      %183 = vmatprep.mubr.bf16.mxu0 0
      %184 = vmatmul.mubr.bf16.gmra.mxu0 %v106
      %v185 = vpop.f32.mrf.mxu0
      %v186 = vadd.f32 0.0, %v185
      %v187 = vpop.f32.mrf.mxu0
      %v188 = vpop.f32.mrf.mxu0
      %v189 = vadd.f32 0.0, %v188
      %v190 = vpop.f32.mrf.mxu0
      %191 = vmatprep.mubr.bf16.mxu0 0
      %192 = vmatmul.mubr.bf16.gmra.mxu0 %v109
      %v193 = vpop.f32.mrf.mxu0
      %v194 = vadd.f32 0.0, %v193
      %v195 = vpop.f32.mrf.mxu0
      %v196 = vpop.f32.mrf.mxu0
      %v197 = vadd.f32 0.0, %v196
      %v198 = vpop.f32.mrf.mxu0
      %199 = vmatprep.mubr.bf16.mxu0 0
      %200 = vmatmul.mubr.bf16.gmra.mxu0 %v112
      %v201 = vpop.f32.mrf.mxu0
      %v202 = vadd.f32 0.0, %v201
      %v203 = vpop.f32.mrf.mxu0
      %v204 = vpop.f32.mrf.mxu0
      %v205 = vadd.f32 0.0, %v204
      %v206 = vpop.f32.mrf.mxu0
      %207 = vmatprep.mubr.bf16.mxu0 0
      %208 = vmatmul.mubr.bf16.gmra.mxu0 %v115
      %v209 = vpop.f32.mrf.mxu0
      %v210 = vadd.f32 0.0, %v209
      %v211 = vpop.f32.mrf.mxu0
      %v212 = vpop.f32.mrf.mxu0
      %v213 = vadd.f32 0.0, %v212
      %v214 = vpop.f32.mrf.mxu0
      %215 = vmatprep.mubr.bf16.mxu0 0
      %216 = vmatmul.mubr.bf16.gmra.mxu0 %v118
      %v217 = vpop.f32.mrf.mxu0
      %v218 = vadd.f32 0.0, %v217
      %v219 = vpop.f32.mrf.mxu0
      %v220 = vpop.f32.mrf.mxu0
      %v221 = vadd.f32 0.0, %v220
      %v222 = vpop.f32.mrf.mxu0
      %223 = vdwg.mxu0
      %v225 = vsel %vm95, %v58, 0
      %v228 = vsel %vm95, %v59, 0
      %v231 = vsel %vm95, %v60, 0
      %v234 = vsel %vm95, %v61, 0
      %v237 = vsel %vm95, %v62, 0
      %v240 = vsel %vm95, %v63, 0
      %v243 = vsel %vm95, %v64, 0
      %v246 = vsel %vm95, %v65, 0
      %v249 = vand.u32 %v66, %v123
      %251 = vmatprep.subr.bf16.mxu0 0
      %252 = vmatpush1.bf16.msra.mxu0 0
      %253 = vmatprep.subr.bf16.mxu0 0
      %254 = vmatpush1.bf16.msra.mxu0 0
      %255 = vmatprep.subr.bf16.mxu0 0
      %256 = vmatpush1.bf16.msra.mxu0 0
      %257 = vmatprep.subr.bf16.mxu0 0
      %258 = vmatpush1.bf16.msra.mxu0 0
      %259 = vmatprep.subr.bf16.mxu0 0
      %260 = vmatpush1.bf16.msra.mxu0 0
      %261 = vmatprep.subr.bf16.mxu0 0
      %262 = vmatpush1.bf16.msra.mxu0 0
      %263 = vmatprep.subr.bf16.mxu0 0
      %264 = vmatpush1.bf16.msra.mxu0 0
      %265 = vmatprep.subr.bf16.mxu0 0
      %266 = vmatpush1.bf16.msra.mxu0 %v249
      %267 = vmatprep.subr.bf16.mxu0 0
      %268 = vmatpush2.bf16.msra.mxu0 0
      %269 = vmatprep.subr.bf16.mxu0 0
      %270 = vmatpush2.bf16.msra.mxu0 0
      %271 = vmatprep.subr.bf16.mxu0 0
      %272 = vmatpush2.bf16.msra.mxu0 0
      %273 = vmatprep.subr.bf16.mxu0 0
      %274 = vmatpush2.bf16.msra.mxu0 0
      %275 = vmatprep.subr.bf16.mxu0 0
      %276 = vmatpush2.bf16.msra.mxu0 0
      %277 = vmatprep.subr.bf16.mxu0 0
      %278 = vmatpush2.bf16.msra.mxu0 0
      %279 = vmatprep.subr.bf16.mxu0 0
      %280 = vmatpush2.bf16.msra.mxu0 0
      %281 = vmatprep.subr.bf16.mxu0 0
      %282 = vmatpush2.bf16.msra.mxu0 0
      %283 = vmatprep.mubr.bf16.mxu0 0
      %284 = vmatmul.mubr.bf16.gmra.mxu0 %v225
      %v285 = vpop.f32.mrf.mxu0
      %v286 = vadd.f32 %v162, %v285
      %v287 = vpop.f32.mrf.mxu0
      %v288 = vpop.f32.mrf.mxu0
      %v289 = vadd.f32 %v165, %v288
      %v290 = vpop.f32.mrf.mxu0
      %291 = vmatprep.mubr.bf16.mxu0 0
      %292 = vmatmul.mubr.bf16.gmra.mxu0 %v228
      %v293 = vpop.f32.mrf.mxu0
      %v294 = vadd.f32 %v170, %v293
      %v295 = vpop.f32.mrf.mxu0
      %v296 = vpop.f32.mrf.mxu0
      %v297 = vadd.f32 %v173, %v296
      %v298 = vpop.f32.mrf.mxu0
      %299 = vmatprep.mubr.bf16.mxu0 0
      %300 = vmatmul.mubr.bf16.gmra.mxu0 %v231
      %v301 = vpop.f32.mrf.mxu0
      %v302 = vadd.f32 %v178, %v301
      %v303 = vpop.f32.mrf.mxu0
      %v304 = vpop.f32.mrf.mxu0
      %v305 = vadd.f32 %v181, %v304
      %v306 = vpop.f32.mrf.mxu0
      %307 = vmatprep.mubr.bf16.mxu0 0
      %308 = vmatmul.mubr.bf16.gmra.mxu0 %v234
      %v309 = vpop.f32.mrf.mxu0
      %v310 = vadd.f32 %v186, %v309
      %v311 = vpop.f32.mrf.mxu0
      %v312 = vpop.f32.mrf.mxu0
      %v313 = vadd.f32 %v189, %v312
      %v314 = vpop.f32.mrf.mxu0
      %315 = vmatprep.mubr.bf16.mxu0 0
      %316 = vmatmul.mubr.bf16.gmra.mxu0 %v237
      %v317 = vpop.f32.mrf.mxu0
      %v318 = vadd.f32 %v194, %v317
      %v319 = vpop.f32.mrf.mxu0
      %v320 = vpop.f32.mrf.mxu0
      %v321 = vadd.f32 %v197, %v320
      %v322 = vpop.f32.mrf.mxu0
      %323 = vmatprep.mubr.bf16.mxu0 0
      %324 = vmatmul.mubr.bf16.gmra.mxu0 %v240
      %v325 = vpop.f32.mrf.mxu0
      %v326 = vadd.f32 %v202, %v325
      %v327 = vpop.f32.mrf.mxu0
      %v328 = vpop.f32.mrf.mxu0
      %v329 = vadd.f32 %v205, %v328
      %v330 = vpop.f32.mrf.mxu0
      %331 = vmatprep.mubr.bf16.mxu0 0
      %332 = vmatmul.mubr.bf16.gmra.mxu0 %v243
      %v333 = vpop.f32.mrf.mxu0
      %v334 = vadd.f32 %v210, %v333
      %v335 = vpop.f32.mrf.mxu0
      %v336 = vpop.f32.mrf.mxu0
      %v337 = vadd.f32 %v213, %v336
      %v338 = vpop.f32.mrf.mxu0
      %339 = vmatprep.mubr.bf16.mxu0 0
      %340 = vmatmul.mubr.bf16.gmra.mxu0 %v246
      %v341 = vpop.f32.mrf.mxu0
      %v342 = vadd.f32 %v218, %v341
      %v343 = vpop.f32.mrf.mxu0
      %v344 = vpop.f32.mrf.mxu0
      %v345 = vadd.f32 %v221, %v344
      %v346 = vpop.f32.mrf.mxu0
      %347 = vdwg.mxu0
      %s348 = sadd.s32 %s23, 2
      %s349 = scalar_lea.vmem %s0, %s348
      %v350 = vld [vmem:[%s349] sm:$0xff]
      %v351 = vld [vmem:[%s349 + $0x8] sm:$0xff]
      %v352 = vld [vmem:[%s349 + $0x10] sm:$0xff]
      %v353 = vld [vmem:[%s349 + $0x18] sm:$0xff]
      %v354 = vld [vmem:[%s349 + $0x20] sm:$0xff]
      %v355 = vld [vmem:[%s349 + $0x28] sm:$0xff]
      %v356 = vld [vmem:[%s349 + $0x30] sm:$0xff]
      %v357 = vld [vmem:[%s349 + $0x38] sm:$0xff]
      %v358 = vld [vmem:[%s349 + $0x40] sm:$0xff]
      %v359 = vld [vmem:[%s349 + $0x48] sm:$0xff]
      %v360 = vld [vmem:[%s349 + $0x50] sm:$0xff]
      %v361 = vld [vmem:[%s349 + $0x58] sm:$0xff]
      %v362 = vld [vmem:[%s349 + $0x60] sm:$0xff]
      %v363 = vld [vmem:[%s349 + $0x68] sm:$0xff]
      %v364 = vld [vmem:[%s349 + $0x70] sm:$0xff]
      %v365 = vld [vmem:[%s349 + $0x78] sm:$0xff]
      %v366 = vpack.c.bf16 %v351, %v350
      %v367 = vpack.c.bf16 %v353, %v352
      %v368 = vpack.c.bf16 %v355, %v354
      %v369 = vpack.c.bf16 %v357, %v356
      %v370 = vpack.c.bf16 %v359, %v358
      %v371 = vpack.c.bf16 %v361, %v360
      %v372 = vpack.c.bf16 %v363, %v362
      %v373 = vpack.c.bf16 %v365, %v364
      %s374 = scalar_lea.vmem %s1, 4
      %v375 = vld [vmem:[%s374] sm:$0x3]
      %v377 = vsel %vm95, %v366, 0
      %v380 = vsel %vm95, %v367, 0
      %v383 = vsel %vm95, %v368, 0
      %v386 = vsel %vm95, %v369, 0
      %v389 = vsel %vm95, %v370, 0
      %v392 = vsel %vm95, %v371, 0
      %v395 = vsel %vm95, %v372, 0
      %v398 = vsel %vm95, %v373, 0
      %v401 = vand.u32 %v375, %v123
      %403 = vmatprep.subr.bf16.mxu0 0
      %404 = vmatpush1.bf16.msra.mxu0 0
      %405 = vmatprep.subr.bf16.mxu0 0
      %406 = vmatpush1.bf16.msra.mxu0 0
      %407 = vmatprep.subr.bf16.mxu0 0
      %408 = vmatpush1.bf16.msra.mxu0 0
      %409 = vmatprep.subr.bf16.mxu0 0
      %410 = vmatpush1.bf16.msra.mxu0 0
      %411 = vmatprep.subr.bf16.mxu0 0
      %412 = vmatpush1.bf16.msra.mxu0 0
      %413 = vmatprep.subr.bf16.mxu0 0
      %414 = vmatpush1.bf16.msra.mxu0 0
      %415 = vmatprep.subr.bf16.mxu0 0
      %416 = vmatpush1.bf16.msra.mxu0 0
      %417 = vmatprep.subr.bf16.mxu0 0
      %418 = vmatpush1.bf16.msra.mxu0 %v401
      %419 = vmatprep.subr.bf16.mxu0 0
      %420 = vmatpush2.bf16.msra.mxu0 0
      %421 = vmatprep.subr.bf16.mxu0 0
      %422 = vmatpush2.bf16.msra.mxu0 0
      %423 = vmatprep.subr.bf16.mxu0 0
      %424 = vmatpush2.bf16.msra.mxu0 0
      %425 = vmatprep.subr.bf16.mxu0 0
      %426 = vmatpush2.bf16.msra.mxu0 0
      %427 = vmatprep.subr.bf16.mxu0 0
      %428 = vmatpush2.bf16.msra.mxu0 0
      %429 = vmatprep.subr.bf16.mxu0 0
      %430 = vmatpush2.bf16.msra.mxu0 0
      %431 = vmatprep.subr.bf16.mxu0 0
      %432 = vmatpush2.bf16.msra.mxu0 0
      %433 = vmatprep.subr.bf16.mxu0 0
      %434 = vmatpush2.bf16.msra.mxu0 0
      %435 = vmatprep.mubr.bf16.mxu0 0
      %436 = vmatmul.mubr.bf16.gmra.mxu0 %v377
      %v437 = vpop.f32.mrf.mxu0
      %v438 = vadd.f32 0.0, %v437
      %v439 = vpop.f32.mrf.mxu0
      %v440 = vpop.f32.mrf.mxu0
      %v441 = vadd.f32 0.0, %v440
      %v442 = vpop.f32.mrf.mxu0
      %443 = vmatprep.mubr.bf16.mxu0 0
      %444 = vmatmul.mubr.bf16.gmra.mxu0 %v380
      %v445 = vpop.f32.mrf.mxu0
      %v446 = vadd.f32 0.0, %v445
      %v447 = vpop.f32.mrf.mxu0
      %v448 = vpop.f32.mrf.mxu0
      %v449 = vadd.f32 0.0, %v448
      %v450 = vpop.f32.mrf.mxu0
      %451 = vmatprep.mubr.bf16.mxu0 0
      %452 = vmatmul.mubr.bf16.gmra.mxu0 %v383
      %v453 = vpop.f32.mrf.mxu0
      %v454 = vadd.f32 0.0, %v453
      %v455 = vpop.f32.mrf.mxu0
      %v456 = vpop.f32.mrf.mxu0
      %v457 = vadd.f32 0.0, %v456
      %v458 = vpop.f32.mrf.mxu0
      %459 = vmatprep.mubr.bf16.mxu0 0
      %460 = vmatmul.mubr.bf16.gmra.mxu0 %v386
      %v461 = vpop.f32.mrf.mxu0
      %v462 = vadd.f32 0.0, %v461
      %v463 = vpop.f32.mrf.mxu0
      %v464 = vpop.f32.mrf.mxu0
      %v465 = vadd.f32 0.0, %v464
      %v466 = vpop.f32.mrf.mxu0
      %467 = vmatprep.mubr.bf16.mxu0 0
      %468 = vmatmul.mubr.bf16.gmra.mxu0 %v389
      %v469 = vpop.f32.mrf.mxu0
      %v470 = vadd.f32 0.0, %v469
      %v471 = vpop.f32.mrf.mxu0
      %v472 = vpop.f32.mrf.mxu0
      %v473 = vadd.f32 0.0, %v472
      %v474 = vpop.f32.mrf.mxu0
      %475 = vmatprep.mubr.bf16.mxu0 0
      %476 = vmatmul.mubr.bf16.gmra.mxu0 %v392
      %v477 = vpop.f32.mrf.mxu0
      %v478 = vadd.f32 0.0, %v477
      %v479 = vpop.f32.mrf.mxu0
      %v480 = vpop.f32.mrf.mxu0
      %v481 = vadd.f32 0.0, %v480
      %v482 = vpop.f32.mrf.mxu0
      %483 = vmatprep.mubr.bf16.mxu0 0
      %484 = vmatmul.mubr.bf16.gmra.mxu0 %v395
      %v485 = vpop.f32.mrf.mxu0
      %v486 = vadd.f32 0.0, %v485
      %v487 = vpop.f32.mrf.mxu0
      %v488 = vpop.f32.mrf.mxu0
      %v489 = vadd.f32 0.0, %v488
      %v490 = vpop.f32.mrf.mxu0
      %491 = vmatprep.mubr.bf16.mxu0 0
      %492 = vmatmul.mubr.bf16.gmra.mxu0 %v398
      %v493 = vpop.f32.mrf.mxu0
      %v494 = vadd.f32 0.0, %v493
      %v495 = vpop.f32.mrf.mxu0
      %v496 = vpop.f32.mrf.mxu0
      %v497 = vadd.f32 0.0, %v496
      %v498 = vpop.f32.mrf.mxu0
      %499 = vdwg.mxu0
      %v500 = vadd.f32 %v286, %v438
      %v501 = vadd.f32 %v289, %v441
      %v502 = vadd.f32 %v294, %v446
      %v503 = vadd.f32 %v297, %v449
      %v504 = vadd.f32 %v302, %v454
      %v505 = vadd.f32 %v305, %v457
      %v506 = vadd.f32 %v310, %v462
      %v507 = vadd.f32 %v313, %v465
      %v508 = vadd.f32 %v318, %v470
      %v509 = vadd.f32 %v321, %v473
      %v510 = vadd.f32 %v326, %v478
      %v511 = vadd.f32 %v329, %v481
      %v512 = vadd.f32 %v334, %v486
      %v513 = vadd.f32 %v337, %v489
      %v514 = vadd.f32 %v342, %v494
      %v515 = vadd.f32 %v345, %v497
      %s516 = sadd.s32 %s23, 18
      %s517 = scalar_lea.vmem %s0, %s516
      %v518 = vld [vmem:[%s517] sm:$0xff]
      %v519 = vld [vmem:[%s517 + $0x8] sm:$0xff]
      %v520 = vld [vmem:[%s517 + $0x10] sm:$0xff]
      %v521 = vld [vmem:[%s517 + $0x18] sm:$0xff]
      %v522 = vld [vmem:[%s517 + $0x20] sm:$0xff]
      %v523 = vld [vmem:[%s517 + $0x28] sm:$0xff]
      %v524 = vld [vmem:[%s517 + $0x30] sm:$0xff]
      %v525 = vld [vmem:[%s517 + $0x38] sm:$0xff]
      %v526 = vld [vmem:[%s517 + $0x40] sm:$0xff]
      %v527 = vld [vmem:[%s517 + $0x48] sm:$0xff]
      %v528 = vld [vmem:[%s517 + $0x50] sm:$0xff]
      %v529 = vld [vmem:[%s517 + $0x58] sm:$0xff]
      %v530 = vld [vmem:[%s517 + $0x60] sm:$0xff]
      %v531 = vld [vmem:[%s517 + $0x68] sm:$0xff]
      %v532 = vld [vmem:[%s517 + $0x70] sm:$0xff]
      %v533 = vld [vmem:[%s517 + $0x78] sm:$0xff]
      %v534 = vpack.c.bf16 %v519, %v518
      %v535 = vpack.c.bf16 %v521, %v520
      %v536 = vpack.c.bf16 %v523, %v522
      %v537 = vpack.c.bf16 %v525, %v524
      %v538 = vpack.c.bf16 %v527, %v526
      %v539 = vpack.c.bf16 %v529, %v528
      %v540 = vpack.c.bf16 %v531, %v530
      %v541 = vpack.c.bf16 %v533, %v532
      %s542 = scalar_lea.vmem %s1, 6
      %v543 = vld [vmem:[%s542] sm:$0x3]
      %v545 = vsel %vm95, %v534, 0
      %v548 = vsel %vm95, %v535, 0
      %v551 = vsel %vm95, %v536, 0
      %v554 = vsel %vm95, %v537, 0
      %v557 = vsel %vm95, %v538, 0
      %v560 = vsel %vm95, %v539, 0
      %v563 = vsel %vm95, %v540, 0
      %v566 = vsel %vm95, %v541, 0
      %v569 = vand.u32 %v543, %v123
      %571 = vmatprep.subr.bf16.mxu0 0
      %572 = vmatpush1.bf16.msra.mxu0 0
      %573 = vmatprep.subr.bf16.mxu0 0
      %574 = vmatpush1.bf16.msra.mxu0 0
      %575 = vmatprep.subr.bf16.mxu0 0
      %576 = vmatpush1.bf16.msra.mxu0 0
      %577 = vmatprep.subr.bf16.mxu0 0
      %578 = vmatpush1.bf16.msra.mxu0 0
      %579 = vmatprep.subr.bf16.mxu0 0
      %580 = vmatpush1.bf16.msra.mxu0 0
      %581 = vmatprep.subr.bf16.mxu0 0
      %582 = vmatpush1.bf16.msra.mxu0 0
      %583 = vmatprep.subr.bf16.mxu0 0
      %584 = vmatpush1.bf16.msra.mxu0 0
      %585 = vmatprep.subr.bf16.mxu0 0
      %586 = vmatpush1.bf16.msra.mxu0 %v569
      %587 = vmatprep.subr.bf16.mxu0 0
      %588 = vmatpush2.bf16.msra.mxu0 0
      %589 = vmatprep.subr.bf16.mxu0 0
      %590 = vmatpush2.bf16.msra.mxu0 0
      %591 = vmatprep.subr.bf16.mxu0 0
      %592 = vmatpush2.bf16.msra.mxu0 0
      %593 = vmatprep.subr.bf16.mxu0 0
      %594 = vmatpush2.bf16.msra.mxu0 0
      %595 = vmatprep.subr.bf16.mxu0 0
      %596 = vmatpush2.bf16.msra.mxu0 0
      %597 = vmatprep.subr.bf16.mxu0 0
      %598 = vmatpush2.bf16.msra.mxu0 0
      %599 = vmatprep.subr.bf16.mxu0 0
      %600 = vmatpush2.bf16.msra.mxu0 0
      %601 = vmatprep.subr.bf16.mxu0 0
      %602 = vmatpush2.bf16.msra.mxu0 0
      %603 = vmatprep.mubr.bf16.mxu0 0
      %604 = vmatmul.mubr.bf16.gmra.mxu0 %v545
      %v605 = vpop.f32.mrf.mxu0
      %v606 = vadd.f32 0.0, %v605
      %v607 = vpop.f32.mrf.mxu0
      %v608 = vpop.f32.mrf.mxu0
      %v609 = vadd.f32 0.0, %v608
      %v610 = vpop.f32.mrf.mxu0
      %611 = vmatprep.mubr.bf16.mxu0 0
      %612 = vmatmul.mubr.bf16.gmra.mxu0 %v548
      %v613 = vpop.f32.mrf.mxu0
      %v614 = vadd.f32 0.0, %v613
      %v615 = vpop.f32.mrf.mxu0
      %v616 = vpop.f32.mrf.mxu0
      %v617 = vadd.f32 0.0, %v616
      %v618 = vpop.f32.mrf.mxu0
      %619 = vmatprep.mubr.bf16.mxu0 0
      %620 = vmatmul.mubr.bf16.gmra.mxu0 %v551
      %v621 = vpop.f32.mrf.mxu0
      %v622 = vadd.f32 0.0, %v621
      %v623 = vpop.f32.mrf.mxu0
      %v624 = vpop.f32.mrf.mxu0
      %v625 = vadd.f32 0.0, %v624
      %v626 = vpop.f32.mrf.mxu0
      %627 = vmatprep.mubr.bf16.mxu0 0
      %628 = vmatmul.mubr.bf16.gmra.mxu0 %v554
      %v629 = vpop.f32.mrf.mxu0
      %v630 = vadd.f32 0.0, %v629
      %v631 = vpop.f32.mrf.mxu0
      %v632 = vpop.f32.mrf.mxu0
      %v633 = vadd.f32 0.0, %v632
      %v634 = vpop.f32.mrf.mxu0
      %635 = vmatprep.mubr.bf16.mxu0 0
      %636 = vmatmul.mubr.bf16.gmra.mxu0 %v557
      %v637 = vpop.f32.mrf.mxu0
      %v638 = vadd.f32 0.0, %v637
      %v639 = vpop.f32.mrf.mxu0
      %v640 = vpop.f32.mrf.mxu0
      %v641 = vadd.f32 0.0, %v640
      %v642 = vpop.f32.mrf.mxu0
      %643 = vmatprep.mubr.bf16.mxu0 0
      %644 = vmatmul.mubr.bf16.gmra.mxu0 %v560
      %v645 = vpop.f32.mrf.mxu0
      %v646 = vadd.f32 0.0, %v645
      %v647 = vpop.f32.mrf.mxu0
      %v648 = vpop.f32.mrf.mxu0
      %v649 = vadd.f32 0.0, %v648
      %v650 = vpop.f32.mrf.mxu0
      %651 = vmatprep.mubr.bf16.mxu0 0
      %652 = vmatmul.mubr.bf16.gmra.mxu0 %v563
      %v653 = vpop.f32.mrf.mxu0
      %v654 = vadd.f32 0.0, %v653
      %v655 = vpop.f32.mrf.mxu0
      %v656 = vpop.f32.mrf.mxu0
      %v657 = vadd.f32 0.0, %v656
      %v658 = vpop.f32.mrf.mxu0
      %659 = vmatprep.mubr.bf16.mxu0 0
      %660 = vmatmul.mubr.bf16.gmra.mxu0 %v566
      %v661 = vpop.f32.mrf.mxu0
      %v662 = vadd.f32 0.0, %v661
      %v663 = vpop.f32.mrf.mxu0
      %v664 = vpop.f32.mrf.mxu0
      %v665 = vadd.f32 0.0, %v664
      %v666 = vpop.f32.mrf.mxu0
      %667 = vdwg.mxu0
      %v668 = vadd.f32 %v500, %v606
      %v669 = vadd.f32 %v501, %v609
      %v670 = vadd.f32 %v502, %v614
      %v671 = vadd.f32 %v503, %v617
      %v672 = vadd.f32 %v504, %v622
      %v673 = vadd.f32 %v505, %v625
      %v674 = vadd.f32 %v506, %v630
      %v675 = vadd.f32 %v507, %v633
      %v676 = vadd.f32 %v508, %v638
      %v677 = vadd.f32 %v509, %v641
      %v678 = vadd.f32 %v510, %v646
      %v679 = vadd.f32 %v511, %v649
      %v680 = vadd.f32 %v512, %v654
      %v681 = vadd.f32 %v513, %v657
      %v682 = vadd.f32 %v514, %v662
      %v683 = vadd.f32 %v515, %v665
      %s684 = sadd.s32 %s23, 19
      %s685 = scalar_lea.vmem %s0, %s684
      %v686 = vld [vmem:[%s685] sm:$0xff]
      %v687 = vld [vmem:[%s685 + $0x8] sm:$0xff]
      %v688 = vld [vmem:[%s685 + $0x10] sm:$0xff]
      %v689 = vld [vmem:[%s685 + $0x18] sm:$0xff]
      %v690 = vld [vmem:[%s685 + $0x20] sm:$0xff]
      %v691 = vld [vmem:[%s685 + $0x28] sm:$0xff]
      %v692 = vld [vmem:[%s685 + $0x30] sm:$0xff]
      %v693 = vld [vmem:[%s685 + $0x38] sm:$0xff]
      %v694 = vld [vmem:[%s685 + $0x40] sm:$0xff]
      %v695 = vld [vmem:[%s685 + $0x48] sm:$0xff]
      %v696 = vld [vmem:[%s685 + $0x50] sm:$0xff]
      %v697 = vld [vmem:[%s685 + $0x58] sm:$0xff]
      %v698 = vld [vmem:[%s685 + $0x60] sm:$0xff]
      %v699 = vld [vmem:[%s685 + $0x68] sm:$0xff]
      %v700 = vld [vmem:[%s685 + $0x70] sm:$0xff]
      %v701 = vld [vmem:[%s685 + $0x78] sm:$0xff]
      %v702 = vpack.c.bf16 %v687, %v686
      %v703 = vpack.c.bf16 %v689, %v688
      %v704 = vpack.c.bf16 %v691, %v690
      %v705 = vpack.c.bf16 %v693, %v692
      %v706 = vpack.c.bf16 %v695, %v694
      %v707 = vpack.c.bf16 %v697, %v696
      %v708 = vpack.c.bf16 %v699, %v698
      %v709 = vpack.c.bf16 %v701, %v700
      %s710 = scalar_lea.vmem %s1, 8
      %v711 = vld [vmem:[%s710] sm:$0x3]
      %v713 = vsel %vm95, %v702, 0
      %v716 = vsel %vm95, %v703, 0
      %v719 = vsel %vm95, %v704, 0
      %v722 = vsel %vm95, %v705, 0
      %v725 = vsel %vm95, %v706, 0
      %v728 = vsel %vm95, %v707, 0
      %v731 = vsel %vm95, %v708, 0
      %v734 = vsel %vm95, %v709, 0
      %v737 = vand.u32 %v711, %v123
      %739 = vmatprep.subr.bf16.mxu0 0
      %740 = vmatpush1.bf16.msra.mxu0 0
      %741 = vmatprep.subr.bf16.mxu0 0
      %742 = vmatpush1.bf16.msra.mxu0 0
      %743 = vmatprep.subr.bf16.mxu0 0
      %744 = vmatpush1.bf16.msra.mxu0 0
      %745 = vmatprep.subr.bf16.mxu0 0
      %746 = vmatpush1.bf16.msra.mxu0 0
      %747 = vmatprep.subr.bf16.mxu0 0
      %748 = vmatpush1.bf16.msra.mxu0 0
      %749 = vmatprep.subr.bf16.mxu0 0
      %750 = vmatpush1.bf16.msra.mxu0 0
      %751 = vmatprep.subr.bf16.mxu0 0
      %752 = vmatpush1.bf16.msra.mxu0 0
      %753 = vmatprep.subr.bf16.mxu0 0
      %754 = vmatpush1.bf16.msra.mxu0 %v737
      %755 = vmatprep.subr.bf16.mxu0 0
      %756 = vmatpush2.bf16.msra.mxu0 0
      %757 = vmatprep.subr.bf16.mxu0 0
      %758 = vmatpush2.bf16.msra.mxu0 0
      %759 = vmatprep.subr.bf16.mxu0 0
      %760 = vmatpush2.bf16.msra.mxu0 0
      %761 = vmatprep.subr.bf16.mxu0 0
      %762 = vmatpush2.bf16.msra.mxu0 0
      %763 = vmatprep.subr.bf16.mxu0 0
      %764 = vmatpush2.bf16.msra.mxu0 0
      %765 = vmatprep.subr.bf16.mxu0 0
      %766 = vmatpush2.bf16.msra.mxu0 0
      %767 = vmatprep.subr.bf16.mxu0 0
      %768 = vmatpush2.bf16.msra.mxu0 0
      %769 = vmatprep.subr.bf16.mxu0 0
      %770 = vmatpush2.bf16.msra.mxu0 0
      %771 = vmatprep.mubr.bf16.mxu0 0
      %772 = vmatmul.mubr.bf16.gmra.mxu0 %v713
      %v773 = vpop.f32.mrf.mxu0
      %v774 = vadd.f32 0.0, %v773
      %v775 = vpop.f32.mrf.mxu0
      %v776 = vpop.f32.mrf.mxu0
      %v777 = vadd.f32 0.0, %v776
      %v778 = vpop.f32.mrf.mxu0
      %779 = vmatprep.mubr.bf16.mxu0 0
      %780 = vmatmul.mubr.bf16.gmra.mxu0 %v716
      %v781 = vpop.f32.mrf.mxu0
      %v782 = vadd.f32 0.0, %v781
      %v783 = vpop.f32.mrf.mxu0
      %v784 = vpop.f32.mrf.mxu0
      %v785 = vadd.f32 0.0, %v784
      %v786 = vpop.f32.mrf.mxu0
      %787 = vmatprep.mubr.bf16.mxu0 0
      %788 = vmatmul.mubr.bf16.gmra.mxu0 %v719
      %v789 = vpop.f32.mrf.mxu0
      %v790 = vadd.f32 0.0, %v789
      %v791 = vpop.f32.mrf.mxu0
      %v792 = vpop.f32.mrf.mxu0
      %v793 = vadd.f32 0.0, %v792
      %v794 = vpop.f32.mrf.mxu0
      %795 = vmatprep.mubr.bf16.mxu0 0
      %796 = vmatmul.mubr.bf16.gmra.mxu0 %v722
      %v797 = vpop.f32.mrf.mxu0
      %v798 = vadd.f32 0.0, %v797
      %v799 = vpop.f32.mrf.mxu0
      %v800 = vpop.f32.mrf.mxu0
      %v801 = vadd.f32 0.0, %v800
      %v802 = vpop.f32.mrf.mxu0
      %803 = vmatprep.mubr.bf16.mxu0 0
      %804 = vmatmul.mubr.bf16.gmra.mxu0 %v725
      %v805 = vpop.f32.mrf.mxu0
      %v806 = vadd.f32 0.0, %v805
      %v807 = vpop.f32.mrf.mxu0
      %v808 = vpop.f32.mrf.mxu0
      %v809 = vadd.f32 0.0, %v808
      %v810 = vpop.f32.mrf.mxu0
      %811 = vmatprep.mubr.bf16.mxu0 0
      %812 = vmatmul.mubr.bf16.gmra.mxu0 %v728
      %v813 = vpop.f32.mrf.mxu0
      %v814 = vadd.f32 0.0, %v813
      %v815 = vpop.f32.mrf.mxu0
      %v816 = vpop.f32.mrf.mxu0
      %v817 = vadd.f32 0.0, %v816
      %v818 = vpop.f32.mrf.mxu0
      %819 = vmatprep.mubr.bf16.mxu0 0
      %820 = vmatmul.mubr.bf16.gmra.mxu0 %v731
      %v821 = vpop.f32.mrf.mxu0
      %v822 = vadd.f32 0.0, %v821
      %v823 = vpop.f32.mrf.mxu0
      %v824 = vpop.f32.mrf.mxu0
      %v825 = vadd.f32 0.0, %v824
      %v826 = vpop.f32.mrf.mxu0
      %827 = vmatprep.mubr.bf16.mxu0 0
      %828 = vmatmul.mubr.bf16.gmra.mxu0 %v734
      %v829 = vpop.f32.mrf.mxu0
      %v830 = vadd.f32 0.0, %v829
      %v831 = vpop.f32.mrf.mxu0
      %v832 = vpop.f32.mrf.mxu0
      %v833 = vadd.f32 0.0, %v832
      %v834 = vpop.f32.mrf.mxu0
      %835 = vdwg.mxu0
      %v836 = vadd.f32 %v668, %v774
      %v837 = vadd.f32 %v669, %v777
      %v838 = vadd.f32 %v670, %v782
      %v839 = vadd.f32 %v671, %v785
      %v840 = vadd.f32 %v672, %v790
      %v841 = vadd.f32 %v673, %v793
      %v842 = vadd.f32 %v674, %v798
      %v843 = vadd.f32 %v675, %v801
      %v844 = vadd.f32 %v676, %v806
      %v845 = vadd.f32 %v677, %v809
      %v846 = vadd.f32 %v678, %v814
      %v847 = vadd.f32 %v679, %v817
      %v848 = vadd.f32 %v680, %v822
      %v849 = vadd.f32 %v681, %v825
      %v850 = vadd.f32 %v682, %v830
      %v851 = vadd.f32 %v683, %v833
      %s852 = sadd.s32 %s23, 20
      %s853 = scalar_lea.vmem %s0, %s852
      %v854 = vld [vmem:[%s853] sm:$0xff]
      %v855 = vld [vmem:[%s853 + $0x8] sm:$0xff]
      %v856 = vld [vmem:[%s853 + $0x10] sm:$0xff]
      %v857 = vld [vmem:[%s853 + $0x18] sm:$0xff]
      %v858 = vld [vmem:[%s853 + $0x20] sm:$0xff]
      %v859 = vld [vmem:[%s853 + $0x28] sm:$0xff]
      %v860 = vld [vmem:[%s853 + $0x30] sm:$0xff]
      %v861 = vld [vmem:[%s853 + $0x38] sm:$0xff]
      %v862 = vld [vmem:[%s853 + $0x40] sm:$0xff]
      %v863 = vld [vmem:[%s853 + $0x48] sm:$0xff]
      %v864 = vld [vmem:[%s853 + $0x50] sm:$0xff]
      %v865 = vld [vmem:[%s853 + $0x58] sm:$0xff]
      %v866 = vld [vmem:[%s853 + $0x60] sm:$0xff]
      %v867 = vld [vmem:[%s853 + $0x68] sm:$0xff]
      %v868 = vld [vmem:[%s853 + $0x70] sm:$0xff]
      %v869 = vld [vmem:[%s853 + $0x78] sm:$0xff]
      %v870 = vpack.c.bf16 %v855, %v854
      %v871 = vpack.c.bf16 %v857, %v856
      %v872 = vpack.c.bf16 %v859, %v858
      %v873 = vpack.c.bf16 %v861, %v860
      %v874 = vpack.c.bf16 %v863, %v862
      %v875 = vpack.c.bf16 %v865, %v864
      %v876 = vpack.c.bf16 %v867, %v866
      %v877 = vpack.c.bf16 %v869, %v868
      %s878 = scalar_lea.vmem %s1, 10
      %v879 = vld [vmem:[%s878] sm:$0x3]
      %v881 = vsel %vm95, %v870, 0
      %v884 = vsel %vm95, %v871, 0
      %v887 = vsel %vm95, %v872, 0
      %v890 = vsel %vm95, %v873, 0
      %v893 = vsel %vm95, %v874, 0
      %v896 = vsel %vm95, %v875, 0
      %v899 = vsel %vm95, %v876, 0
      %v902 = vsel %vm95, %v877, 0
      %v905 = vand.u32 %v879, %v123
      %907 = vmatprep.subr.bf16.mxu0 0
      %908 = vmatpush1.bf16.msra.mxu0 0
      %909 = vmatprep.subr.bf16.mxu0 0
      %910 = vmatpush1.bf16.msra.mxu0 0
      %911 = vmatprep.subr.bf16.mxu0 0
      %912 = vmatpush1.bf16.msra.mxu0 0
      %913 = vmatprep.subr.bf16.mxu0 0
      %914 = vmatpush1.bf16.msra.mxu0 0
      %915 = vmatprep.subr.bf16.mxu0 0
      %916 = vmatpush1.bf16.msra.mxu0 0
      %917 = vmatprep.subr.bf16.mxu0 0
      %918 = vmatpush1.bf16.msra.mxu0 0
      %919 = vmatprep.subr.bf16.mxu0 0
      %920 = vmatpush1.bf16.msra.mxu0 0
      %921 = vmatprep.subr.bf16.mxu0 0
      %922 = vmatpush1.bf16.msra.mxu0 %v905
      %923 = vmatprep.subr.bf16.mxu0 0
      %924 = vmatpush2.bf16.msra.mxu0 0
      %925 = vmatprep.subr.bf16.mxu0 0
      %926 = vmatpush2.bf16.msra.mxu0 0
      %927 = vmatprep.subr.bf16.mxu0 0
      %928 = vmatpush2.bf16.msra.mxu0 0
      %929 = vmatprep.subr.bf16.mxu0 0
      %930 = vmatpush2.bf16.msra.mxu0 0
      %931 = vmatprep.subr.bf16.mxu0 0
      %932 = vmatpush2.bf16.msra.mxu0 0
      %933 = vmatprep.subr.bf16.mxu0 0
      %934 = vmatpush2.bf16.msra.mxu0 0
      %935 = vmatprep.subr.bf16.mxu0 0
      %936 = vmatpush2.bf16.msra.mxu0 0
      %937 = vmatprep.subr.bf16.mxu0 0
      %938 = vmatpush2.bf16.msra.mxu0 0
      %939 = vmatprep.mubr.bf16.mxu0 0
      %940 = vmatmul.mubr.bf16.gmra.mxu0 %v881
      %v941 = vpop.f32.mrf.mxu0
      %v942 = vadd.f32 0.0, %v941
      %v943 = vpop.f32.mrf.mxu0
      %v944 = vpop.f32.mrf.mxu0
      %v945 = vadd.f32 0.0, %v944
      %v946 = vpop.f32.mrf.mxu0
      %947 = vmatprep.mubr.bf16.mxu0 0
      %948 = vmatmul.mubr.bf16.gmra.mxu0 %v884
      %v949 = vpop.f32.mrf.mxu0
      %v950 = vadd.f32 0.0, %v949
      %v951 = vpop.f32.mrf.mxu0
      %v952 = vpop.f32.mrf.mxu0
      %v953 = vadd.f32 0.0, %v952
      %v954 = vpop.f32.mrf.mxu0
      %955 = vmatprep.mubr.bf16.mxu0 0
      %956 = vmatmul.mubr.bf16.gmra.mxu0 %v887
      %v957 = vpop.f32.mrf.mxu0
      %v958 = vadd.f32 0.0, %v957
      %v959 = vpop.f32.mrf.mxu0
      %v960 = vpop.f32.mrf.mxu0
      %v961 = vadd.f32 0.0, %v960
      %v962 = vpop.f32.mrf.mxu0
      %963 = vmatprep.mubr.bf16.mxu0 0
      %964 = vmatmul.mubr.bf16.gmra.mxu0 %v890
      %v965 = vpop.f32.mrf.mxu0
      %v966 = vadd.f32 0.0, %v965
      %v967 = vpop.f32.mrf.mxu0
      %v968 = vpop.f32.mrf.mxu0
      %v969 = vadd.f32 0.0, %v968
      %v970 = vpop.f32.mrf.mxu0
      %971 = vmatprep.mubr.bf16.mxu0 0
      %972 = vmatmul.mubr.bf16.gmra.mxu0 %v893
      %v973 = vpop.f32.mrf.mxu0
      %v974 = vadd.f32 0.0, %v973
      %v975 = vpop.f32.mrf.mxu0
      %v976 = vpop.f32.mrf.mxu0
      %v977 = vadd.f32 0.0, %v976
      %v978 = vpop.f32.mrf.mxu0
      %979 = vmatprep.mubr.bf16.mxu0 0
      %980 = vmatmul.mubr.bf16.gmra.mxu0 %v896
      %v981 = vpop.f32.mrf.mxu0
      %v982 = vadd.f32 0.0, %v981
      %v983 = vpop.f32.mrf.mxu0
      %v984 = vpop.f32.mrf.mxu0
      %v985 = vadd.f32 0.0, %v984
      %v986 = vpop.f32.mrf.mxu0
      %987 = vmatprep.mubr.bf16.mxu0 0
      %988 = vmatmul.mubr.bf16.gmra.mxu0 %v899
      %v989 = vpop.f32.mrf.mxu0
      %v990 = vadd.f32 0.0, %v989
      %v991 = vpop.f32.mrf.mxu0
      %v992 = vpop.f32.mrf.mxu0
      %v993 = vadd.f32 0.0, %v992
      %v994 = vpop.f32.mrf.mxu0
      %995 = vmatprep.mubr.bf16.mxu0 0
      %996 = vmatmul.mubr.bf16.gmra.mxu0 %v902
      %v997 = vpop.f32.mrf.mxu0
      %v998 = vadd.f32 0.0, %v997
      %v999 = vpop.f32.mrf.mxu0
      %v1000 = vpop.f32.mrf.mxu0
      %v1001 = vadd.f32 0.0, %v1000
      %v1002 = vpop.f32.mrf.mxu0
      %1003 = vdwg.mxu0
      %v1004 = vadd.f32 %v836, %v942
      %v1005 = vadd.f32 %v837, %v945
      %v1006 = vadd.f32 %v838, %v950
      %v1007 = vadd.f32 %v839, %v953
      %v1008 = vadd.f32 %v840, %v958
      %v1009 = vadd.f32 %v841, %v961
      %v1010 = vadd.f32 %v842, %v966
      %v1011 = vadd.f32 %v843, %v969
      %v1012 = vadd.f32 %v844, %v974
      %v1013 = vadd.f32 %v845, %v977
      %v1014 = vadd.f32 %v846, %v982
      %v1015 = vadd.f32 %v847, %v985
      %v1016 = vadd.f32 %v848, %v990
      %v1017 = vadd.f32 %v849, %v993
      %v1018 = vadd.f32 %v850, %v998
      %v1019 = vadd.f32 %v851, %v1001
      %s1020 = sadd.s32 %s23, 36
      %s1021 = scalar_lea.vmem %s0, %s1020
      %v1022 = vld [vmem:[%s1021] sm:$0xff]
      %v1023 = vld [vmem:[%s1021 + $0x8] sm:$0xff]
      %v1024 = vld [vmem:[%s1021 + $0x10] sm:$0xff]
      %v1025 = vld [vmem:[%s1021 + $0x18] sm:$0xff]
      %v1026 = vld [vmem:[%s1021 + $0x20] sm:$0xff]
      %v1027 = vld [vmem:[%s1021 + $0x28] sm:$0xff]
      %v1028 = vld [vmem:[%s1021 + $0x30] sm:$0xff]
      %v1029 = vld [vmem:[%s1021 + $0x38] sm:$0xff]
      %v1030 = vld [vmem:[%s1021 + $0x40] sm:$0xff]
      %v1031 = vld [vmem:[%s1021 + $0x48] sm:$0xff]
      %v1032 = vld [vmem:[%s1021 + $0x50] sm:$0xff]
      %v1033 = vld [vmem:[%s1021 + $0x58] sm:$0xff]
      %v1034 = vld [vmem:[%s1021 + $0x60] sm:$0xff]
      %v1035 = vld [vmem:[%s1021 + $0x68] sm:$0xff]
      %v1036 = vld [vmem:[%s1021 + $0x70] sm:$0xff]
      %v1037 = vld [vmem:[%s1021 + $0x78] sm:$0xff]
      %v1038 = vpack.c.bf16 %v1023, %v1022
      %v1039 = vpack.c.bf16 %v1025, %v1024
      %v1040 = vpack.c.bf16 %v1027, %v1026
      %v1041 = vpack.c.bf16 %v1029, %v1028
      %v1042 = vpack.c.bf16 %v1031, %v1030
      %v1043 = vpack.c.bf16 %v1033, %v1032
      %v1044 = vpack.c.bf16 %v1035, %v1034
      %v1045 = vpack.c.bf16 %v1037, %v1036
      %s1046 = scalar_lea.vmem %s1, 12
      %v1047 = vld [vmem:[%s1046] sm:$0x3]
      %v1049 = vsel %vm95, %v1038, 0
      %v1052 = vsel %vm95, %v1039, 0
      %v1055 = vsel %vm95, %v1040, 0
      %v1058 = vsel %vm95, %v1041, 0
      %v1061 = vsel %vm95, %v1042, 0
      %v1064 = vsel %vm95, %v1043, 0
      %v1067 = vsel %vm95, %v1044, 0
      %v1070 = vsel %vm95, %v1045, 0
      %v1073 = vand.u32 %v1047, %v123
      %1075 = vmatprep.subr.bf16.mxu0 0
      %1076 = vmatpush1.bf16.msra.mxu0 0
      %1077 = vmatprep.subr.bf16.mxu0 0
      %1078 = vmatpush1.bf16.msra.mxu0 0
      %1079 = vmatprep.subr.bf16.mxu0 0
      %1080 = vmatpush1.bf16.msra.mxu0 0
      %1081 = vmatprep.subr.bf16.mxu0 0
      %1082 = vmatpush1.bf16.msra.mxu0 0
      %1083 = vmatprep.subr.bf16.mxu0 0
      %1084 = vmatpush1.bf16.msra.mxu0 0
      %1085 = vmatprep.subr.bf16.mxu0 0
      %1086 = vmatpush1.bf16.msra.mxu0 0
      %1087 = vmatprep.subr.bf16.mxu0 0
      %1088 = vmatpush1.bf16.msra.mxu0 0
      %1089 = vmatprep.subr.bf16.mxu0 0
      %1090 = vmatpush1.bf16.msra.mxu0 %v1073
      %1091 = vmatprep.subr.bf16.mxu0 0
      %1092 = vmatpush2.bf16.msra.mxu0 0
      %1093 = vmatprep.subr.bf16.mxu0 0
      %1094 = vmatpush2.bf16.msra.mxu0 0
      %1095 = vmatprep.subr.bf16.mxu0 0
      %1096 = vmatpush2.bf16.msra.mxu0 0
      %1097 = vmatprep.subr.bf16.mxu0 0
      %1098 = vmatpush2.bf16.msra.mxu0 0
      %1099 = vmatprep.subr.bf16.mxu0 0
      %1100 = vmatpush2.bf16.msra.mxu0 0
      %1101 = vmatprep.subr.bf16.mxu0 0
      %1102 = vmatpush2.bf16.msra.mxu0 0
      %1103 = vmatprep.subr.bf16.mxu0 0
      %1104 = vmatpush2.bf16.msra.mxu0 0
      %1105 = vmatprep.subr.bf16.mxu0 0
      %1106 = vmatpush2.bf16.msra.mxu0 0
      %1107 = vmatprep.mubr.bf16.mxu0 0
      %1108 = vmatmul.mubr.bf16.gmra.mxu0 %v1049
      %v1109 = vpop.f32.mrf.mxu0
      %v1110 = vadd.f32 0.0, %v1109
      %v1111 = vpop.f32.mrf.mxu0
      %v1112 = vpop.f32.mrf.mxu0
      %v1113 = vadd.f32 0.0, %v1112
      %v1114 = vpop.f32.mrf.mxu0
      %1115 = vmatprep.mubr.bf16.mxu0 0
      %1116 = vmatmul.mubr.bf16.gmra.mxu0 %v1052
      %v1117 = vpop.f32.mrf.mxu0
      %v1118 = vadd.f32 0.0, %v1117
      %v1119 = vpop.f32.mrf.mxu0
      %v1120 = vpop.f32.mrf.mxu0
      %v1121 = vadd.f32 0.0, %v1120
      %v1122 = vpop.f32.mrf.mxu0
      %1123 = vmatprep.mubr.bf16.mxu0 0
      %1124 = vmatmul.mubr.bf16.gmra.mxu0 %v1055
      %v1125 = vpop.f32.mrf.mxu0
      %v1126 = vadd.f32 0.0, %v1125
      %v1127 = vpop.f32.mrf.mxu0
      %v1128 = vpop.f32.mrf.mxu0
      %v1129 = vadd.f32 0.0, %v1128
      %v1130 = vpop.f32.mrf.mxu0
      %1131 = vmatprep.mubr.bf16.mxu0 0
      %1132 = vmatmul.mubr.bf16.gmra.mxu0 %v1058
      %v1133 = vpop.f32.mrf.mxu0
      %v1134 = vadd.f32 0.0, %v1133
      %v1135 = vpop.f32.mrf.mxu0
      %v1136 = vpop.f32.mrf.mxu0
      %v1137 = vadd.f32 0.0, %v1136
      %v1138 = vpop.f32.mrf.mxu0
      %1139 = vmatprep.mubr.bf16.mxu0 0
      %1140 = vmatmul.mubr.bf16.gmra.mxu0 %v1061
      %v1141 = vpop.f32.mrf.mxu0
      %v1142 = vadd.f32 0.0, %v1141
      %v1143 = vpop.f32.mrf.mxu0
      %v1144 = vpop.f32.mrf.mxu0
      %v1145 = vadd.f32 0.0, %v1144
      %v1146 = vpop.f32.mrf.mxu0
      %1147 = vmatprep.mubr.bf16.mxu0 0
      %1148 = vmatmul.mubr.bf16.gmra.mxu0 %v1064
      %v1149 = vpop.f32.mrf.mxu0
      %v1150 = vadd.f32 0.0, %v1149
      %v1151 = vpop.f32.mrf.mxu0
      %v1152 = vpop.f32.mrf.mxu0
      %v1153 = vadd.f32 0.0, %v1152
      %v1154 = vpop.f32.mrf.mxu0
      %1155 = vmatprep.mubr.bf16.mxu0 0
      %1156 = vmatmul.mubr.bf16.gmra.mxu0 %v1067
      %v1157 = vpop.f32.mrf.mxu0
      %v1158 = vadd.f32 0.0, %v1157
      %v1159 = vpop.f32.mrf.mxu0
      %v1160 = vpop.f32.mrf.mxu0
      %v1161 = vadd.f32 0.0, %v1160
      %v1162 = vpop.f32.mrf.mxu0
      %1163 = vmatprep.mubr.bf16.mxu0 0
      %1164 = vmatmul.mubr.bf16.gmra.mxu0 %v1070
      %v1165 = vpop.f32.mrf.mxu0
      %v1166 = vadd.f32 0.0, %v1165
      %v1167 = vpop.f32.mrf.mxu0
      %v1168 = vpop.f32.mrf.mxu0
      %v1169 = vadd.f32 0.0, %v1168
      %v1170 = vpop.f32.mrf.mxu0
      %1171 = vdwg.mxu0
      %v1172 = vadd.f32 %v1004, %v1110
      %v1173 = vadd.f32 %v1005, %v1113
      %v1174 = vadd.f32 %v1006, %v1118
      %v1175 = vadd.f32 %v1007, %v1121
      %v1176 = vadd.f32 %v1008, %v1126
      %v1177 = vadd.f32 %v1009, %v1129
      %v1178 = vadd.f32 %v1010, %v1134
      %v1179 = vadd.f32 %v1011, %v1137
      %v1180 = vadd.f32 %v1012, %v1142
      %v1181 = vadd.f32 %v1013, %v1145
      %v1182 = vadd.f32 %v1014, %v1150
      %v1183 = vadd.f32 %v1015, %v1153
      %v1184 = vadd.f32 %v1016, %v1158
      %v1185 = vadd.f32 %v1017, %v1161
      %v1186 = vadd.f32 %v1018, %v1166
      %v1187 = vadd.f32 %v1019, %v1169
      %s1188 = sadd.s32 %s23, 37
      %s1189 = scalar_lea.vmem %s0, %s1188
      %v1190 = vld [vmem:[%s1189] sm:$0xff]
      %v1191 = vld [vmem:[%s1189 + $0x8] sm:$0xff]
      %v1192 = vld [vmem:[%s1189 + $0x10] sm:$0xff]
      %v1193 = vld [vmem:[%s1189 + $0x18] sm:$0xff]
      %v1194 = vld [vmem:[%s1189 + $0x20] sm:$0xff]
      %v1195 = vld [vmem:[%s1189 + $0x28] sm:$0xff]
      %v1196 = vld [vmem:[%s1189 + $0x30] sm:$0xff]
      %v1197 = vld [vmem:[%s1189 + $0x38] sm:$0xff]
      %v1198 = vld [vmem:[%s1189 + $0x40] sm:$0xff]
      %v1199 = vld [vmem:[%s1189 + $0x48] sm:$0xff]
      %v1200 = vld [vmem:[%s1189 + $0x50] sm:$0xff]
      %v1201 = vld [vmem:[%s1189 + $0x58] sm:$0xff]
      %v1202 = vld [vmem:[%s1189 + $0x60] sm:$0xff]
      %v1203 = vld [vmem:[%s1189 + $0x68] sm:$0xff]
      %v1204 = vld [vmem:[%s1189 + $0x70] sm:$0xff]
      %v1205 = vld [vmem:[%s1189 + $0x78] sm:$0xff]
      %v1206 = vpack.c.bf16 %v1191, %v1190
      %v1207 = vpack.c.bf16 %v1193, %v1192
      %v1208 = vpack.c.bf16 %v1195, %v1194
      %v1209 = vpack.c.bf16 %v1197, %v1196
      %v1210 = vpack.c.bf16 %v1199, %v1198
      %v1211 = vpack.c.bf16 %v1201, %v1200
      %v1212 = vpack.c.bf16 %v1203, %v1202
      %v1213 = vpack.c.bf16 %v1205, %v1204
      %s1214 = scalar_lea.vmem %s1, 14
      %v1215 = vld [vmem:[%s1214] sm:$0x3]
      %v1217 = vsel %vm95, %v1206, 0
      %v1220 = vsel %vm95, %v1207, 0
      %v1223 = vsel %vm95, %v1208, 0
      %v1226 = vsel %vm95, %v1209, 0
      %v1229 = vsel %vm95, %v1210, 0
      %v1232 = vsel %vm95, %v1211, 0
      %v1235 = vsel %vm95, %v1212, 0
      %v1238 = vsel %vm95, %v1213, 0
      %v1241 = vand.u32 %v1215, %v123
      %1243 = vmatprep.subr.bf16.mxu0 0
      %1244 = vmatpush1.bf16.msra.mxu0 0
      %1245 = vmatprep.subr.bf16.mxu0 0
      %1246 = vmatpush1.bf16.msra.mxu0 0
      %1247 = vmatprep.subr.bf16.mxu0 0
      %1248 = vmatpush1.bf16.msra.mxu0 0
      %1249 = vmatprep.subr.bf16.mxu0 0
      %1250 = vmatpush1.bf16.msra.mxu0 0
      %1251 = vmatprep.subr.bf16.mxu0 0
      %1252 = vmatpush1.bf16.msra.mxu0 0
      %1253 = vmatprep.subr.bf16.mxu0 0
      %1254 = vmatpush1.bf16.msra.mxu0 0
      %1255 = vmatprep.subr.bf16.mxu0 0
      %1256 = vmatpush1.bf16.msra.mxu0 0
      %1257 = vmatprep.subr.bf16.mxu0 0
      %1258 = vmatpush1.bf16.msra.mxu0 %v1241
      %1259 = vmatprep.subr.bf16.mxu0 0
      %1260 = vmatpush2.bf16.msra.mxu0 0
      %1261 = vmatprep.subr.bf16.mxu0 0
      %1262 = vmatpush2.bf16.msra.mxu0 0
      %1263 = vmatprep.subr.bf16.mxu0 0
      %1264 = vmatpush2.bf16.msra.mxu0 0
      %1265 = vmatprep.subr.bf16.mxu0 0
      %1266 = vmatpush2.bf16.msra.mxu0 0
      %1267 = vmatprep.subr.bf16.mxu0 0
      %1268 = vmatpush2.bf16.msra.mxu0 0
      %1269 = vmatprep.subr.bf16.mxu0 0
      %1270 = vmatpush2.bf16.msra.mxu0 0
      %1271 = vmatprep.subr.bf16.mxu0 0
      %1272 = vmatpush2.bf16.msra.mxu0 0
      %1273 = vmatprep.subr.bf16.mxu0 0
      %1274 = vmatpush2.bf16.msra.mxu0 0
      %1275 = vmatprep.mubr.bf16.mxu0 0
      %1276 = vmatmul.mubr.bf16.gmra.mxu0 %v1217
      %v1277 = vpop.f32.mrf.mxu0
      %v1278 = vadd.f32 0.0, %v1277
      %v1279 = vpop.f32.mrf.mxu0
      %v1280 = vpop.f32.mrf.mxu0
      %v1281 = vadd.f32 0.0, %v1280
      %v1282 = vpop.f32.mrf.mxu0
      %1283 = vmatprep.mubr.bf16.mxu0 0
      %1284 = vmatmul.mubr.bf16.gmra.mxu0 %v1220
      %v1285 = vpop.f32.mrf.mxu0
      %v1286 = vadd.f32 0.0, %v1285
      %v1287 = vpop.f32.mrf.mxu0
      %v1288 = vpop.f32.mrf.mxu0
      %v1289 = vadd.f32 0.0, %v1288
      %v1290 = vpop.f32.mrf.mxu0
      %1291 = vmatprep.mubr.bf16.mxu0 0
      %1292 = vmatmul.mubr.bf16.gmra.mxu0 %v1223
      %v1293 = vpop.f32.mrf.mxu0
      %v1294 = vadd.f32 0.0, %v1293
      %v1295 = vpop.f32.mrf.mxu0
      %v1296 = vpop.f32.mrf.mxu0
      %v1297 = vadd.f32 0.0, %v1296
      %v1298 = vpop.f32.mrf.mxu0
      %1299 = vmatprep.mubr.bf16.mxu0 0
      %1300 = vmatmul.mubr.bf16.gmra.mxu0 %v1226
      %v1301 = vpop.f32.mrf.mxu0
      %v1302 = vadd.f32 0.0, %v1301
      %v1303 = vpop.f32.mrf.mxu0
      %v1304 = vpop.f32.mrf.mxu0
      %v1305 = vadd.f32 0.0, %v1304
      %v1306 = vpop.f32.mrf.mxu0
      %1307 = vmatprep.mubr.bf16.mxu0 0
      %1308 = vmatmul.mubr.bf16.gmra.mxu0 %v1229
      %v1309 = vpop.f32.mrf.mxu0
      %v1310 = vadd.f32 0.0, %v1309
      %v1311 = vpop.f32.mrf.mxu0
      %v1312 = vpop.f32.mrf.mxu0
      %v1313 = vadd.f32 0.0, %v1312
      %v1314 = vpop.f32.mrf.mxu0
      %1315 = vmatprep.mubr.bf16.mxu0 0
      %1316 = vmatmul.mubr.bf16.gmra.mxu0 %v1232
      %v1317 = vpop.f32.mrf.mxu0
      %v1318 = vadd.f32 0.0, %v1317
      %v1319 = vpop.f32.mrf.mxu0
      %v1320 = vpop.f32.mrf.mxu0
      %v1321 = vadd.f32 0.0, %v1320
      %v1322 = vpop.f32.mrf.mxu0
      %1323 = vmatprep.mubr.bf16.mxu0 0
      %1324 = vmatmul.mubr.bf16.gmra.mxu0 %v1235
      %v1325 = vpop.f32.mrf.mxu0
      %v1326 = vadd.f32 0.0, %v1325
      %v1327 = vpop.f32.mrf.mxu0
      %v1328 = vpop.f32.mrf.mxu0
      %v1329 = vadd.f32 0.0, %v1328
      %v1330 = vpop.f32.mrf.mxu0
      %1331 = vmatprep.mubr.bf16.mxu0 0
      %1332 = vmatmul.mubr.bf16.gmra.mxu0 %v1238
      %v1333 = vpop.f32.mrf.mxu0
      %v1334 = vadd.f32 0.0, %v1333
      %v1335 = vpop.f32.mrf.mxu0
      %v1336 = vpop.f32.mrf.mxu0
      %v1337 = vadd.f32 0.0, %v1336
      %v1338 = vpop.f32.mrf.mxu0
      %1339 = vdwg.mxu0
      %v1340 = vadd.f32 %v1172, %v1278
      %v1341 = vadd.f32 %v1173, %v1281
      %v1342 = vadd.f32 %v1174, %v1286
      %v1343 = vadd.f32 %v1175, %v1289
      %v1344 = vadd.f32 %v1176, %v1294
      %v1345 = vadd.f32 %v1177, %v1297
      %v1346 = vadd.f32 %v1178, %v1302
      %v1347 = vadd.f32 %v1179, %v1305
      %v1348 = vadd.f32 %v1180, %v1310
      %v1349 = vadd.f32 %v1181, %v1313
      %v1350 = vadd.f32 %v1182, %v1318
      %v1351 = vadd.f32 %v1183, %v1321
      %v1352 = vadd.f32 %v1184, %v1326
      %v1353 = vadd.f32 %v1185, %v1329
      %v1354 = vadd.f32 %v1186, %v1334
      %v1355 = vadd.f32 %v1187, %v1337
      %s1356 = sadd.s32 %s23, 38
      %s1357 = scalar_lea.vmem %s0, %s1356
      %v1358 = vld [vmem:[%s1357] sm:$0xff]
      %v1359 = vld [vmem:[%s1357 + $0x8] sm:$0xff]
      %v1360 = vld [vmem:[%s1357 + $0x10] sm:$0xff]
      %v1361 = vld [vmem:[%s1357 + $0x18] sm:$0xff]
      %v1362 = vld [vmem:[%s1357 + $0x20] sm:$0xff]
      %v1363 = vld [vmem:[%s1357 + $0x28] sm:$0xff]
      %v1364 = vld [vmem:[%s1357 + $0x30] sm:$0xff]
      %v1365 = vld [vmem:[%s1357 + $0x38] sm:$0xff]
      %v1366 = vld [vmem:[%s1357 + $0x40] sm:$0xff]
      %v1367 = vld [vmem:[%s1357 + $0x48] sm:$0xff]
      %v1368 = vld [vmem:[%s1357 + $0x50] sm:$0xff]
      %v1369 = vld [vmem:[%s1357 + $0x58] sm:$0xff]
      %v1370 = vld [vmem:[%s1357 + $0x60] sm:$0xff]
      %v1371 = vld [vmem:[%s1357 + $0x68] sm:$0xff]
      %v1372 = vld [vmem:[%s1357 + $0x70] sm:$0xff]
      %v1373 = vld [vmem:[%s1357 + $0x78] sm:$0xff]
      %v1374 = vpack.c.bf16 %v1359, %v1358
      %v1375 = vpack.c.bf16 %v1361, %v1360
      %v1376 = vpack.c.bf16 %v1363, %v1362
      %v1377 = vpack.c.bf16 %v1365, %v1364
      %v1378 = vpack.c.bf16 %v1367, %v1366
      %v1379 = vpack.c.bf16 %v1369, %v1368
      %v1380 = vpack.c.bf16 %v1371, %v1370
      %v1381 = vpack.c.bf16 %v1373, %v1372
      %s1382 = scalar_lea.vmem %s1, 16
      %v1383 = vld [vmem:[%s1382] sm:$0x3]
      %v1385 = vsel %vm95, %v1374, 0
      %v1388 = vsel %vm95, %v1375, 0
      %v1391 = vsel %vm95, %v1376, 0
      %v1394 = vsel %vm95, %v1377, 0
      %v1397 = vsel %vm95, %v1378, 0
      %v1400 = vsel %vm95, %v1379, 0
      %v1403 = vsel %vm95, %v1380, 0
      %v1406 = vsel %vm95, %v1381, 0
      %v1409 = vand.u32 %v1383, %v123
      %1411 = vmatprep.subr.bf16.mxu0 0
      %1412 = vmatpush1.bf16.msra.mxu0 0
      %1413 = vmatprep.subr.bf16.mxu0 0
      %1414 = vmatpush1.bf16.msra.mxu0 0
      %1415 = vmatprep.subr.bf16.mxu0 0
      %1416 = vmatpush1.bf16.msra.mxu0 0
      %1417 = vmatprep.subr.bf16.mxu0 0
      %1418 = vmatpush1.bf16.msra.mxu0 0
      %1419 = vmatprep.subr.bf16.mxu0 0
      %1420 = vmatpush1.bf16.msra.mxu0 0
      %1421 = vmatprep.subr.bf16.mxu0 0
      %1422 = vmatpush1.bf16.msra.mxu0 0
      %1423 = vmatprep.subr.bf16.mxu0 0
      %1424 = vmatpush1.bf16.msra.mxu0 0
      %1425 = vmatprep.subr.bf16.mxu0 0
      %1426 = vmatpush1.bf16.msra.mxu0 %v1409
      %1427 = vmatprep.subr.bf16.mxu0 0
      %1428 = vmatpush2.bf16.msra.mxu0 0
      %1429 = vmatprep.subr.bf16.mxu0 0
      %1430 = vmatpush2.bf16.msra.mxu0 0
      %1431 = vmatprep.subr.bf16.mxu0 0
      %1432 = vmatpush2.bf16.msra.mxu0 0
      %1433 = vmatprep.subr.bf16.mxu0 0
      %1434 = vmatpush2.bf16.msra.mxu0 0
      %1435 = vmatprep.subr.bf16.mxu0 0
      %1436 = vmatpush2.bf16.msra.mxu0 0
      %1437 = vmatprep.subr.bf16.mxu0 0
      %1438 = vmatpush2.bf16.msra.mxu0 0
      %1439 = vmatprep.subr.bf16.mxu0 0
      %1440 = vmatpush2.bf16.msra.mxu0 0
      %1441 = vmatprep.subr.bf16.mxu0 0
      %1442 = vmatpush2.bf16.msra.mxu0 0
      %1443 = vmatprep.mubr.bf16.mxu0 0
      %1444 = vmatmul.mubr.bf16.gmra.mxu0 %v1385
      %v1445 = vpop.f32.mrf.mxu0
      %v1446 = vadd.f32 0.0, %v1445
      %v1447 = vpop.f32.mrf.mxu0
      %v1448 = vpop.f32.mrf.mxu0
      %v1449 = vadd.f32 0.0, %v1448
      %v1450 = vpop.f32.mrf.mxu0
      %1451 = vmatprep.mubr.bf16.mxu0 0
      %1452 = vmatmul.mubr.bf16.gmra.mxu0 %v1388
      %v1453 = vpop.f32.mrf.mxu0
      %v1454 = vadd.f32 0.0, %v1453
      %v1455 = vpop.f32.mrf.mxu0
      %v1456 = vpop.f32.mrf.mxu0
      %v1457 = vadd.f32 0.0, %v1456
      %v1458 = vpop.f32.mrf.mxu0
      %1459 = vmatprep.mubr.bf16.mxu0 0
      %1460 = vmatmul.mubr.bf16.gmra.mxu0 %v1391
      %v1461 = vpop.f32.mrf.mxu0
      %v1462 = vadd.f32 0.0, %v1461
      %v1463 = vpop.f32.mrf.mxu0
      %v1464 = vpop.f32.mrf.mxu0
      %v1465 = vadd.f32 0.0, %v1464
      %v1466 = vpop.f32.mrf.mxu0
      %1467 = vmatprep.mubr.bf16.mxu0 0
      %1468 = vmatmul.mubr.bf16.gmra.mxu0 %v1394
      %v1469 = vpop.f32.mrf.mxu0
      %v1470 = vadd.f32 0.0, %v1469
      %v1471 = vpop.f32.mrf.mxu0
      %v1472 = vpop.f32.mrf.mxu0
      %v1473 = vadd.f32 0.0, %v1472
      %v1474 = vpop.f32.mrf.mxu0
      %1475 = vmatprep.mubr.bf16.mxu0 0
      %1476 = vmatmul.mubr.bf16.gmra.mxu0 %v1397
      %v1477 = vpop.f32.mrf.mxu0
      %v1478 = vadd.f32 0.0, %v1477
      %v1479 = vpop.f32.mrf.mxu0
      %v1480 = vpop.f32.mrf.mxu0
      %v1481 = vadd.f32 0.0, %v1480
      %v1482 = vpop.f32.mrf.mxu0
      %1483 = vmatprep.mubr.bf16.mxu0 0
      %1484 = vmatmul.mubr.bf16.gmra.mxu0 %v1400
      %v1485 = vpop.f32.mrf.mxu0
      %v1486 = vadd.f32 0.0, %v1485
      %v1487 = vpop.f32.mrf.mxu0
      %v1488 = vpop.f32.mrf.mxu0
      %v1489 = vadd.f32 0.0, %v1488
      %v1490 = vpop.f32.mrf.mxu0
      %1491 = vmatprep.mubr.bf16.mxu0 0
      %1492 = vmatmul.mubr.bf16.gmra.mxu0 %v1403
      %v1493 = vpop.f32.mrf.mxu0
      %v1494 = vadd.f32 0.0, %v1493
      %v1495 = vpop.f32.mrf.mxu0
      %v1496 = vpop.f32.mrf.mxu0
      %v1497 = vadd.f32 0.0, %v1496
      %v1498 = vpop.f32.mrf.mxu0
      %1499 = vmatprep.mubr.bf16.mxu0 0
      %1500 = vmatmul.mubr.bf16.gmra.mxu0 %v1406
      %v1501 = vpop.f32.mrf.mxu0
      %v1502 = vadd.f32 0.0, %v1501
      %v1503 = vpop.f32.mrf.mxu0
      %v1504 = vpop.f32.mrf.mxu0
      %v1505 = vadd.f32 0.0, %v1504
      %v1506 = vpop.f32.mrf.mxu0
      %1507 = vdwg.mxu0
      %v1508 = vadd.f32 %v1340, %v1446
      %v1509 = vadd.f32 %v1341, %v1449
      %v1510 = vadd.f32 %v1342, %v1454
      %v1511 = vadd.f32 %v1343, %v1457
      %v1512 = vadd.f32 %v1344, %v1462
      %v1513 = vadd.f32 %v1345, %v1465
      %v1514 = vadd.f32 %v1346, %v1470
      %v1515 = vadd.f32 %v1347, %v1473
      %v1516 = vadd.f32 %v1348, %v1478
      %v1517 = vadd.f32 %v1349, %v1481
      %v1518 = vadd.f32 %v1350, %v1486
      %v1519 = vadd.f32 %v1351, %v1489
      %v1520 = vadd.f32 %v1352, %v1494
      %v1521 = vadd.f32 %v1353, %v1497
      %v1522 = vadd.f32 %v1354, %v1502
      %v1523 = vadd.f32 %v1355, %v1505
      %v1524 = vmax.f32 %v1508, 0.0
      %v1525 = vmax.f32 %v1509, 0.0
      %v1526 = vmax.f32 %v1510, 0.0
      %v1527 = vmax.f32 %v1511, 0.0
      %v1528 = vmax.f32 %v1512, 0.0
      %v1529 = vmax.f32 %v1513, 0.0
      %v1530 = vmax.f32 %v1514, 0.0
      %v1531 = vmax.f32 %v1515, 0.0
      %v1532 = vmax.f32 %v1516, 0.0
      %v1533 = vmax.f32 %v1517, 0.0
      %v1534 = vmax.f32 %v1518, 0.0
      %v1535 = vmax.f32 %v1519, 0.0
      %v1536 = vmax.f32 %v1520, 0.0
      %v1537 = vmax.f32 %v1521, 0.0
      %v1538 = vmax.f32 %v1522, 0.0
      %v1539 = vmax.f32 %v1523, 0.0
      %1541 = vset.pattern.permute.xlu0 0
      %1542 = vperm.xlu0 %1541, %v25
      %v1543 = vpop.permute.xlu0 %1542
      %1546 = vset.pattern.permute.xlu0 0
      %1547 = vperm.xlu0 %1546, %v26
      %v1548 = vpop.permute.xlu0 %1547
      %1551 = vset.pattern.permute.xlu0 0
      %1552 = vperm.xlu0 %1551, %v27
      %v1553 = vpop.permute.xlu0 %1552
      %1556 = vset.pattern.permute.xlu0 0
      %1557 = vperm.xlu0 %1556, %v28
      %v1558 = vpop.permute.xlu0 %1557
      %1561 = vset.pattern.permute.xlu0 0
      %1562 = vperm.xlu0 %1561, %v29
      %v1563 = vpop.permute.xlu0 %1562
      %1566 = vset.pattern.permute.xlu0 0
      %1567 = vperm.xlu0 %1566, %v30
      %v1568 = vpop.permute.xlu0 %1567
      %1571 = vset.pattern.permute.xlu0 0
      %1572 = vperm.xlu0 %1571, %v31
      %v1573 = vpop.permute.xlu0 %1572
      %1576 = vset.pattern.permute.xlu0 0
      %1577 = vperm.xlu0 %1576, %v32
      %v1578 = vpop.permute.xlu0 %1577
      %1581 = vset.pattern.permute.xlu0 0
      %1582 = vperm.xlu0 %1581, %v33
      %v1583 = vpop.permute.xlu0 %1582
      %1586 = vset.pattern.permute.xlu0 0
      %1587 = vperm.xlu0 %1586, %v34
      %v1588 = vpop.permute.xlu0 %1587
      %1591 = vset.pattern.permute.xlu0 0
      %1592 = vperm.xlu0 %1591, %v35
      %v1593 = vpop.permute.xlu0 %1592
      %1596 = vset.pattern.permute.xlu0 0
      %1597 = vperm.xlu0 %1596, %v36
      %v1598 = vpop.permute.xlu0 %1597
      %1601 = vset.pattern.permute.xlu0 0
      %1602 = vperm.xlu0 %1601, %v37
      %v1603 = vpop.permute.xlu0 %1602
      %1606 = vset.pattern.permute.xlu0 0
      %1607 = vperm.xlu0 %1606, %v38
      %v1608 = vpop.permute.xlu0 %1607
      %1611 = vset.pattern.permute.xlu0 0
      %1612 = vperm.xlu0 %1611, %v39
      %v1613 = vpop.permute.xlu0 %1612
      %1616 = vset.pattern.permute.xlu0 0
      %1617 = vperm.xlu0 %1616, %v40
      %v1618 = vpop.permute.xlu0 %1617
      %v1620 = vmul.f32 %v1524, %v1543
      %v1621 = vmul.f32 %v1525, %v1548
      %v1622 = vmul.f32 %v1526, %v1553
      %v1623 = vmul.f32 %v1527, %v1558
      %v1624 = vmul.f32 %v1528, %v1563
      %v1625 = vmul.f32 %v1529, %v1568
      %v1626 = vmul.f32 %v1530, %v1573
      %v1627 = vmul.f32 %v1531, %v1578
      %v1628 = vmul.f32 %v1532, %v1583
      %v1629 = vmul.f32 %v1533, %v1588
      %v1630 = vmul.f32 %v1534, %v1593
      %v1631 = vmul.f32 %v1535, %v1598
      %v1632 = vmul.f32 %v1536, %v1603
      %v1633 = vmul.f32 %v1537, %v1608
      %v1634 = vmul.f32 %v1538, %v1613
      %v1635 = vmul.f32 %v1539, %v1618
      %v1636 = vld [vmem:[#allocation2] sm:$0x1]
      %v1637 = vadd.f32 %v1620, %v1621
      %v1638 = vadd.f32 %v1637, %v1622
      %v1639 = vadd.f32 %v1638, %v1623
      %v1640 = vadd.f32 %v1639, %v1624
      %v1641 = vadd.f32 %v1640, %v1625
      %v1642 = vadd.f32 %v1641, %v1626
      %v1643 = vadd.f32 %v1642, %v1627
      %v1644 = vadd.f32 %v1643, %v1628
      %v1645 = vadd.f32 %v1644, %v1629
      %v1646 = vadd.f32 %v1645, %v1630
      %v1647 = vadd.f32 %v1646, %v1631
      %v1648 = vadd.f32 %v1647, %v1632
      %v1649 = vadd.f32 %v1648, %v1633
      %v1650 = vadd.f32 %v1649, %v1634
      %v1651 = vadd.f32 %v1650, %v1635
      %v1652 = vrot.slane %v1651, 4
      %v1653 = vadd.f32 %v1651, %v1652
      %v1654 = vrot.slane %v1653, 2
      %v1655 = vadd.f32 %v1653, %v1654
      %v1656 = vrot.slane %v1655, 1
      %v1657 = vadd.f32 %v1655, %v1656
      %v1658 = vadd.f32 %v1636, %v1657
      %1659 = vst [vmem:[#allocation2] sm:$0x1] %v1658
      %s1660 = sadd.s32 %s23, 424
      %s1661 = scalar_lea.vmem %s0, %s1660
      %v1662 = vld [vmem:[%s1661] sm:$0xff]
      %v1663 = vld [vmem:[%s1661 + $0x8] sm:$0xff]
      %v1664 = vld [vmem:[%s1661 + $0x10] sm:$0xff]
      %v1665 = vld [vmem:[%s1661 + $0x18] sm:$0xff]
      %v1666 = vld [vmem:[%s1661 + $0x20] sm:$0xff]
      %v1667 = vld [vmem:[%s1661 + $0x28] sm:$0xff]
      %v1668 = vld [vmem:[%s1661 + $0x30] sm:$0xff]
      %v1669 = vld [vmem:[%s1661 + $0x38] sm:$0xff]
      %v1670 = vld [vmem:[%s1661 + $0x40] sm:$0xff]
      %v1671 = vld [vmem:[%s1661 + $0x48] sm:$0xff]
      %v1672 = vld [vmem:[%s1661 + $0x50] sm:$0xff]
      %v1673 = vld [vmem:[%s1661 + $0x58] sm:$0xff]
      %v1674 = vld [vmem:[%s1661 + $0x60] sm:$0xff]
      %v1675 = vld [vmem:[%s1661 + $0x68] sm:$0xff]
      %v1676 = vld [vmem:[%s1661 + $0x70] sm:$0xff]
      %v1677 = vld [vmem:[%s1661 + $0x78] sm:$0xff]
      %v1678 = vpack.c.bf16 %v1663, %v1662
      %v1679 = vpack.c.bf16 %v1665, %v1664
      %v1680 = vpack.c.bf16 %v1667, %v1666
      %v1681 = vpack.c.bf16 %v1669, %v1668
      %v1682 = vpack.c.bf16 %v1671, %v1670
      %v1683 = vpack.c.bf16 %v1673, %v1672
      %v1684 = vpack.c.bf16 %v1675, %v1674
      %v1685 = vpack.c.bf16 %v1677, %v1676
      %v1686 = vld [vmem:[%s1] sm:$0x3]
      %s1687 = sadd.s32 %s67, 424
      %s1688 = scalar_lea.vmem %s0, %s1687
      %v1689 = vld [vmem:[%s1688] sm:$0xff]
      %v1690 = vld [vmem:[%s1688 + $0x8] sm:$0xff]
      %v1691 = vld [vmem:[%s1688 + $0x10] sm:$0xff]
      %v1692 = vld [vmem:[%s1688 + $0x18] sm:$0xff]
      %v1693 = vld [vmem:[%s1688 + $0x20] sm:$0xff]
      %v1694 = vld [vmem:[%s1688 + $0x28] sm:$0xff]
      %v1695 = vld [vmem:[%s1688 + $0x30] sm:$0xff]
      %v1696 = vld [vmem:[%s1688 + $0x38] sm:$0xff]
      %v1697 = vld [vmem:[%s1688 + $0x40] sm:$0xff]
      %v1698 = vld [vmem:[%s1688 + $0x48] sm:$0xff]
      %v1699 = vld [vmem:[%s1688 + $0x50] sm:$0xff]
      %v1700 = vld [vmem:[%s1688 + $0x58] sm:$0xff]
      %v1701 = vld [vmem:[%s1688 + $0x60] sm:$0xff]
      %v1702 = vld [vmem:[%s1688 + $0x68] sm:$0xff]
      %v1703 = vld [vmem:[%s1688 + $0x70] sm:$0xff]
      %v1704 = vld [vmem:[%s1688 + $0x78] sm:$0xff]
      %v1705 = vpack.c.bf16 %v1690, %v1689
      %v1706 = vpack.c.bf16 %v1692, %v1691
      %v1707 = vpack.c.bf16 %v1694, %v1693
      %v1708 = vpack.c.bf16 %v1696, %v1695
      %v1709 = vpack.c.bf16 %v1698, %v1697
      %v1710 = vpack.c.bf16 %v1700, %v1699
      %v1711 = vpack.c.bf16 %v1702, %v1701
      %v1712 = vpack.c.bf16 %v1704, %v1703
      %v1713 = vld [vmem:[%s93] sm:$0x3]
      %v1715 = vsel %vm95, %v1705, 0
      %v1718 = vsel %vm95, %v1706, 0
      %v1721 = vsel %vm95, %v1707, 0
      %v1724 = vsel %vm95, %v1708, 0
      %v1727 = vsel %vm95, %v1709, 0
      %v1730 = vsel %vm95, %v1710, 0
      %v1733 = vsel %vm95, %v1711, 0
      %v1736 = vsel %vm95, %v1712, 0
      %v1739 = vand.u32 %v1713, %v123
      %1741 = vmatprep.subr.bf16.mxu0 0
      %1742 = vmatpush1.bf16.msra.mxu0 0
      %1743 = vmatprep.subr.bf16.mxu0 0
      %1744 = vmatpush1.bf16.msra.mxu0 0
      %1745 = vmatprep.subr.bf16.mxu0 0
      %1746 = vmatpush1.bf16.msra.mxu0 0
      %1747 = vmatprep.subr.bf16.mxu0 0
      %1748 = vmatpush1.bf16.msra.mxu0 0
      %1749 = vmatprep.subr.bf16.mxu0 0
      %1750 = vmatpush1.bf16.msra.mxu0 0
      %1751 = vmatprep.subr.bf16.mxu0 0
      %1752 = vmatpush1.bf16.msra.mxu0 0
      %1753 = vmatprep.subr.bf16.mxu0 0
      %1754 = vmatpush1.bf16.msra.mxu0 0
      %1755 = vmatprep.subr.bf16.mxu0 0
      %1756 = vmatpush1.bf16.msra.mxu0 %v1739
      %1757 = vmatprep.subr.bf16.mxu0 0
      %1758 = vmatpush2.bf16.msra.mxu0 0
      %1759 = vmatprep.subr.bf16.mxu0 0
      %1760 = vmatpush2.bf16.msra.mxu0 0
      %1761 = vmatprep.subr.bf16.mxu0 0
      %1762 = vmatpush2.bf16.msra.mxu0 0
      %1763 = vmatprep.subr.bf16.mxu0 0
      %1764 = vmatpush2.bf16.msra.mxu0 0
      %1765 = vmatprep.subr.bf16.mxu0 0
      %1766 = vmatpush2.bf16.msra.mxu0 0
      %1767 = vmatprep.subr.bf16.mxu0 0
      %1768 = vmatpush2.bf16.msra.mxu0 0
      %1769 = vmatprep.subr.bf16.mxu0 0
      %1770 = vmatpush2.bf16.msra.mxu0 0
      %1771 = vmatprep.subr.bf16.mxu0 0
      %1772 = vmatpush2.bf16.msra.mxu0 0
      %1773 = vmatprep.mubr.bf16.mxu0 0
      %1774 = vmatmul.mubr.bf16.gmra.mxu0 %v1715
      %v1775 = vpop.f32.mrf.mxu0
      %v1776 = vadd.f32 0.0, %v1775
      %v1777 = vpop.f32.mrf.mxu0
      %v1778 = vpop.f32.mrf.mxu0
      %v1779 = vadd.f32 0.0, %v1778
      %v1780 = vpop.f32.mrf.mxu0
      %1781 = vmatprep.mubr.bf16.mxu0 0
      %1782 = vmatmul.mubr.bf16.gmra.mxu0 %v1718
      %v1783 = vpop.f32.mrf.mxu0
      %v1784 = vadd.f32 0.0, %v1783
      %v1785 = vpop.f32.mrf.mxu0
      %v1786 = vpop.f32.mrf.mxu0
      %v1787 = vadd.f32 0.0, %v1786
      %v1788 = vpop.f32.mrf.mxu0
      %1789 = vmatprep.mubr.bf16.mxu0 0
      %1790 = vmatmul.mubr.bf16.gmra.mxu0 %v1721
      %v1791 = vpop.f32.mrf.mxu0
      %v1792 = vadd.f32 0.0, %v1791
      %v1793 = vpop.f32.mrf.mxu0
      %v1794 = vpop.f32.mrf.mxu0
      %v1795 = vadd.f32 0.0, %v1794
      %v1796 = vpop.f32.mrf.mxu0
      %1797 = vmatprep.mubr.bf16.mxu0 0
      %1798 = vmatmul.mubr.bf16.gmra.mxu0 %v1724
      %v1799 = vpop.f32.mrf.mxu0
      %v1800 = vadd.f32 0.0, %v1799
      %v1801 = vpop.f32.mrf.mxu0
      %v1802 = vpop.f32.mrf.mxu0
      %v1803 = vadd.f32 0.0, %v1802
      %v1804 = vpop.f32.mrf.mxu0
      %1805 = vmatprep.mubr.bf16.mxu0 0
      %1806 = vmatmul.mubr.bf16.gmra.mxu0 %v1727
      %v1807 = vpop.f32.mrf.mxu0
      %v1808 = vadd.f32 0.0, %v1807
      %v1809 = vpop.f32.mrf.mxu0
      %v1810 = vpop.f32.mrf.mxu0
      %v1811 = vadd.f32 0.0, %v1810
      %v1812 = vpop.f32.mrf.mxu0
      %1813 = vmatprep.mubr.bf16.mxu0 0
      %1814 = vmatmul.mubr.bf16.gmra.mxu0 %v1730
      %v1815 = vpop.f32.mrf.mxu0
      %v1816 = vadd.f32 0.0, %v1815
      %v1817 = vpop.f32.mrf.mxu0
      %v1818 = vpop.f32.mrf.mxu0
      %v1819 = vadd.f32 0.0, %v1818
      %v1820 = vpop.f32.mrf.mxu0
      %1821 = vmatprep.mubr.bf16.mxu0 0
      %1822 = vmatmul.mubr.bf16.gmra.mxu0 %v1733
      %v1823 = vpop.f32.mrf.mxu0
      %v1824 = vadd.f32 0.0, %v1823
      %v1825 = vpop.f32.mrf.mxu0
      %v1826 = vpop.f32.mrf.mxu0
      %v1827 = vadd.f32 0.0, %v1826
      %v1828 = vpop.f32.mrf.mxu0
      %1829 = vmatprep.mubr.bf16.mxu0 0
      %1830 = vmatmul.mubr.bf16.gmra.mxu0 %v1736
      %v1831 = vpop.f32.mrf.mxu0
      %v1832 = vadd.f32 0.0, %v1831
      %v1833 = vpop.f32.mrf.mxu0
      %v1834 = vpop.f32.mrf.mxu0
      %v1835 = vadd.f32 0.0, %v1834
      %v1836 = vpop.f32.mrf.mxu0
      %1837 = vdwg.mxu0
      %v1839 = vsel %vm95, %v1678, 0
      %v1842 = vsel %vm95, %v1679, 0
      %v1845 = vsel %vm95, %v1680, 0
      %v1848 = vsel %vm95, %v1681, 0
      %v1851 = vsel %vm95, %v1682, 0
      %v1854 = vsel %vm95, %v1683, 0
      %v1857 = vsel %vm95, %v1684, 0
      %v1860 = vsel %vm95, %v1685, 0
      %v1863 = vand.u32 %v1686, %v123
      %1865 = vmatprep.subr.bf16.mxu0 0
      %1866 = vmatpush1.bf16.msra.mxu0 0
      %1867 = vmatprep.subr.bf16.mxu0 0
      %1868 = vmatpush1.bf16.msra.mxu0 0
      %1869 = vmatprep.subr.bf16.mxu0 0
      %1870 = vmatpush1.bf16.msra.mxu0 0
      %1871 = vmatprep.subr.bf16.mxu0 0
      %1872 = vmatpush1.bf16.msra.mxu0 0
      %1873 = vmatprep.subr.bf16.mxu0 0
      %1874 = vmatpush1.bf16.msra.mxu0 0
      %1875 = vmatprep.subr.bf16.mxu0 0
      %1876 = vmatpush1.bf16.msra.mxu0 0
      %1877 = vmatprep.subr.bf16.mxu0 0
      %1878 = vmatpush1.bf16.msra.mxu0 0
      %1879 = vmatprep.subr.bf16.mxu0 0
      %1880 = vmatpush1.bf16.msra.mxu0 %v1863
      %1881 = vmatprep.subr.bf16.mxu0 0
      %1882 = vmatpush2.bf16.msra.mxu0 0
      %1883 = vmatprep.subr.bf16.mxu0 0
      %1884 = vmatpush2.bf16.msra.mxu0 0
      %1885 = vmatprep.subr.bf16.mxu0 0
      %1886 = vmatpush2.bf16.msra.mxu0 0
      %1887 = vmatprep.subr.bf16.mxu0 0
      %1888 = vmatpush2.bf16.msra.mxu0 0
      %1889 = vmatprep.subr.bf16.mxu0 0
      %1890 = vmatpush2.bf16.msra.mxu0 0
      %1891 = vmatprep.subr.bf16.mxu0 0
      %1892 = vmatpush2.bf16.msra.mxu0 0
      %1893 = vmatprep.subr.bf16.mxu0 0
      %1894 = vmatpush2.bf16.msra.mxu0 0
      %1895 = vmatprep.subr.bf16.mxu0 0
      %1896 = vmatpush2.bf16.msra.mxu0 0
      %1897 = vmatprep.mubr.bf16.mxu0 0
      %1898 = vmatmul.mubr.bf16.gmra.mxu0 %v1839
      %v1899 = vpop.f32.mrf.mxu0
      %v1900 = vadd.f32 %v1776, %v1899
      %v1901 = vpop.f32.mrf.mxu0
      %v1902 = vpop.f32.mrf.mxu0
      %v1903 = vadd.f32 %v1779, %v1902
      %v1904 = vpop.f32.mrf.mxu0
      %1905 = vmatprep.mubr.bf16.mxu0 0
      %1906 = vmatmul.mubr.bf16.gmra.mxu0 %v1842
      %v1907 = vpop.f32.mrf.mxu0
      %v1908 = vadd.f32 %v1784, %v1907
      %v1909 = vpop.f32.mrf.mxu0
      %v1910 = vpop.f32.mrf.mxu0
      %v1911 = vadd.f32 %v1787, %v1910
      %v1912 = vpop.f32.mrf.mxu0
      %1913 = vmatprep.mubr.bf16.mxu0 0
      %1914 = vmatmul.mubr.bf16.gmra.mxu0 %v1845
      %v1915 = vpop.f32.mrf.mxu0
      %v1916 = vadd.f32 %v1792, %v1915
      %v1917 = vpop.f32.mrf.mxu0
      %v1918 = vpop.f32.mrf.mxu0
      %v1919 = vadd.f32 %v1795, %v1918
      %v1920 = vpop.f32.mrf.mxu0
      %1921 = vmatprep.mubr.bf16.mxu0 0
      %1922 = vmatmul.mubr.bf16.gmra.mxu0 %v1848
      %v1923 = vpop.f32.mrf.mxu0
      %v1924 = vadd.f32 %v1800, %v1923
      %v1925 = vpop.f32.mrf.mxu0
      %v1926 = vpop.f32.mrf.mxu0
      %v1927 = vadd.f32 %v1803, %v1926
      %v1928 = vpop.f32.mrf.mxu0
      %1929 = vmatprep.mubr.bf16.mxu0 0
      %1930 = vmatmul.mubr.bf16.gmra.mxu0 %v1851
      %v1931 = vpop.f32.mrf.mxu0
      %v1932 = vadd.f32 %v1808, %v1931
      %v1933 = vpop.f32.mrf.mxu0
      %v1934 = vpop.f32.mrf.mxu0
      %v1935 = vadd.f32 %v1811, %v1934
      %v1936 = vpop.f32.mrf.mxu0
      %1937 = vmatprep.mubr.bf16.mxu0 0
      %1938 = vmatmul.mubr.bf16.gmra.mxu0 %v1854
      %v1939 = vpop.f32.mrf.mxu0
      %v1940 = vadd.f32 %v1816, %v1939
      %v1941 = vpop.f32.mrf.mxu0
      %v1942 = vpop.f32.mrf.mxu0
      %v1943 = vadd.f32 %v1819, %v1942
      %v1944 = vpop.f32.mrf.mxu0
      %1945 = vmatprep.mubr.bf16.mxu0 0
      %1946 = vmatmul.mubr.bf16.gmra.mxu0 %v1857
      %v1947 = vpop.f32.mrf.mxu0
      %v1948 = vadd.f32 %v1824, %v1947
      %v1949 = vpop.f32.mrf.mxu0
      %v1950 = vpop.f32.mrf.mxu0
      %v1951 = vadd.f32 %v1827, %v1950
      %v1952 = vpop.f32.mrf.mxu0
      %1953 = vmatprep.mubr.bf16.mxu0 0
      %1954 = vmatmul.mubr.bf16.gmra.mxu0 %v1860
      %v1955 = vpop.f32.mrf.mxu0
      %v1956 = vadd.f32 %v1832, %v1955
      %v1957 = vpop.f32.mrf.mxu0
      %v1958 = vpop.f32.mrf.mxu0
      %v1959 = vadd.f32 %v1835, %v1958
      %v1960 = vpop.f32.mrf.mxu0
      %1961 = vdwg.mxu0
      %s1962 = sadd.s32 %s348, 424
      %s1963 = scalar_lea.vmem %s0, %s1962
      %v1964 = vld [vmem:[%s1963] sm:$0xff]
      %v1965 = vld [vmem:[%s1963 + $0x8] sm:$0xff]
      %v1966 = vld [vmem:[%s1963 + $0x10] sm:$0xff]
      %v1967 = vld [vmem:[%s1963 + $0x18] sm:$0xff]
      %v1968 = vld [vmem:[%s1963 + $0x20] sm:$0xff]
      %v1969 = vld [vmem:[%s1963 + $0x28] sm:$0xff]
      %v1970 = vld [vmem:[%s1963 + $0x30] sm:$0xff]
      %v1971 = vld [vmem:[%s1963 + $0x38] sm:$0xff]
      %v1972 = vld [vmem:[%s1963 + $0x40] sm:$0xff]
      %v1973 = vld [vmem:[%s1963 + $0x48] sm:$0xff]
      %v1974 = vld [vmem:[%s1963 + $0x50] sm:$0xff]
      %v1975 = vld [vmem:[%s1963 + $0x58] sm:$0xff]
      %v1976 = vld [vmem:[%s1963 + $0x60] sm:$0xff]
      %v1977 = vld [vmem:[%s1963 + $0x68] sm:$0xff]
      %v1978 = vld [vmem:[%s1963 + $0x70] sm:$0xff]
      %v1979 = vld [vmem:[%s1963 + $0x78] sm:$0xff]
      %v1980 = vpack.c.bf16 %v1965, %v1964
      %v1981 = vpack.c.bf16 %v1967, %v1966
      %v1982 = vpack.c.bf16 %v1969, %v1968
      %v1983 = vpack.c.bf16 %v1971, %v1970
      %v1984 = vpack.c.bf16 %v1973, %v1972
      %v1985 = vpack.c.bf16 %v1975, %v1974
      %v1986 = vpack.c.bf16 %v1977, %v1976
      %v1987 = vpack.c.bf16 %v1979, %v1978
      %v1988 = vld [vmem:[%s374] sm:$0x3]
      %v1990 = vsel %vm95, %v1980, 0
      %v1993 = vsel %vm95, %v1981, 0
      %v1996 = vsel %vm95, %v1982, 0
      %v1999 = vsel %vm95, %v1983, 0
      %v2002 = vsel %vm95, %v1984, 0
      %v2005 = vsel %vm95, %v1985, 0
      %v2008 = vsel %vm95, %v1986, 0
      %v2011 = vsel %vm95, %v1987, 0
      %v2014 = vand.u32 %v1988, %v123
      %2016 = vmatprep.subr.bf16.mxu0 0
      %2017 = vmatpush1.bf16.msra.mxu0 0
      %2018 = vmatprep.subr.bf16.mxu0 0
      %2019 = vmatpush1.bf16.msra.mxu0 0
      %2020 = vmatprep.subr.bf16.mxu0 0
      %2021 = vmatpush1.bf16.msra.mxu0 0
      %2022 = vmatprep.subr.bf16.mxu0 0
      %2023 = vmatpush1.bf16.msra.mxu0 0
      %2024 = vmatprep.subr.bf16.mxu0 0
      %2025 = vmatpush1.bf16.msra.mxu0 0
      %2026 = vmatprep.subr.bf16.mxu0 0
      %2027 = vmatpush1.bf16.msra.mxu0 0
      %2028 = vmatprep.subr.bf16.mxu0 0
      %2029 = vmatpush1.bf16.msra.mxu0 0
      %2030 = vmatprep.subr.bf16.mxu0 0
      %2031 = vmatpush1.bf16.msra.mxu0 %v2014
      %2032 = vmatprep.subr.bf16.mxu0 0
      %2033 = vmatpush2.bf16.msra.mxu0 0
      %2034 = vmatprep.subr.bf16.mxu0 0
      %2035 = vmatpush2.bf16.msra.mxu0 0
      %2036 = vmatprep.subr.bf16.mxu0 0
      %2037 = vmatpush2.bf16.msra.mxu0 0
      %2038 = vmatprep.subr.bf16.mxu0 0
      %2039 = vmatpush2.bf16.msra.mxu0 0
      %2040 = vmatprep.subr.bf16.mxu0 0
      %2041 = vmatpush2.bf16.msra.mxu0 0
      %2042 = vmatprep.subr.bf16.mxu0 0
      %2043 = vmatpush2.bf16.msra.mxu0 0
      %2044 = vmatprep.subr.bf16.mxu0 0
      %2045 = vmatpush2.bf16.msra.mxu0 0
      %2046 = vmatprep.subr.bf16.mxu0 0
      %2047 = vmatpush2.bf16.msra.mxu0 0
      %2048 = vmatprep.mubr.bf16.mxu0 0
      %2049 = vmatmul.mubr.bf16.gmra.mxu0 %v1990
      %v2050 = vpop.f32.mrf.mxu0
      %v2051 = vadd.f32 0.0, %v2050
      %v2052 = vpop.f32.mrf.mxu0
      %v2053 = vpop.f32.mrf.mxu0
      %v2054 = vadd.f32 0.0, %v2053
      %v2055 = vpop.f32.mrf.mxu0
      %2056 = vmatprep.mubr.bf16.mxu0 0
      %2057 = vmatmul.mubr.bf16.gmra.mxu0 %v1993
      %v2058 = vpop.f32.mrf.mxu0
      %v2059 = vadd.f32 0.0, %v2058
      %v2060 = vpop.f32.mrf.mxu0
      %v2061 = vpop.f32.mrf.mxu0
      %v2062 = vadd.f32 0.0, %v2061
      %v2063 = vpop.f32.mrf.mxu0
      %2064 = vmatprep.mubr.bf16.mxu0 0
      %2065 = vmatmul.mubr.bf16.gmra.mxu0 %v1996
      %v2066 = vpop.f32.mrf.mxu0
      %v2067 = vadd.f32 0.0, %v2066
      %v2068 = vpop.f32.mrf.mxu0
      %v2069 = vpop.f32.mrf.mxu0
      %v2070 = vadd.f32 0.0, %v2069
      %v2071 = vpop.f32.mrf.mxu0
      %2072 = vmatprep.mubr.bf16.mxu0 0
      %2073 = vmatmul.mubr.bf16.gmra.mxu0 %v1999
      %v2074 = vpop.f32.mrf.mxu0
      %v2075 = vadd.f32 0.0, %v2074
      %v2076 = vpop.f32.mrf.mxu0
      %v2077 = vpop.f32.mrf.mxu0
      %v2078 = vadd.f32 0.0, %v2077
      %v2079 = vpop.f32.mrf.mxu0
      %2080 = vmatprep.mubr.bf16.mxu0 0
      %2081 = vmatmul.mubr.bf16.gmra.mxu0 %v2002
      %v2082 = vpop.f32.mrf.mxu0
      %v2083 = vadd.f32 0.0, %v2082
      %v2084 = vpop.f32.mrf.mxu0
      %v2085 = vpop.f32.mrf.mxu0
      %v2086 = vadd.f32 0.0, %v2085
      %v2087 = vpop.f32.mrf.mxu0
      %2088 = vmatprep.mubr.bf16.mxu0 0
      %2089 = vmatmul.mubr.bf16.gmra.mxu0 %v2005
      %v2090 = vpop.f32.mrf.mxu0
      %v2091 = vadd.f32 0.0, %v2090
      %v2092 = vpop.f32.mrf.mxu0
      %v2093 = vpop.f32.mrf.mxu0
      %v2094 = vadd.f32 0.0, %v2093
      %v2095 = vpop.f32.mrf.mxu0
      %2096 = vmatprep.mubr.bf16.mxu0 0
      %2097 = vmatmul.mubr.bf16.gmra.mxu0 %v2008
      %v2098 = vpop.f32.mrf.mxu0
      %v2099 = vadd.f32 0.0, %v2098
      %v2100 = vpop.f32.mrf.mxu0
      %v2101 = vpop.f32.mrf.mxu0
      %v2102 = vadd.f32 0.0, %v2101
      %v2103 = vpop.f32.mrf.mxu0
      %2104 = vmatprep.mubr.bf16.mxu0 0
      %2105 = vmatmul.mubr.bf16.gmra.mxu0 %v2011
      %v2106 = vpop.f32.mrf.mxu0
      %v2107 = vadd.f32 0.0, %v2106
      %v2108 = vpop.f32.mrf.mxu0
      %v2109 = vpop.f32.mrf.mxu0
      %v2110 = vadd.f32 0.0, %v2109
      %v2111 = vpop.f32.mrf.mxu0
      %2112 = vdwg.mxu0
      %v2113 = vadd.f32 %v1900, %v2051
      %v2114 = vadd.f32 %v1903, %v2054
      %v2115 = vadd.f32 %v1908, %v2059
      %v2116 = vadd.f32 %v1911, %v2062
      %v2117 = vadd.f32 %v1916, %v2067
      %v2118 = vadd.f32 %v1919, %v2070
      %v2119 = vadd.f32 %v1924, %v2075
      %v2120 = vadd.f32 %v1927, %v2078
      %v2121 = vadd.f32 %v1932, %v2083
      %v2122 = vadd.f32 %v1935, %v2086
      %v2123 = vadd.f32 %v1940, %v2091
      %v2124 = vadd.f32 %v1943, %v2094
      %v2125 = vadd.f32 %v1948, %v2099
      %v2126 = vadd.f32 %v1951, %v2102
      %v2127 = vadd.f32 %v1956, %v2107
      %v2128 = vadd.f32 %v1959, %v2110
      %s2129 = sadd.s32 %s516, 424
      %s2130 = scalar_lea.vmem %s0, %s2129
      %v2131 = vld [vmem:[%s2130] sm:$0xff]
      %v2132 = vld [vmem:[%s2130 + $0x8] sm:$0xff]
      %v2133 = vld [vmem:[%s2130 + $0x10] sm:$0xff]
      %v2134 = vld [vmem:[%s2130 + $0x18] sm:$0xff]
      %v2135 = vld [vmem:[%s2130 + $0x20] sm:$0xff]
      %v2136 = vld [vmem:[%s2130 + $0x28] sm:$0xff]
      %v2137 = vld [vmem:[%s2130 + $0x30] sm:$0xff]
      %v2138 = vld [vmem:[%s2130 + $0x38] sm:$0xff]
      %v2139 = vld [vmem:[%s2130 + $0x40] sm:$0xff]
      %v2140 = vld [vmem:[%s2130 + $0x48] sm:$0xff]
      %v2141 = vld [vmem:[%s2130 + $0x50] sm:$0xff]
      %v2142 = vld [vmem:[%s2130 + $0x58] sm:$0xff]
      %v2143 = vld [vmem:[%s2130 + $0x60] sm:$0xff]
      %v2144 = vld [vmem:[%s2130 + $0x68] sm:$0xff]
      %v2145 = vld [vmem:[%s2130 + $0x70] sm:$0xff]
      %v2146 = vld [vmem:[%s2130 + $0x78] sm:$0xff]
      %v2147 = vpack.c.bf16 %v2132, %v2131
      %v2148 = vpack.c.bf16 %v2134, %v2133
      %v2149 = vpack.c.bf16 %v2136, %v2135
      %v2150 = vpack.c.bf16 %v2138, %v2137
      %v2151 = vpack.c.bf16 %v2140, %v2139
      %v2152 = vpack.c.bf16 %v2142, %v2141
      %v2153 = vpack.c.bf16 %v2144, %v2143
      %v2154 = vpack.c.bf16 %v2146, %v2145
      %v2155 = vld [vmem:[%s542] sm:$0x3]
      %v2157 = vsel %vm95, %v2147, 0
      %v2160 = vsel %vm95, %v2148, 0
      %v2163 = vsel %vm95, %v2149, 0
      %v2166 = vsel %vm95, %v2150, 0
      %v2169 = vsel %vm95, %v2151, 0
      %v2172 = vsel %vm95, %v2152, 0
      %v2175 = vsel %vm95, %v2153, 0
      %v2178 = vsel %vm95, %v2154, 0
      %v2181 = vand.u32 %v2155, %v123
      %2183 = vmatprep.subr.bf16.mxu0 0
      %2184 = vmatpush1.bf16.msra.mxu0 0
      %2185 = vmatprep.subr.bf16.mxu0 0
      %2186 = vmatpush1.bf16.msra.mxu0 0
      %2187 = vmatprep.subr.bf16.mxu0 0
      %2188 = vmatpush1.bf16.msra.mxu0 0
      %2189 = vmatprep.subr.bf16.mxu0 0
      %2190 = vmatpush1.bf16.msra.mxu0 0
      %2191 = vmatprep.subr.bf16.mxu0 0
      %2192 = vmatpush1.bf16.msra.mxu0 0
      %2193 = vmatprep.subr.bf16.mxu0 0
      %2194 = vmatpush1.bf16.msra.mxu0 0
      %2195 = vmatprep.subr.bf16.mxu0 0
      %2196 = vmatpush1.bf16.msra.mxu0 0
      %2197 = vmatprep.subr.bf16.mxu0 0
      %2198 = vmatpush1.bf16.msra.mxu0 %v2181
      %2199 = vmatprep.subr.bf16.mxu0 0
      %2200 = vmatpush2.bf16.msra.mxu0 0
      %2201 = vmatprep.subr.bf16.mxu0 0
      %2202 = vmatpush2.bf16.msra.mxu0 0
      %2203 = vmatprep.subr.bf16.mxu0 0
      %2204 = vmatpush2.bf16.msra.mxu0 0
      %2205 = vmatprep.subr.bf16.mxu0 0
      %2206 = vmatpush2.bf16.msra.mxu0 0
      %2207 = vmatprep.subr.bf16.mxu0 0
      %2208 = vmatpush2.bf16.msra.mxu0 0
      %2209 = vmatprep.subr.bf16.mxu0 0
      %2210 = vmatpush2.bf16.msra.mxu0 0
      %2211 = vmatprep.subr.bf16.mxu0 0
      %2212 = vmatpush2.bf16.msra.mxu0 0
      %2213 = vmatprep.subr.bf16.mxu0 0
      %2214 = vmatpush2.bf16.msra.mxu0 0
      %2215 = vmatprep.mubr.bf16.mxu0 0
      %2216 = vmatmul.mubr.bf16.gmra.mxu0 %v2157
      %v2217 = vpop.f32.mrf.mxu0
      %v2218 = vadd.f32 0.0, %v2217
      %v2219 = vpop.f32.mrf.mxu0
      %v2220 = vpop.f32.mrf.mxu0
      %v2221 = vadd.f32 0.0, %v2220
      %v2222 = vpop.f32.mrf.mxu0
      %2223 = vmatprep.mubr.bf16.mxu0 0
      %2224 = vmatmul.mubr.bf16.gmra.mxu0 %v2160
      %v2225 = vpop.f32.mrf.mxu0
      %v2226 = vadd.f32 0.0, %v2225
      %v2227 = vpop.f32.mrf.mxu0
      %v2228 = vpop.f32.mrf.mxu0
      %v2229 = vadd.f32 0.0, %v2228
      %v2230 = vpop.f32.mrf.mxu0
      %2231 = vmatprep.mubr.bf16.mxu0 0
      %2232 = vmatmul.mubr.bf16.gmra.mxu0 %v2163
      %v2233 = vpop.f32.mrf.mxu0
      %v2234 = vadd.f32 0.0, %v2233
      %v2235 = vpop.f32.mrf.mxu0
      %v2236 = vpop.f32.mrf.mxu0
      %v2237 = vadd.f32 0.0, %v2236
      %v2238 = vpop.f32.mrf.mxu0
      %2239 = vmatprep.mubr.bf16.mxu0 0
      %2240 = vmatmul.mubr.bf16.gmra.mxu0 %v2166
      %v2241 = vpop.f32.mrf.mxu0
      %v2242 = vadd.f32 0.0, %v2241
      %v2243 = vpop.f32.mrf.mxu0
      %v2244 = vpop.f32.mrf.mxu0
      %v2245 = vadd.f32 0.0, %v2244
      %v2246 = vpop.f32.mrf.mxu0
      %2247 = vmatprep.mubr.bf16.mxu0 0
      %2248 = vmatmul.mubr.bf16.gmra.mxu0 %v2169
      %v2249 = vpop.f32.mrf.mxu0
      %v2250 = vadd.f32 0.0, %v2249
      %v2251 = vpop.f32.mrf.mxu0
      %v2252 = vpop.f32.mrf.mxu0
      %v2253 = vadd.f32 0.0, %v2252
      %v2254 = vpop.f32.mrf.mxu0
      %2255 = vmatprep.mubr.bf16.mxu0 0
      %2256 = vmatmul.mubr.bf16.gmra.mxu0 %v2172
      %v2257 = vpop.f32.mrf.mxu0
      %v2258 = vadd.f32 0.0, %v2257
      %v2259 = vpop.f32.mrf.mxu0
      %v2260 = vpop.f32.mrf.mxu0
      %v2261 = vadd.f32 0.0, %v2260
      %v2262 = vpop.f32.mrf.mxu0
      %2263 = vmatprep.mubr.bf16.mxu0 0
      %2264 = vmatmul.mubr.bf16.gmra.mxu0 %v2175
      %v2265 = vpop.f32.mrf.mxu0
      %v2266 = vadd.f32 0.0, %v2265
      %v2267 = vpop.f32.mrf.mxu0
      %v2268 = vpop.f32.mrf.mxu0
      %v2269 = vadd.f32 0.0, %v2268
      %v2270 = vpop.f32.mrf.mxu0
      %2271 = vmatprep.mubr.bf16.mxu0 0
      %2272 = vmatmul.mubr.bf16.gmra.mxu0 %v2178
      %v2273 = vpop.f32.mrf.mxu0
      %v2274 = vadd.f32 0.0, %v2273
      %v2275 = vpop.f32.mrf.mxu0
      %v2276 = vpop.f32.mrf.mxu0
      %v2277 = vadd.f32 0.0, %v2276
      %v2278 = vpop.f32.mrf.mxu0
      %2279 = vdwg.mxu0
      %v2280 = vadd.f32 %v2113, %v2218
      %v2281 = vadd.f32 %v2114, %v2221
      %v2282 = vadd.f32 %v2115, %v2226
      %v2283 = vadd.f32 %v2116, %v2229
      %v2284 = vadd.f32 %v2117, %v2234
      %v2285 = vadd.f32 %v2118, %v2237
      %v2286 = vadd.f32 %v2119, %v2242
      %v2287 = vadd.f32 %v2120, %v2245
      %v2288 = vadd.f32 %v2121, %v2250
      %v2289 = vadd.f32 %v2122, %v2253
      %v2290 = vadd.f32 %v2123, %v2258
      %v2291 = vadd.f32 %v2124, %v2261
      %v2292 = vadd.f32 %v2125, %v2266
      %v2293 = vadd.f32 %v2126, %v2269
      %v2294 = vadd.f32 %v2127, %v2274
      %v2295 = vadd.f32 %v2128, %v2277
      %s2296 = sadd.s32 %s684, 424
      %s2297 = scalar_lea.vmem %s0, %s2296
      %v2298 = vld [vmem:[%s2297] sm:$0xff]
      %v2299 = vld [vmem:[%s2297 + $0x8] sm:$0xff]
      %v2300 = vld [vmem:[%s2297 + $0x10] sm:$0xff]
      %v2301 = vld [vmem:[%s2297 + $0x18] sm:$0xff]
      %v2302 = vld [vmem:[%s2297 + $0x20] sm:$0xff]
      %v2303 = vld [vmem:[%s2297 + $0x28] sm:$0xff]
      %v2304 = vld [vmem:[%s2297 + $0x30] sm:$0xff]
      %v2305 = vld [vmem:[%s2297 + $0x38] sm:$0xff]
      %v2306 = vld [vmem:[%s2297 + $0x40] sm:$0xff]
      %v2307 = vld [vmem:[%s2297 + $0x48] sm:$0xff]
      %v2308 = vld [vmem:[%s2297 + $0x50] sm:$0xff]
      %v2309 = vld [vmem:[%s2297 + $0x58] sm:$0xff]
      %v2310 = vld [vmem:[%s2297 + $0x60] sm:$0xff]
      %v2311 = vld [vmem:[%s2297 + $0x68] sm:$0xff]
      %v2312 = vld [vmem:[%s2297 + $0x70] sm:$0xff]
      %v2313 = vld [vmem:[%s2297 + $0x78] sm:$0xff]
      %v2314 = vpack.c.bf16 %v2299, %v2298
      %v2315 = vpack.c.bf16 %v2301, %v2300
      %v2316 = vpack.c.bf16 %v2303, %v2302
      %v2317 = vpack.c.bf16 %v2305, %v2304
      %v2318 = vpack.c.bf16 %v2307, %v2306
      %v2319 = vpack.c.bf16 %v2309, %v2308
      %v2320 = vpack.c.bf16 %v2311, %v2310
      %v2321 = vpack.c.bf16 %v2313, %v2312
      %v2322 = vld [vmem:[%s710] sm:$0x3]
      %v2324 = vsel %vm95, %v2314, 0
      %v2327 = vsel %vm95, %v2315, 0
      %v2330 = vsel %vm95, %v2316, 0
      %v2333 = vsel %vm95, %v2317, 0
      %v2336 = vsel %vm95, %v2318, 0
      %v2339 = vsel %vm95, %v2319, 0
      %v2342 = vsel %vm95, %v2320, 0
      %v2345 = vsel %vm95, %v2321, 0
      %v2348 = vand.u32 %v2322, %v123
      %2350 = vmatprep.subr.bf16.mxu0 0
      %2351 = vmatpush1.bf16.msra.mxu0 0
      %2352 = vmatprep.subr.bf16.mxu0 0
      %2353 = vmatpush1.bf16.msra.mxu0 0
      %2354 = vmatprep.subr.bf16.mxu0 0
      %2355 = vmatpush1.bf16.msra.mxu0 0
      %2356 = vmatprep.subr.bf16.mxu0 0
      %2357 = vmatpush1.bf16.msra.mxu0 0
      %2358 = vmatprep.subr.bf16.mxu0 0
      %2359 = vmatpush1.bf16.msra.mxu0 0
      %2360 = vmatprep.subr.bf16.mxu0 0
      %2361 = vmatpush1.bf16.msra.mxu0 0
      %2362 = vmatprep.subr.bf16.mxu0 0
      %2363 = vmatpush1.bf16.msra.mxu0 0
      %2364 = vmatprep.subr.bf16.mxu0 0
      %2365 = vmatpush1.bf16.msra.mxu0 %v2348
      %2366 = vmatprep.subr.bf16.mxu0 0
      %2367 = vmatpush2.bf16.msra.mxu0 0
      %2368 = vmatprep.subr.bf16.mxu0 0
      %2369 = vmatpush2.bf16.msra.mxu0 0
      %2370 = vmatprep.subr.bf16.mxu0 0
      %2371 = vmatpush2.bf16.msra.mxu0 0
      %2372 = vmatprep.subr.bf16.mxu0 0
      %2373 = vmatpush2.bf16.msra.mxu0 0
      %2374 = vmatprep.subr.bf16.mxu0 0
      %2375 = vmatpush2.bf16.msra.mxu0 0
      %2376 = vmatprep.subr.bf16.mxu0 0
      %2377 = vmatpush2.bf16.msra.mxu0 0
      %2378 = vmatprep.subr.bf16.mxu0 0
      %2379 = vmatpush2.bf16.msra.mxu0 0
      %2380 = vmatprep.subr.bf16.mxu0 0
      %2381 = vmatpush2.bf16.msra.mxu0 0
      %2382 = vmatprep.mubr.bf16.mxu0 0
      %2383 = vmatmul.mubr.bf16.gmra.mxu0 %v2324
      %v2384 = vpop.f32.mrf.mxu0
      %v2385 = vadd.f32 0.0, %v2384
      %v2386 = vpop.f32.mrf.mxu0
      %v2387 = vpop.f32.mrf.mxu0
      %v2388 = vadd.f32 0.0, %v2387
      %v2389 = vpop.f32.mrf.mxu0
      %2390 = vmatprep.mubr.bf16.mxu0 0
      %2391 = vmatmul.mubr.bf16.gmra.mxu0 %v2327
      %v2392 = vpop.f32.mrf.mxu0
      %v2393 = vadd.f32 0.0, %v2392
      %v2394 = vpop.f32.mrf.mxu0
      %v2395 = vpop.f32.mrf.mxu0
      %v2396 = vadd.f32 0.0, %v2395
      %v2397 = vpop.f32.mrf.mxu0
      %2398 = vmatprep.mubr.bf16.mxu0 0
      %2399 = vmatmul.mubr.bf16.gmra.mxu0 %v2330
      %v2400 = vpop.f32.mrf.mxu0
      %v2401 = vadd.f32 0.0, %v2400
      %v2402 = vpop.f32.mrf.mxu0
      %v2403 = vpop.f32.mrf.mxu0
      %v2404 = vadd.f32 0.0, %v2403
      %v2405 = vpop.f32.mrf.mxu0
      %2406 = vmatprep.mubr.bf16.mxu0 0
      %2407 = vmatmul.mubr.bf16.gmra.mxu0 %v2333
      %v2408 = vpop.f32.mrf.mxu0
      %v2409 = vadd.f32 0.0, %v2408
      %v2410 = vpop.f32.mrf.mxu0
      %v2411 = vpop.f32.mrf.mxu0
      %v2412 = vadd.f32 0.0, %v2411
      %v2413 = vpop.f32.mrf.mxu0
      %2414 = vmatprep.mubr.bf16.mxu0 0
      %2415 = vmatmul.mubr.bf16.gmra.mxu0 %v2336
      %v2416 = vpop.f32.mrf.mxu0
      %v2417 = vadd.f32 0.0, %v2416
      %v2418 = vpop.f32.mrf.mxu0
      %v2419 = vpop.f32.mrf.mxu0
      %v2420 = vadd.f32 0.0, %v2419
      %v2421 = vpop.f32.mrf.mxu0
      %2422 = vmatprep.mubr.bf16.mxu0 0
      %2423 = vmatmul.mubr.bf16.gmra.mxu0 %v2339
      %v2424 = vpop.f32.mrf.mxu0
      %v2425 = vadd.f32 0.0, %v2424
      %v2426 = vpop.f32.mrf.mxu0
      %v2427 = vpop.f32.mrf.mxu0
      %v2428 = vadd.f32 0.0, %v2427
      %v2429 = vpop.f32.mrf.mxu0
      %2430 = vmatprep.mubr.bf16.mxu0 0
      %2431 = vmatmul.mubr.bf16.gmra.mxu0 %v2342
      %v2432 = vpop.f32.mrf.mxu0
      %v2433 = vadd.f32 0.0, %v2432
      %v2434 = vpop.f32.mrf.mxu0
      %v2435 = vpop.f32.mrf.mxu0
      %v2436 = vadd.f32 0.0, %v2435
      %v2437 = vpop.f32.mrf.mxu0
      %2438 = vmatprep.mubr.bf16.mxu0 0
      %2439 = vmatmul.mubr.bf16.gmra.mxu0 %v2345
      %v2440 = vpop.f32.mrf.mxu0
      %v2441 = vadd.f32 0.0, %v2440
      %v2442 = vpop.f32.mrf.mxu0
      %v2443 = vpop.f32.mrf.mxu0
      %v2444 = vadd.f32 0.0, %v2443
      %v2445 = vpop.f32.mrf.mxu0
      %2446 = vdwg.mxu0
      %v2447 = vadd.f32 %v2280, %v2385
      %v2448 = vadd.f32 %v2281, %v2388
      %v2449 = vadd.f32 %v2282, %v2393
      %v2450 = vadd.f32 %v2283, %v2396
      %v2451 = vadd.f32 %v2284, %v2401
      %v2452 = vadd.f32 %v2285, %v2404
      %v2453 = vadd.f32 %v2286, %v2409
      %v2454 = vadd.f32 %v2287, %v2412
      %v2455 = vadd.f32 %v2288, %v2417
      %v2456 = vadd.f32 %v2289, %v2420
      %v2457 = vadd.f32 %v2290, %v2425
      %v2458 = vadd.f32 %v2291, %v2428
      %v2459 = vadd.f32 %v2292, %v2433
      %v2460 = vadd.f32 %v2293, %v2436
      %v2461 = vadd.f32 %v2294, %v2441
      %v2462 = vadd.f32 %v2295, %v2444
      %s2463 = sadd.s32 %s852, 424
      %s2464 = scalar_lea.vmem %s0, %s2463
      %v2465 = vld [vmem:[%s2464] sm:$0xff]
      %v2466 = vld [vmem:[%s2464 + $0x8] sm:$0xff]
      %v2467 = vld [vmem:[%s2464 + $0x10] sm:$0xff]
      %v2468 = vld [vmem:[%s2464 + $0x18] sm:$0xff]
      %v2469 = vld [vmem:[%s2464 + $0x20] sm:$0xff]
      %v2470 = vld [vmem:[%s2464 + $0x28] sm:$0xff]
      %v2471 = vld [vmem:[%s2464 + $0x30] sm:$0xff]
      %v2472 = vld [vmem:[%s2464 + $0x38] sm:$0xff]
      %v2473 = vld [vmem:[%s2464 + $0x40] sm:$0xff]
      %v2474 = vld [vmem:[%s2464 + $0x48] sm:$0xff]
      %v2475 = vld [vmem:[%s2464 + $0x50] sm:$0xff]
      %v2476 = vld [vmem:[%s2464 + $0x58] sm:$0xff]
      %v2477 = vld [vmem:[%s2464 + $0x60] sm:$0xff]
      %v2478 = vld [vmem:[%s2464 + $0x68] sm:$0xff]
      %v2479 = vld [vmem:[%s2464 + $0x70] sm:$0xff]
      %v2480 = vld [vmem:[%s2464 + $0x78] sm:$0xff]
      %v2481 = vpack.c.bf16 %v2466, %v2465
      %v2482 = vpack.c.bf16 %v2468, %v2467
      %v2483 = vpack.c.bf16 %v2470, %v2469
      %v2484 = vpack.c.bf16 %v2472, %v2471
      %v2485 = vpack.c.bf16 %v2474, %v2473
      %v2486 = vpack.c.bf16 %v2476, %v2475
      %v2487 = vpack.c.bf16 %v2478, %v2477
      %v2488 = vpack.c.bf16 %v2480, %v2479
      %v2489 = vld [vmem:[%s878] sm:$0x3]
      %v2491 = vsel %vm95, %v2481, 0
      %v2494 = vsel %vm95, %v2482, 0
      %v2497 = vsel %vm95, %v2483, 0
      %v2500 = vsel %vm95, %v2484, 0
      %v2503 = vsel %vm95, %v2485, 0
      %v2506 = vsel %vm95, %v2486, 0
      %v2509 = vsel %vm95, %v2487, 0
      %v2512 = vsel %vm95, %v2488, 0
      %v2515 = vand.u32 %v2489, %v123
      %2517 = vmatprep.subr.bf16.mxu0 0
      %2518 = vmatpush1.bf16.msra.mxu0 0
      %2519 = vmatprep.subr.bf16.mxu0 0
      %2520 = vmatpush1.bf16.msra.mxu0 0
      %2521 = vmatprep.subr.bf16.mxu0 0
      %2522 = vmatpush1.bf16.msra.mxu0 0
      %2523 = vmatprep.subr.bf16.mxu0 0
      %2524 = vmatpush1.bf16.msra.mxu0 0
      %2525 = vmatprep.subr.bf16.mxu0 0
      %2526 = vmatpush1.bf16.msra.mxu0 0
      %2527 = vmatprep.subr.bf16.mxu0 0
      %2528 = vmatpush1.bf16.msra.mxu0 0
      %2529 = vmatprep.subr.bf16.mxu0 0
      %2530 = vmatpush1.bf16.msra.mxu0 0
      %2531 = vmatprep.subr.bf16.mxu0 0
      %2532 = vmatpush1.bf16.msra.mxu0 %v2515
      %2533 = vmatprep.subr.bf16.mxu0 0
      %2534 = vmatpush2.bf16.msra.mxu0 0
      %2535 = vmatprep.subr.bf16.mxu0 0
      %2536 = vmatpush2.bf16.msra.mxu0 0
      %2537 = vmatprep.subr.bf16.mxu0 0
      %2538 = vmatpush2.bf16.msra.mxu0 0
      %2539 = vmatprep.subr.bf16.mxu0 0
      %2540 = vmatpush2.bf16.msra.mxu0 0
      %2541 = vmatprep.subr.bf16.mxu0 0
      %2542 = vmatpush2.bf16.msra.mxu0 0
      %2543 = vmatprep.subr.bf16.mxu0 0
      %2544 = vmatpush2.bf16.msra.mxu0 0
      %2545 = vmatprep.subr.bf16.mxu0 0
      %2546 = vmatpush2.bf16.msra.mxu0 0
      %2547 = vmatprep.subr.bf16.mxu0 0
      %2548 = vmatpush2.bf16.msra.mxu0 0
      %2549 = vmatprep.mubr.bf16.mxu0 0
      %2550 = vmatmul.mubr.bf16.gmra.mxu0 %v2491
      %v2551 = vpop.f32.mrf.mxu0
      %v2552 = vadd.f32 0.0, %v2551
      %v2553 = vpop.f32.mrf.mxu0
      %v2554 = vpop.f32.mrf.mxu0
      %v2555 = vadd.f32 0.0, %v2554
      %v2556 = vpop.f32.mrf.mxu0
      %2557 = vmatprep.mubr.bf16.mxu0 0
      %2558 = vmatmul.mubr.bf16.gmra.mxu0 %v2494
      %v2559 = vpop.f32.mrf.mxu0
      %v2560 = vadd.f32 0.0, %v2559
      %v2561 = vpop.f32.mrf.mxu0
      %v2562 = vpop.f32.mrf.mxu0
      %v2563 = vadd.f32 0.0, %v2562
      %v2564 = vpop.f32.mrf.mxu0
      %2565 = vmatprep.mubr.bf16.mxu0 0
      %2566 = vmatmul.mubr.bf16.gmra.mxu0 %v2497
      %v2567 = vpop.f32.mrf.mxu0
      %v2568 = vadd.f32 0.0, %v2567
      %v2569 = vpop.f32.mrf.mxu0
      %v2570 = vpop.f32.mrf.mxu0
      %v2571 = vadd.f32 0.0, %v2570
      %v2572 = vpop.f32.mrf.mxu0
      %2573 = vmatprep.mubr.bf16.mxu0 0
      %2574 = vmatmul.mubr.bf16.gmra.mxu0 %v2500
      %v2575 = vpop.f32.mrf.mxu0
      %v2576 = vadd.f32 0.0, %v2575
      %v2577 = vpop.f32.mrf.mxu0
      %v2578 = vpop.f32.mrf.mxu0
      %v2579 = vadd.f32 0.0, %v2578
      %v2580 = vpop.f32.mrf.mxu0
      %2581 = vmatprep.mubr.bf16.mxu0 0
      %2582 = vmatmul.mubr.bf16.gmra.mxu0 %v2503
      %v2583 = vpop.f32.mrf.mxu0
      %v2584 = vadd.f32 0.0, %v2583
      %v2585 = vpop.f32.mrf.mxu0
      %v2586 = vpop.f32.mrf.mxu0
      %v2587 = vadd.f32 0.0, %v2586
      %v2588 = vpop.f32.mrf.mxu0
      %2589 = vmatprep.mubr.bf16.mxu0 0
      %2590 = vmatmul.mubr.bf16.gmra.mxu0 %v2506
      %v2591 = vpop.f32.mrf.mxu0
      %v2592 = vadd.f32 0.0, %v2591
      %v2593 = vpop.f32.mrf.mxu0
      %v2594 = vpop.f32.mrf.mxu0
      %v2595 = vadd.f32 0.0, %v2594
      %v2596 = vpop.f32.mrf.mxu0
      %2597 = vmatprep.mubr.bf16.mxu0 0
      %2598 = vmatmul.mubr.bf16.gmra.mxu0 %v2509
      %v2599 = vpop.f32.mrf.mxu0
      %v2600 = vadd.f32 0.0, %v2599
      %v2601 = vpop.f32.mrf.mxu0
      %v2602 = vpop.f32.mrf.mxu0
      %v2603 = vadd.f32 0.0, %v2602
      %v2604 = vpop.f32.mrf.mxu0
      %2605 = vmatprep.mubr.bf16.mxu0 0
      %2606 = vmatmul.mubr.bf16.gmra.mxu0 %v2512
      %v2607 = vpop.f32.mrf.mxu0
      %v2608 = vadd.f32 0.0, %v2607
      %v2609 = vpop.f32.mrf.mxu0
      %v2610 = vpop.f32.mrf.mxu0
      %v2611 = vadd.f32 0.0, %v2610
      %v2612 = vpop.f32.mrf.mxu0
      %2613 = vdwg.mxu0
      %v2614 = vadd.f32 %v2447, %v2552
      %v2615 = vadd.f32 %v2448, %v2555
      %v2616 = vadd.f32 %v2449, %v2560
      %v2617 = vadd.f32 %v2450, %v2563
      %v2618 = vadd.f32 %v2451, %v2568
      %v2619 = vadd.f32 %v2452, %v2571
      %v2620 = vadd.f32 %v2453, %v2576
      %v2621 = vadd.f32 %v2454, %v2579
      %v2622 = vadd.f32 %v2455, %v2584
      %v2623 = vadd.f32 %v2456, %v2587
      %v2624 = vadd.f32 %v2457, %v2592
      %v2625 = vadd.f32 %v2458, %v2595
      %v2626 = vadd.f32 %v2459, %v2600
      %v2627 = vadd.f32 %v2460, %v2603
      %v2628 = vadd.f32 %v2461, %v2608
      %v2629 = vadd.f32 %v2462, %v2611
      %s2630 = sadd.s32 %s1020, 424
      %s2631 = scalar_lea.vmem %s0, %s2630
      %v2632 = vld [vmem:[%s2631] sm:$0xff]
      %v2633 = vld [vmem:[%s2631 + $0x8] sm:$0xff]
      %v2634 = vld [vmem:[%s2631 + $0x10] sm:$0xff]
      %v2635 = vld [vmem:[%s2631 + $0x18] sm:$0xff]
      %v2636 = vld [vmem:[%s2631 + $0x20] sm:$0xff]
      %v2637 = vld [vmem:[%s2631 + $0x28] sm:$0xff]
      %v2638 = vld [vmem:[%s2631 + $0x30] sm:$0xff]
      %v2639 = vld [vmem:[%s2631 + $0x38] sm:$0xff]
      %v2640 = vld [vmem:[%s2631 + $0x40] sm:$0xff]
      %v2641 = vld [vmem:[%s2631 + $0x48] sm:$0xff]
      %v2642 = vld [vmem:[%s2631 + $0x50] sm:$0xff]
      %v2643 = vld [vmem:[%s2631 + $0x58] sm:$0xff]
      %v2644 = vld [vmem:[%s2631 + $0x60] sm:$0xff]
      %v2645 = vld [vmem:[%s2631 + $0x68] sm:$0xff]
      %v2646 = vld [vmem:[%s2631 + $0x70] sm:$0xff]
      %v2647 = vld [vmem:[%s2631 + $0x78] sm:$0xff]
      %v2648 = vpack.c.bf16 %v2633, %v2632
      %v2649 = vpack.c.bf16 %v2635, %v2634
      %v2650 = vpack.c.bf16 %v2637, %v2636
      %v2651 = vpack.c.bf16 %v2639, %v2638
      %v2652 = vpack.c.bf16 %v2641, %v2640
      %v2653 = vpack.c.bf16 %v2643, %v2642
      %v2654 = vpack.c.bf16 %v2645, %v2644
      %v2655 = vpack.c.bf16 %v2647, %v2646
      %v2656 = vld [vmem:[%s1046] sm:$0x3]
      %v2658 = vsel %vm95, %v2648, 0
      %v2661 = vsel %vm95, %v2649, 0
      %v2664 = vsel %vm95, %v2650, 0
      %v2667 = vsel %vm95, %v2651, 0
      %v2670 = vsel %vm95, %v2652, 0
      %v2673 = vsel %vm95, %v2653, 0
      %v2676 = vsel %vm95, %v2654, 0
      %v2679 = vsel %vm95, %v2655, 0
      %v2682 = vand.u32 %v2656, %v123
      %2684 = vmatprep.subr.bf16.mxu0 0
      %2685 = vmatpush1.bf16.msra.mxu0 0
      %2686 = vmatprep.subr.bf16.mxu0 0
      %2687 = vmatpush1.bf16.msra.mxu0 0
      %2688 = vmatprep.subr.bf16.mxu0 0
      %2689 = vmatpush1.bf16.msra.mxu0 0
      %2690 = vmatprep.subr.bf16.mxu0 0
      %2691 = vmatpush1.bf16.msra.mxu0 0
      %2692 = vmatprep.subr.bf16.mxu0 0
      %2693 = vmatpush1.bf16.msra.mxu0 0
      %2694 = vmatprep.subr.bf16.mxu0 0
      %2695 = vmatpush1.bf16.msra.mxu0 0
      %2696 = vmatprep.subr.bf16.mxu0 0
      %2697 = vmatpush1.bf16.msra.mxu0 0
      %2698 = vmatprep.subr.bf16.mxu0 0
      %2699 = vmatpush1.bf16.msra.mxu0 %v2682
      %2700 = vmatprep.subr.bf16.mxu0 0
      %2701 = vmatpush2.bf16.msra.mxu0 0
      %2702 = vmatprep.subr.bf16.mxu0 0
      %2703 = vmatpush2.bf16.msra.mxu0 0
      %2704 = vmatprep.subr.bf16.mxu0 0
      %2705 = vmatpush2.bf16.msra.mxu0 0
      %2706 = vmatprep.subr.bf16.mxu0 0
      %2707 = vmatpush2.bf16.msra.mxu0 0
      %2708 = vmatprep.subr.bf16.mxu0 0
      %2709 = vmatpush2.bf16.msra.mxu0 0
      %2710 = vmatprep.subr.bf16.mxu0 0
      %2711 = vmatpush2.bf16.msra.mxu0 0
      %2712 = vmatprep.subr.bf16.mxu0 0
      %2713 = vmatpush2.bf16.msra.mxu0 0
      %2714 = vmatprep.subr.bf16.mxu0 0
      %2715 = vmatpush2.bf16.msra.mxu0 0
      %2716 = vmatprep.mubr.bf16.mxu0 0
      %2717 = vmatmul.mubr.bf16.gmra.mxu0 %v2658
      %v2718 = vpop.f32.mrf.mxu0
      %v2719 = vadd.f32 0.0, %v2718
      %v2720 = vpop.f32.mrf.mxu0
      %v2721 = vpop.f32.mrf.mxu0
      %v2722 = vadd.f32 0.0, %v2721
      %v2723 = vpop.f32.mrf.mxu0
      %2724 = vmatprep.mubr.bf16.mxu0 0
      %2725 = vmatmul.mubr.bf16.gmra.mxu0 %v2661
      %v2726 = vpop.f32.mrf.mxu0
      %v2727 = vadd.f32 0.0, %v2726
      %v2728 = vpop.f32.mrf.mxu0
      %v2729 = vpop.f32.mrf.mxu0
      %v2730 = vadd.f32 0.0, %v2729
      %v2731 = vpop.f32.mrf.mxu0
      %2732 = vmatprep.mubr.bf16.mxu0 0
      %2733 = vmatmul.mubr.bf16.gmra.mxu0 %v2664
      %v2734 = vpop.f32.mrf.mxu0
      %v2735 = vadd.f32 0.0, %v2734
      %v2736 = vpop.f32.mrf.mxu0
      %v2737 = vpop.f32.mrf.mxu0
      %v2738 = vadd.f32 0.0, %v2737
      %v2739 = vpop.f32.mrf.mxu0
      %2740 = vmatprep.mubr.bf16.mxu0 0
      %2741 = vmatmul.mubr.bf16.gmra.mxu0 %v2667
      %v2742 = vpop.f32.mrf.mxu0
      %v2743 = vadd.f32 0.0, %v2742
      %v2744 = vpop.f32.mrf.mxu0
      %v2745 = vpop.f32.mrf.mxu0
      %v2746 = vadd.f32 0.0, %v2745
      %v2747 = vpop.f32.mrf.mxu0
      %2748 = vmatprep.mubr.bf16.mxu0 0
      %2749 = vmatmul.mubr.bf16.gmra.mxu0 %v2670
      %v2750 = vpop.f32.mrf.mxu0
      %v2751 = vadd.f32 0.0, %v2750
      %v2752 = vpop.f32.mrf.mxu0
      %v2753 = vpop.f32.mrf.mxu0
      %v2754 = vadd.f32 0.0, %v2753
      %v2755 = vpop.f32.mrf.mxu0
      %2756 = vmatprep.mubr.bf16.mxu0 0
      %2757 = vmatmul.mubr.bf16.gmra.mxu0 %v2673
      %v2758 = vpop.f32.mrf.mxu0
      %v2759 = vadd.f32 0.0, %v2758
      %v2760 = vpop.f32.mrf.mxu0
      %v2761 = vpop.f32.mrf.mxu0
      %v2762 = vadd.f32 0.0, %v2761
      %v2763 = vpop.f32.mrf.mxu0
      %2764 = vmatprep.mubr.bf16.mxu0 0
      %2765 = vmatmul.mubr.bf16.gmra.mxu0 %v2676
      %v2766 = vpop.f32.mrf.mxu0
      %v2767 = vadd.f32 0.0, %v2766
      %v2768 = vpop.f32.mrf.mxu0
      %v2769 = vpop.f32.mrf.mxu0
      %v2770 = vadd.f32 0.0, %v2769
      %v2771 = vpop.f32.mrf.mxu0
      %2772 = vmatprep.mubr.bf16.mxu0 0
      %2773 = vmatmul.mubr.bf16.gmra.mxu0 %v2679
      %v2774 = vpop.f32.mrf.mxu0
      %v2775 = vadd.f32 0.0, %v2774
      %v2776 = vpop.f32.mrf.mxu0
      %v2777 = vpop.f32.mrf.mxu0
      %v2778 = vadd.f32 0.0, %v2777
      %v2779 = vpop.f32.mrf.mxu0
      %2780 = vdwg.mxu0
      %v2781 = vadd.f32 %v2614, %v2719
      %v2782 = vadd.f32 %v2615, %v2722
      %v2783 = vadd.f32 %v2616, %v2727
      %v2784 = vadd.f32 %v2617, %v2730
      %v2785 = vadd.f32 %v2618, %v2735
      %v2786 = vadd.f32 %v2619, %v2738
      %v2787 = vadd.f32 %v2620, %v2743
      %v2788 = vadd.f32 %v2621, %v2746
      %v2789 = vadd.f32 %v2622, %v2751
      %v2790 = vadd.f32 %v2623, %v2754
      %v2791 = vadd.f32 %v2624, %v2759
      %v2792 = vadd.f32 %v2625, %v2762
      %v2793 = vadd.f32 %v2626, %v2767
      %v2794 = vadd.f32 %v2627, %v2770
      %v2795 = vadd.f32 %v2628, %v2775
      %v2796 = vadd.f32 %v2629, %v2778
      %s2797 = sadd.s32 %s1188, 424
      %s2798 = scalar_lea.vmem %s0, %s2797
      %v2799 = vld [vmem:[%s2798] sm:$0xff]
      %v2800 = vld [vmem:[%s2798 + $0x8] sm:$0xff]
      %v2801 = vld [vmem:[%s2798 + $0x10] sm:$0xff]
      %v2802 = vld [vmem:[%s2798 + $0x18] sm:$0xff]
      %v2803 = vld [vmem:[%s2798 + $0x20] sm:$0xff]
      %v2804 = vld [vmem:[%s2798 + $0x28] sm:$0xff]
      %v2805 = vld [vmem:[%s2798 + $0x30] sm:$0xff]
      %v2806 = vld [vmem:[%s2798 + $0x38] sm:$0xff]
      %v2807 = vld [vmem:[%s2798 + $0x40] sm:$0xff]
      %v2808 = vld [vmem:[%s2798 + $0x48] sm:$0xff]
      %v2809 = vld [vmem:[%s2798 + $0x50] sm:$0xff]
      %v2810 = vld [vmem:[%s2798 + $0x58] sm:$0xff]
      %v2811 = vld [vmem:[%s2798 + $0x60] sm:$0xff]
      %v2812 = vld [vmem:[%s2798 + $0x68] sm:$0xff]
      %v2813 = vld [vmem:[%s2798 + $0x70] sm:$0xff]
      %v2814 = vld [vmem:[%s2798 + $0x78] sm:$0xff]
      %v2815 = vpack.c.bf16 %v2800, %v2799
      %v2816 = vpack.c.bf16 %v2802, %v2801
      %v2817 = vpack.c.bf16 %v2804, %v2803
      %v2818 = vpack.c.bf16 %v2806, %v2805
      %v2819 = vpack.c.bf16 %v2808, %v2807
      %v2820 = vpack.c.bf16 %v2810, %v2809
      %v2821 = vpack.c.bf16 %v2812, %v2811
      %v2822 = vpack.c.bf16 %v2814, %v2813
      %v2823 = vld [vmem:[%s1214] sm:$0x3]
      %v2825 = vsel %vm95, %v2815, 0
      %v2828 = vsel %vm95, %v2816, 0
      %v2831 = vsel %vm95, %v2817, 0
      %v2834 = vsel %vm95, %v2818, 0
      %v2837 = vsel %vm95, %v2819, 0
      %v2840 = vsel %vm95, %v2820, 0
      %v2843 = vsel %vm95, %v2821, 0
      %v2846 = vsel %vm95, %v2822, 0
      %v2849 = vand.u32 %v2823, %v123
      %2851 = vmatprep.subr.bf16.mxu0 0
      %2852 = vmatpush1.bf16.msra.mxu0 0
      %2853 = vmatprep.subr.bf16.mxu0 0
      %2854 = vmatpush1.bf16.msra.mxu0 0
      %2855 = vmatprep.subr.bf16.mxu0 0
      %2856 = vmatpush1.bf16.msra.mxu0 0
      %2857 = vmatprep.subr.bf16.mxu0 0
      %2858 = vmatpush1.bf16.msra.mxu0 0
      %2859 = vmatprep.subr.bf16.mxu0 0
      %2860 = vmatpush1.bf16.msra.mxu0 0
      %2861 = vmatprep.subr.bf16.mxu0 0
      %2862 = vmatpush1.bf16.msra.mxu0 0
      %2863 = vmatprep.subr.bf16.mxu0 0
      %2864 = vmatpush1.bf16.msra.mxu0 0
      %2865 = vmatprep.subr.bf16.mxu0 0
      %2866 = vmatpush1.bf16.msra.mxu0 %v2849
      %2867 = vmatprep.subr.bf16.mxu0 0
      %2868 = vmatpush2.bf16.msra.mxu0 0
      %2869 = vmatprep.subr.bf16.mxu0 0
      %2870 = vmatpush2.bf16.msra.mxu0 0
      %2871 = vmatprep.subr.bf16.mxu0 0
      %2872 = vmatpush2.bf16.msra.mxu0 0
      %2873 = vmatprep.subr.bf16.mxu0 0
      %2874 = vmatpush2.bf16.msra.mxu0 0
      %2875 = vmatprep.subr.bf16.mxu0 0
      %2876 = vmatpush2.bf16.msra.mxu0 0
      %2877 = vmatprep.subr.bf16.mxu0 0
      %2878 = vmatpush2.bf16.msra.mxu0 0
      %2879 = vmatprep.subr.bf16.mxu0 0
      %2880 = vmatpush2.bf16.msra.mxu0 0
      %2881 = vmatprep.subr.bf16.mxu0 0
      %2882 = vmatpush2.bf16.msra.mxu0 0
      %2883 = vmatprep.mubr.bf16.mxu0 0
      %2884 = vmatmul.mubr.bf16.gmra.mxu0 %v2825
      %v2885 = vpop.f32.mrf.mxu0
      %v2886 = vadd.f32 0.0, %v2885
      %v2887 = vpop.f32.mrf.mxu0
      %v2888 = vpop.f32.mrf.mxu0
      %v2889 = vadd.f32 0.0, %v2888
      %v2890 = vpop.f32.mrf.mxu0
      %2891 = vmatprep.mubr.bf16.mxu0 0
      %2892 = vmatmul.mubr.bf16.gmra.mxu0 %v2828
      %v2893 = vpop.f32.mrf.mxu0
      %v2894 = vadd.f32 0.0, %v2893
      %v2895 = vpop.f32.mrf.mxu0
      %v2896 = vpop.f32.mrf.mxu0
      %v2897 = vadd.f32 0.0, %v2896
      %v2898 = vpop.f32.mrf.mxu0
      %2899 = vmatprep.mubr.bf16.mxu0 0
      %2900 = vmatmul.mubr.bf16.gmra.mxu0 %v2831
      %v2901 = vpop.f32.mrf.mxu0
      %v2902 = vadd.f32 0.0, %v2901
      %v2903 = vpop.f32.mrf.mxu0
      %v2904 = vpop.f32.mrf.mxu0
      %v2905 = vadd.f32 0.0, %v2904
      %v2906 = vpop.f32.mrf.mxu0
      %2907 = vmatprep.mubr.bf16.mxu0 0
      %2908 = vmatmul.mubr.bf16.gmra.mxu0 %v2834
      %v2909 = vpop.f32.mrf.mxu0
      %v2910 = vadd.f32 0.0, %v2909
      %v2911 = vpop.f32.mrf.mxu0
      %v2912 = vpop.f32.mrf.mxu0
      %v2913 = vadd.f32 0.0, %v2912
      %v2914 = vpop.f32.mrf.mxu0
      %2915 = vmatprep.mubr.bf16.mxu0 0
      %2916 = vmatmul.mubr.bf16.gmra.mxu0 %v2837
      %v2917 = vpop.f32.mrf.mxu0
      %v2918 = vadd.f32 0.0, %v2917
      %v2919 = vpop.f32.mrf.mxu0
      %v2920 = vpop.f32.mrf.mxu0
      %v2921 = vadd.f32 0.0, %v2920
      %v2922 = vpop.f32.mrf.mxu0
      %2923 = vmatprep.mubr.bf16.mxu0 0
      %2924 = vmatmul.mubr.bf16.gmra.mxu0 %v2840
      %v2925 = vpop.f32.mrf.mxu0
      %v2926 = vadd.f32 0.0, %v2925
      %v2927 = vpop.f32.mrf.mxu0
      %v2928 = vpop.f32.mrf.mxu0
      %v2929 = vadd.f32 0.0, %v2928
      %v2930 = vpop.f32.mrf.mxu0
      %2931 = vmatprep.mubr.bf16.mxu0 0
      %2932 = vmatmul.mubr.bf16.gmra.mxu0 %v2843
      %v2933 = vpop.f32.mrf.mxu0
      %v2934 = vadd.f32 0.0, %v2933
      %v2935 = vpop.f32.mrf.mxu0
      %v2936 = vpop.f32.mrf.mxu0
      %v2937 = vadd.f32 0.0, %v2936
      %v2938 = vpop.f32.mrf.mxu0
      %2939 = vmatprep.mubr.bf16.mxu0 0
      %2940 = vmatmul.mubr.bf16.gmra.mxu0 %v2846
      %v2941 = vpop.f32.mrf.mxu0
      %v2942 = vadd.f32 0.0, %v2941
      %v2943 = vpop.f32.mrf.mxu0
      %v2944 = vpop.f32.mrf.mxu0
      %v2945 = vadd.f32 0.0, %v2944
      %v2946 = vpop.f32.mrf.mxu0
      %2947 = vdwg.mxu0
      %v2948 = vadd.f32 %v2781, %v2886
      %v2949 = vadd.f32 %v2782, %v2889
      %v2950 = vadd.f32 %v2783, %v2894
      %v2951 = vadd.f32 %v2784, %v2897
      %v2952 = vadd.f32 %v2785, %v2902
      %v2953 = vadd.f32 %v2786, %v2905
      %v2954 = vadd.f32 %v2787, %v2910
      %v2955 = vadd.f32 %v2788, %v2913
      %v2956 = vadd.f32 %v2789, %v2918
      %v2957 = vadd.f32 %v2790, %v2921
      %v2958 = vadd.f32 %v2791, %v2926
      %v2959 = vadd.f32 %v2792, %v2929
      %v2960 = vadd.f32 %v2793, %v2934
      %v2961 = vadd.f32 %v2794, %v2937
      %v2962 = vadd.f32 %v2795, %v2942
      %v2963 = vadd.f32 %v2796, %v2945
      %s2964 = sadd.s32 %s1356, 424
      %s2965 = scalar_lea.vmem %s0, %s2964
      %v2966 = vld [vmem:[%s2965] sm:$0xff]
      %v2967 = vld [vmem:[%s2965 + $0x8] sm:$0xff]
      %v2968 = vld [vmem:[%s2965 + $0x10] sm:$0xff]
      %v2969 = vld [vmem:[%s2965 + $0x18] sm:$0xff]
      %v2970 = vld [vmem:[%s2965 + $0x20] sm:$0xff]
      %v2971 = vld [vmem:[%s2965 + $0x28] sm:$0xff]
      %v2972 = vld [vmem:[%s2965 + $0x30] sm:$0xff]
      %v2973 = vld [vmem:[%s2965 + $0x38] sm:$0xff]
      %v2974 = vld [vmem:[%s2965 + $0x40] sm:$0xff]
      %v2975 = vld [vmem:[%s2965 + $0x48] sm:$0xff]
      %v2976 = vld [vmem:[%s2965 + $0x50] sm:$0xff]
      %v2977 = vld [vmem:[%s2965 + $0x58] sm:$0xff]
      %v2978 = vld [vmem:[%s2965 + $0x60] sm:$0xff]
      %v2979 = vld [vmem:[%s2965 + $0x68] sm:$0xff]
      %v2980 = vld [vmem:[%s2965 + $0x70] sm:$0xff]
      %v2981 = vld [vmem:[%s2965 + $0x78] sm:$0xff]
      %v2982 = vpack.c.bf16 %v2967, %v2966
      %v2983 = vpack.c.bf16 %v2969, %v2968
      %v2984 = vpack.c.bf16 %v2971, %v2970
      %v2985 = vpack.c.bf16 %v2973, %v2972
      %v2986 = vpack.c.bf16 %v2975, %v2974
      %v2987 = vpack.c.bf16 %v2977, %v2976
      %v2988 = vpack.c.bf16 %v2979, %v2978
      %v2989 = vpack.c.bf16 %v2981, %v2980
      %v2990 = vld [vmem:[%s1382] sm:$0x3]
      %v2992 = vsel %vm95, %v2982, 0
      %v2995 = vsel %vm95, %v2983, 0
      %v2998 = vsel %vm95, %v2984, 0
      %v3001 = vsel %vm95, %v2985, 0
      %v3004 = vsel %vm95, %v2986, 0
      %v3007 = vsel %vm95, %v2987, 0
      %v3010 = vsel %vm95, %v2988, 0
      %v3013 = vsel %vm95, %v2989, 0
      %v3016 = vand.u32 %v2990, %v123
      %3018 = vmatprep.subr.bf16.mxu0 0
      %3019 = vmatpush1.bf16.msra.mxu0 0
      %3020 = vmatprep.subr.bf16.mxu0 0
      %3021 = vmatpush1.bf16.msra.mxu0 0
      %3022 = vmatprep.subr.bf16.mxu0 0
      %3023 = vmatpush1.bf16.msra.mxu0 0
      %3024 = vmatprep.subr.bf16.mxu0 0
      %3025 = vmatpush1.bf16.msra.mxu0 0
      %3026 = vmatprep.subr.bf16.mxu0 0
      %3027 = vmatpush1.bf16.msra.mxu0 0
      %3028 = vmatprep.subr.bf16.mxu0 0
      %3029 = vmatpush1.bf16.msra.mxu0 0
      %3030 = vmatprep.subr.bf16.mxu0 0
      %3031 = vmatpush1.bf16.msra.mxu0 0
      %3032 = vmatprep.subr.bf16.mxu0 0
      %3033 = vmatpush1.bf16.msra.mxu0 %v3016
      %3034 = vmatprep.subr.bf16.mxu0 0
      %3035 = vmatpush2.bf16.msra.mxu0 0
      %3036 = vmatprep.subr.bf16.mxu0 0
      %3037 = vmatpush2.bf16.msra.mxu0 0
      %3038 = vmatprep.subr.bf16.mxu0 0
      %3039 = vmatpush2.bf16.msra.mxu0 0
      %3040 = vmatprep.subr.bf16.mxu0 0
      %3041 = vmatpush2.bf16.msra.mxu0 0
      %3042 = vmatprep.subr.bf16.mxu0 0
      %3043 = vmatpush2.bf16.msra.mxu0 0
      %3044 = vmatprep.subr.bf16.mxu0 0
      %3045 = vmatpush2.bf16.msra.mxu0 0
      %3046 = vmatprep.subr.bf16.mxu0 0
      %3047 = vmatpush2.bf16.msra.mxu0 0
      %3048 = vmatprep.subr.bf16.mxu0 0
      %3049 = vmatpush2.bf16.msra.mxu0 0
      %3050 = vmatprep.mubr.bf16.mxu0 0
      %3051 = vmatmul.mubr.bf16.gmra.mxu0 %v2992
      %v3052 = vpop.f32.mrf.mxu0
      %v3053 = vadd.f32 0.0, %v3052
      %v3054 = vpop.f32.mrf.mxu0
      %v3055 = vpop.f32.mrf.mxu0
      %v3056 = vadd.f32 0.0, %v3055
      %v3057 = vpop.f32.mrf.mxu0
      %3058 = vmatprep.mubr.bf16.mxu0 0
      %3059 = vmatmul.mubr.bf16.gmra.mxu0 %v2995
      %v3060 = vpop.f32.mrf.mxu0
      %v3061 = vadd.f32 0.0, %v3060
      %v3062 = vpop.f32.mrf.mxu0
      %v3063 = vpop.f32.mrf.mxu0
      %v3064 = vadd.f32 0.0, %v3063
      %v3065 = vpop.f32.mrf.mxu0
      %3066 = vmatprep.mubr.bf16.mxu0 0
      %3067 = vmatmul.mubr.bf16.gmra.mxu0 %v2998
      %v3068 = vpop.f32.mrf.mxu0
      %v3069 = vadd.f32 0.0, %v3068
      %v3070 = vpop.f32.mrf.mxu0
      %v3071 = vpop.f32.mrf.mxu0
      %v3072 = vadd.f32 0.0, %v3071
      %v3073 = vpop.f32.mrf.mxu0
      %3074 = vmatprep.mubr.bf16.mxu0 0
      %3075 = vmatmul.mubr.bf16.gmra.mxu0 %v3001
      %v3076 = vpop.f32.mrf.mxu0
      %v3077 = vadd.f32 0.0, %v3076
      %v3078 = vpop.f32.mrf.mxu0
      %v3079 = vpop.f32.mrf.mxu0
      %v3080 = vadd.f32 0.0, %v3079
      %v3081 = vpop.f32.mrf.mxu0
      %3082 = vmatprep.mubr.bf16.mxu0 0
      %3083 = vmatmul.mubr.bf16.gmra.mxu0 %v3004
      %v3084 = vpop.f32.mrf.mxu0
      %v3085 = vadd.f32 0.0, %v3084
      %v3086 = vpop.f32.mrf.mxu0
      %v3087 = vpop.f32.mrf.mxu0
      %v3088 = vadd.f32 0.0, %v3087
      %v3089 = vpop.f32.mrf.mxu0
      %3090 = vmatprep.mubr.bf16.mxu0 0
      %3091 = vmatmul.mubr.bf16.gmra.mxu0 %v3007
      %v3092 = vpop.f32.mrf.mxu0
      %v3093 = vadd.f32 0.0, %v3092
      %v3094 = vpop.f32.mrf.mxu0
      %v3095 = vpop.f32.mrf.mxu0
      %v3096 = vadd.f32 0.0, %v3095
      %v3097 = vpop.f32.mrf.mxu0
      %3098 = vmatprep.mubr.bf16.mxu0 0
      %3099 = vmatmul.mubr.bf16.gmra.mxu0 %v3010
      %v3100 = vpop.f32.mrf.mxu0
      %v3101 = vadd.f32 0.0, %v3100
      %v3102 = vpop.f32.mrf.mxu0
      %v3103 = vpop.f32.mrf.mxu0
      %v3104 = vadd.f32 0.0, %v3103
      %v3105 = vpop.f32.mrf.mxu0
      %3106 = vmatprep.mubr.bf16.mxu0 0
      %3107 = vmatmul.mubr.bf16.gmra.mxu0 %v3013
      %v3108 = vpop.f32.mrf.mxu0
      %v3109 = vadd.f32 0.0, %v3108
      %v3110 = vpop.f32.mrf.mxu0
      %v3111 = vpop.f32.mrf.mxu0
      %v3112 = vadd.f32 0.0, %v3111
      %v3113 = vpop.f32.mrf.mxu0
      %3114 = vdwg.mxu0
      %v3115 = vadd.f32 %v2948, %v3053
      %v3116 = vadd.f32 %v2949, %v3056
      %v3117 = vadd.f32 %v2950, %v3061
      %v3118 = vadd.f32 %v2951, %v3064
      %v3119 = vadd.f32 %v2952, %v3069
      %v3120 = vadd.f32 %v2953, %v3072
      %v3121 = vadd.f32 %v2954, %v3077
      %v3122 = vadd.f32 %v2955, %v3080
      %v3123 = vadd.f32 %v2956, %v3085
      %v3124 = vadd.f32 %v2957, %v3088
      %v3125 = vadd.f32 %v2958, %v3093
      %v3126 = vadd.f32 %v2959, %v3096
      %v3127 = vadd.f32 %v2960, %v3101
      %v3128 = vadd.f32 %v2961, %v3104
      %v3129 = vadd.f32 %v2962, %v3109
      %v3130 = vadd.f32 %v2963, %v3112
      %v3131 = vmax.f32 %v3115, 0.0
      %v3132 = vmax.f32 %v3116, 0.0
      %v3133 = vmax.f32 %v3117, 0.0
      %v3134 = vmax.f32 %v3118, 0.0
      %v3135 = vmax.f32 %v3119, 0.0
      %v3136 = vmax.f32 %v3120, 0.0
      %v3137 = vmax.f32 %v3121, 0.0
      %v3138 = vmax.f32 %v3122, 0.0
      %v3139 = vmax.f32 %v3123, 0.0
      %v3140 = vmax.f32 %v3124, 0.0
      %v3141 = vmax.f32 %v3125, 0.0
      %v3142 = vmax.f32 %v3126, 0.0
      %v3143 = vmax.f32 %v3127, 0.0
      %v3144 = vmax.f32 %v3128, 0.0
      %v3145 = vmax.f32 %v3129, 0.0
      %v3146 = vmax.f32 %v3130, 0.0
      %v3147 = vmul.f32 %v3131, %v1543
      %v3148 = vmul.f32 %v3132, %v1548
      %v3149 = vmul.f32 %v3133, %v1553
      %v3150 = vmul.f32 %v3134, %v1558
      %v3151 = vmul.f32 %v3135, %v1563
      %v3152 = vmul.f32 %v3136, %v1568
      %v3153 = vmul.f32 %v3137, %v1573
      %v3154 = vmul.f32 %v3138, %v1578
      %v3155 = vmul.f32 %v3139, %v1583
      %v3156 = vmul.f32 %v3140, %v1588
      %v3157 = vmul.f32 %v3141, %v1593
      %v3158 = vmul.f32 %v3142, %v1598
      %v3159 = vmul.f32 %v3143, %v1603
      %v3160 = vmul.f32 %v3144, %v1608
      %v3161 = vmul.f32 %v3145, %v1613
      %v3162 = vmul.f32 %v3146, %v1618
      %v3163 = vld [vmem:[#allocation2 + $0x1] sm:$0x1]
      %v3164 = vadd.f32 %v3147, %v3148
      %v3165 = vadd.f32 %v3164, %v3149
      %v3166 = vadd.f32 %v3165, %v3150
      %v3167 = vadd.f32 %v3166, %v3151
      %v3168 = vadd.f32 %v3167, %v3152
      %v3169 = vadd.f32 %v3168, %v3153
      %v3170 = vadd.f32 %v3169, %v3154
      %v3171 = vadd.f32 %v3170, %v3155
      %v3172 = vadd.f32 %v3171, %v3156
      %v3173 = vadd.f32 %v3172, %v3157
      %v3174 = vadd.f32 %v3173, %v3158
      %v3175 = vadd.f32 %v3174, %v3159
      %v3176 = vadd.f32 %v3175, %v3160
      %v3177 = vadd.f32 %v3176, %v3161
      %v3178 = vadd.f32 %v3177, %v3162
      %v3179 = vrot.slane %v3178, 4
      %v3180 = vadd.f32 %v3178, %v3179
      %v3181 = vrot.slane %v3180, 2
      %v3182 = vadd.f32 %v3180, %v3181
      %v3183 = vrot.slane %v3182, 1
      %v3184 = vadd.f32 %v3182, %v3183
      %v3185 = vadd.f32 %v3163, %v3184
      %3186 = vst [vmem:[#allocation2 + $0x1] sm:$0x1] %v3185
    $region18: #{tpu_custom_call.1} parent=1 // loop_footer
      %s22 = sadd.s32 1, %s18
    $region19: #{tpu_custom_call.1} parent=1 // loop_footer_branch
      %17 = sbr.rel target = $region15
    $region20: #{tpu_custom_call.1} parent=1 // loop_exit
      _
    %v3187 = vld [vmem:[#allocation2] sm:$0x3]
    %v3188 = vmul.f32 %v3187, 0.00390625
    %3189 = vst [vmem:[#allocation3] sm:$0x3] %v3188
    // Predicated region
    $region21: #{tpu_custom_call.1} parent=1 // pred_check
      _
    $region22: #{tpu_custom_call.1} parent=1 // pred_check_branch
      %3191 = sbr.rel (0) target = $region24
    $region23: #{tpu_custom_call.1} parent=1 // pred_region
      %s3193 = ssub.s32 32, 32
      %3194 = vsyncadd [#allocation4], %s3193
      %s3196 = sshll.u32 [#allocation3], 4
      %s3197 = int_to_ptr.vmem [resolvable:$true] %s3196
      %3199 = dma.vmem_to_hbm [thread:$0]  %s3197, 32, %s3, [#allocation4]
    $region24: #{tpu_custom_call.1} parent=1 // pred_fallthru
      _
    // Predicated region
    $region25: #{tpu_custom_call.1} parent=1 // pred_check
      _
    $region26: #{tpu_custom_call.1} parent=1 // pred_check_branch
      %3201 = sbr.rel (0) target = $region28
    $region27: #{tpu_custom_call.1} parent=1 // pred_region
      %3202 = dma.done [#allocation4], 32
    $region28: #{tpu_custom_call.1} parent=1 // pred_fallthru
      _
    %3203 = vsyncpa [#allocation4], 1

</llo_original>
